<compile_context>
chip_gen: v7x
topology: tpu7x:2x2x1
jax: 0.10.0
libtpu: 0.0.40
codegen_flags: <defaults>
</compile_context>

<pallas_src>
import jax
import jax.numpy as jnp
from jax.experimental import pallas as pl
from jax.experimental.pallas import tpu as pltpu

# ---------------- model dims (small, consistent with the module) -------------
B = 4          # batch
BP = 8         # batch padded to a full sublane group
T = 8          # sequence length
I = 8          # input_size
H = 32         # hidden_size
H4 = 4 * H     # 128 -> gates exactly fill one lane group
FC = 64        # fc hidden
OUT = 1        # output_size

# ---------------- packed parameter slab layout (rows of width 128) -----------
# Weight blocks start at multiples of 8 rows (tile-aligned static slices);
# bias / vector rows share the final 8-row tile.
R_WIH1 = 0                 # (I , 4H)  candidate lanes pre-scaled x2
R_WHH1 = R_WIH1 + I        # (H , 4H)
R_WIH2 = R_WHH1 + H        # (H , 4H)
R_WHH2 = R_WIH2 + H        # (H , 4H)
R_WFC1 = R_WHH2 + H        # (H , 128) fc1 weights, lanes >= FC are zero
R_TAIL = R_WFC1 + H        # 8-row tail tile with biases / vectors
ROWS = R_TAIL + 8
# rows inside the tail tile
TB_B1, TB_B2, TB_WATT, TB_BFC1, TB_WFC2, TB_SCAL = 0, 1, 2, 3, 4, 5
# TB_SCAL row: lane 0 = attention bias, lane 1 = fc2 bias


def lstm_model_kernel(x_ref,        # (T*BP, I)   time-major, batch padded
                      p_ref,        # (ROWS, 4H)  packed parameter slab
                      out_ref,      # (BP, 1)
                      xw1_ref,      # scratch (T*BP, 4H)
                      h2seq_ref):   # scratch (BP, T*H)
    # ---- recurrence parameters (hoisted, static tile-aligned slices) --------
    wih1 = p_ref[R_WIH1:R_WIH1 + I, :]                 # (I, 4H)
    whh1 = p_ref[R_WHH1:R_WHH1 + H, :]                 # (H, 4H)
    wih2 = p_ref[R_WIH2:R_WIH2 + H, :]                 # (H, 4H)
    whh2 = p_ref[R_WHH2:R_WHH2 + H, :]                 # (H, 4H)
    tail = p_ref[R_TAIL:R_TAIL + 8, :]                 # (8, 4H) biases/vectors
    b1 = tail[TB_B1:TB_B1 + 1, :]                      # (1, 4H)
    b2b = jnp.broadcast_to(tail[TB_B2:TB_B2 + 1, :], (BP, H4))   # hoisted bcast

    # layer-1 input projection hoisted out of the recurrence: one MXU matmul
    # covering all T steps (bias folded in), spilled to VMEM scratch so the
    # unrolled loop reloads one (8,128) tile per step instead of holding 8 vregs.
    xw1_ref[...] = jnp.dot(x_ref[...], wih1,
                           preferred_element_type=jnp.float32) + b1

    def gate_acts(g):
        # Candidate-gate weight/bias columns were pre-scaled by 2 at pack time,
        # so a single sigmoid EUP push over the whole 128-lane gate vreg covers
        # all four gates: tanh(x) == 2*sigmoid(2x) - 1. PyTorch order [i,f,g,o].
        sg = jax.nn.sigmoid(g)
        return (sg[:, 0:H], sg[:, H:2 * H],
                2.0 * sg[:, 2 * H:3 * H] - 1.0, sg[:, 3 * H:4 * H])

    z = jnp.zeros((BP, H), jnp.float32)
    h1, c1, h2, c2 = z, z, z, z

    for t in range(T):                    # T static -> fully unrolled
        # layer-2 partial product depends only on h2(t-1) and the (hoisted)
        # bias: it can issue while layer 1 runs, shortening the post-h1 chain.
        g2p = jnp.dot(h2, whh2, preferred_element_type=jnp.float32) + b2b

        # layer 1: only the recurrent matmul remains on the critical path
        g1 = xw1_ref[t * BP:(t + 1) * BP, :] + jnp.dot(
            h1, whh1, preferred_element_type=jnp.float32)          # (BP, 4H)
        i1, f1, gg1, o1 = gate_acts(g1)
        c1 = f1 * c1 + i1 * gg1
        h1 = o1 * jnp.tanh(c1)

        # TODO(synk): inter-layer LSTM dropout applies only in training; identity here.

        # layer 2: remaining K=32 partial product once h1(t) is ready
        g2 = jnp.dot(h1, wih2, preferred_element_type=jnp.float32) + g2p
        i2, f2, gg2, o2 = gate_acts(g2)
        c2 = f2 * c2 + i2 * gg2
        h2 = o2 * jnp.tanh(c2)

        # stash h2(t) in lane-dense VMEM scratch; store is off the serial chain
        h2seq_ref[:, t * H:(t + 1) * H] = h2

    # ---- epilogue parameters (loaded after the loop to keep its live set small)
    watt = tail[TB_WATT:TB_WATT + 1, 0:H]              # (1, H)
    batt = tail[TB_SCAL:TB_SCAL + 1, 0:1]              # (1, 1)
    bfc1 = tail[TB_BFC1:TB_BFC1 + 1, :]                # (1, 128), lanes>=FC zero
    wfc2 = tail[TB_WFC2:TB_WFC2 + 1, :]                # (1, 128), lanes>=FC zero
    bfc2 = tail[TB_SCAL:TB_SCAL + 1, 1:2]              # (1, 1)
    wfc1 = p_ref[R_WFC1:R_WFC1 + H, :]                 # (H, 128), lanes>=FC zero

    # attention: tanh(Linear(H->1)), softmax over time, weighted sum over steps
    cols = []
    for t in range(T):
        h2t = h2seq_ref[:, t * H:(t + 1) * H]
        cols.append(jnp.sum(h2t * watt, axis=-1, keepdims=True))   # (BP, 1)
    scores = jnp.tanh(jnp.concatenate(cols, axis=-1) + batt)       # (BP, T)
    m = jnp.max(scores, axis=-1, keepdims=True)
    e = jnp.exp(scores - m)
    # exact division keeps the 1e-4 match with the pure-JAX reference
    w = e / jnp.sum(e, axis=-1, keepdims=True)                      # (BP, T)

    context = jnp.zeros((BP, H), jnp.float32)
    for t in range(T):
        context = context + w[:, t:t + 1] * h2seq_ref[:, t * H:(t + 1) * H]

    # fc head: Linear(H,64) -> ReLU -> (Dropout = identity) -> Linear(64,1)
    hfc = jnp.maximum(
        jnp.dot(context, wfc1, preferred_element_type=jnp.float32) + bfc1, 0.0)
    out_ref[...] = jnp.sum(hfc * wfc2, axis=-1, keepdims=True) + bfc2


# ---------------- parameter packing (done once, not per call) ----------------
def pack_params(p):
    """Repack raw parameters into one lane-dense (ROWS, 128) f32 slab.
    Candidate-gate columns [2H:3H) are pre-scaled by 2 so the kernel can use a
    single sigmoid per gate vreg (tanh(x) = 2*sigmoid(2x) - 1)."""
    def scale_g(w):
        return w.at[..., 2 * H:3 * H].multiply(2.0)
    slab = jnp.zeros((ROWS, H4), jnp.float32)
    slab = slab.at[R_WIH1:R_WIH1 + I, :].set(scale_g(p['wih1_T']))
    slab = slab.at[R_WHH1:R_WHH1 + H, :].set(scale_g(p['whh1_T']))
    slab = slab.at[R_WIH2:R_WIH2 + H, :].set(scale_g(p['wih2_T']))
    slab = slab.at[R_WHH2:R_WHH2 + H, :].set(scale_g(p['whh2_T']))
    slab = slab.at[R_WFC1:R_WFC1 + H, 0:FC].set(p['wfc1_T'])
    slab = slab.at[R_TAIL + TB_B1, :].set(scale_g(p['b1'])[0])
    slab = slab.at[R_TAIL + TB_B2, :].set(scale_g(p['b2'])[0])
    slab = slab.at[R_TAIL + TB_WATT, 0:H].set(p['watt'][:, 0])
    slab = slab.at[R_TAIL + TB_BFC1, 0:FC].set(p['bfc1'][0])
    slab = slab.at[R_TAIL + TB_WFC2, 0:FC].set(p['wfc2_T'][:, 0])
    slab = slab.at[R_TAIL + TB_SCAL, 0].set(p['batt'][0, 0])
    slab = slab.at[R_TAIL + TB_SCAL, 1].set(p['bfc2'][0, 0])
    return slab


def lstm_model_forward(x_btI, param_slab):
    """x_btI: (B, T, I) batch_first like the PyTorch module. Returns (B,)."""
    Bn, Tn, In = x_btI.shape
    # pad batch to a full sublane group so every vreg load/store is dense
    x_pad = jnp.zeros((BP, Tn, In), jnp.float32).at[:Bn].set(x_btI)
    x_flat = jnp.transpose(x_pad, (1, 0, 2)).reshape(Tn * BP, In)   # (T*BP, I)

    vmem = pl.BlockSpec(memory_space=pltpu.MemorySpace.VMEM)
    out = pl.pallas_call(
        lstm_model_kernel,
        out_shape=jax.ShapeDtypeStruct((BP, OUT), jnp.float32),
        in_specs=[vmem, vmem],
        out_specs=vmem,
        scratch_shapes=[pltpu.VMEM((T * BP, H4), jnp.float32),   # xw1 spill
                        pltpu.VMEM((BP, T * H), jnp.float32)],   # h2 sequence
    )(x_flat, param_slab)
    return out[:Bn, 0]   # matches PyTorch output.squeeze() for output_size=1


lstm_model_forward_jit = jax.jit(lstm_model_forward)


# ---------------- pure-JAX reference for a sanity check ----------------------
def reference_forward(x_btI, p):
    def layer(xs, wih_T, whh_T, b):
        def step(carry, x_t):
            h, c = carry
            g = x_t @ wih_T + h @ whh_T + b[0]
            i = jax.nn.sigmoid(g[:, :H]); f = jax.nn.sigmoid(g[:, H:2 * H])
            gg = jnp.tanh(g[:, 2 * H:3 * H]); o = jax.nn.sigmoid(g[:, 3 * H:])
            c = f * c + i * gg
            h = o * jnp.tanh(c)
            return (h, c), h
        z = jnp.zeros((x_btI.shape[0], H), jnp.float32)
        _, hs = jax.lax.scan(step, (z, z), xs)
        return hs
    xs = jnp.transpose(x_btI, (1, 0, 2))
    h1 = layer(xs, p['wih1_T'], p['whh1_T'], p['b1'])
    h2 = layer(h1, p['wih2_T'], p['whh2_T'], p['b2'])        # (T, B, H)
    scores = jnp.tanh(jnp.einsum('tbh,hk->tbk', h2, p['watt']) + p['batt'])
    w = jax.nn.softmax(scores, axis=0)
    ctx = jnp.sum(w * h2, axis=0)
    hfc = jnp.maximum(ctx @ p['wfc1_T'] + p['bfc1'], 0.0)
    return (hfc @ p['wfc2_T'] + p['bfc2']).reshape(-1)


def init_params(key):
    ks = jax.random.split(key, 16)
    s = 1.0 / jnp.sqrt(H)
    u = lambda k, shape: jax.random.uniform(k, shape, jnp.float32, -s, s)
    return {
        'wih1_T': u(ks[0], (I, 4 * H)),
        'whh1_T': u(ks[1], (H, 4 * H)),
        'b1':     u(ks[2], (1, 4 * H)) + u(ks[3], (1, 4 * H)),  # b_ih + b_hh
        'wih2_T': u(ks[4], (H, 4 * H)),
        'whh2_T': u(ks[5], (H, 4 * H)),
        'b2':     u(ks[6], (1, 4 * H)) + u(ks[7], (1, 4 * H)),
        'watt':   u(ks[8], (H, 1)),
        'batt':   u(ks[9], (1, 1)),
        'wfc1_T': u(ks[10], (H, FC)),
        'bfc1':   u(ks[11], (1, FC)),
        'wfc2_T': u(ks[12], (FC, OUT)),
        'bfc2':   u(ks[13], (1, OUT)),
    }


if __name__ == "__main__":
    key = jax.random.PRNGKey(0)
    kx, kp = jax.random.split(key)
    x = jax.random.normal(kx, (B, T, I), jnp.float32)   # batch_first input
    params = init_params(kp)
    slab = jax.block_until_ready(pack_params(params))    # init-time repack

    out = jax.block_until_ready(lstm_model_forward_jit(x, slab))
    ref = jax.block_until_ready(reference_forward(x, params))

    assert out.shape == (B,)
    assert jnp.allclose(out, ref, atol=1e-4, rtol=1e-4), (out, ref)
    print("KERNEL_OK")
</pallas_src>

<mosaic_0001>
module attributes {stable_mosaic.version = 11 : i64} {
  func.func @lstm_model_kernel(%arg0: memref<64x8xf32, #tpu.memory_space<vmem>>, %arg1: memref<144x128xf32, #tpu.memory_space<vmem>>, %arg2: memref<8x1xf32, #tpu.memory_space<vmem>>, %arg3: memref<64x128xf32, #tpu.memory_space<vmem>>, %arg4: memref<8x256xf32, #tpu.memory_space<vmem>>) attributes {dimension_semantics = [], scalar_prefetch = 0 : i64, scratch_operands = 2 : i64, tpu.core_type = #tpu.core_type<tc>} {
    %c0 = arith.constant 0 : index
    %c0_0 = arith.constant 0 : index
    %0 = vector.load %arg1[%c0, %c0_0] : memref<144x128xf32, #tpu.memory_space<vmem>>, vector<8x128xf32>
    %c8 = arith.constant 8 : index
    %c0_1 = arith.constant 0 : index
    %1 = vector.load %arg1[%c8, %c0_1] : memref<144x128xf32, #tpu.memory_space<vmem>>, vector<32x128xf32>
    %c40 = arith.constant 40 : index
    %c0_2 = arith.constant 0 : index
    %2 = vector.load %arg1[%c40, %c0_2] : memref<144x128xf32, #tpu.memory_space<vmem>>, vector<32x128xf32>
    %c72 = arith.constant 72 : index
    %c0_3 = arith.constant 0 : index
    %3 = vector.load %arg1[%c72, %c0_3] : memref<144x128xf32, #tpu.memory_space<vmem>>, vector<32x128xf32>
    %c136 = arith.constant 136 : index
    %c0_4 = arith.constant 0 : index
    %4 = vector.load %arg1[%c136, %c0_4] : memref<144x128xf32, #tpu.memory_space<vmem>>, vector<8x128xf32>
    %5 = vector.extract_strided_slice %4 {offsets = [0, 0], sizes = [1, 128], strides = [1, 1]} : vector<8x128xf32> to vector<1x128xf32>
    %6 = vector.extract_strided_slice %4 {offsets = [1, 0], sizes = [1, 128], strides = [1, 1]} : vector<8x128xf32> to vector<1x128xf32>
    %7 = vector.shape_cast %6 : vector<1x128xf32> to vector<1x128xf32>
    %8 = vector.broadcast %7 : vector<1x128xf32> to vector<8x128xf32>
    %c0_5 = arith.constant 0 : index
    %c0_6 = arith.constant 0 : index
    %9 = vector.load %arg0[%c0_5, %c0_6] : memref<64x8xf32, #tpu.memory_space<vmem>>, vector<64x8xf32>
    %cst = arith.constant dense<0.000000e+00> : vector<64x128xf32>
    %10 = tpu.matmul %9, %0, %cst {dimension_numbers = #tpu.dot_dimension_numbers<[1], [0], [0], [1], [0, 0, 1, 1], [], []>} : vector<64x8xf32>, vector<8x128xf32>, vector<64x128xf32> -> vector<64x128xf32>
    %11 = vector.broadcast %5 : vector<1x128xf32> to vector<64x128xf32>
    %12 = arith.addf %10, %11 : vector<64x128xf32>
    %c0_7 = arith.constant 0 : index
    %c0_8 = arith.constant 0 : index
    %13 = vector.load %arg3[%c0_7, %c0_8] : memref<64x128xf32, #tpu.memory_space<vmem>>, vector<64x128xf32>
    tpu.vector_store %arg3[%c0_7, %c0_8], %12 {strides = array<i32>} : memref<64x128xf32, #tpu.memory_space<vmem>>, vector<64x128xf32>,
    %cst_9 = arith.constant 0.000000e+00 : f32
    %14 = vector.broadcast %cst_9 : f32 to vector<8x32xf32>
    %cst_10 = arith.constant dense<0.000000e+00> : vector<8x128xf32>
    %15 = tpu.matmul %14, %3, %cst_10 {dimension_numbers = #tpu.dot_dimension_numbers<[1], [0], [0], [1], [0, 0, 1, 1], [], []>} : vector<8x32xf32>, vector<32x128xf32>, vector<8x128xf32> -> vector<8x128xf32>
    %16 = arith.addf %15, %8 : vector<8x128xf32>
    %c0_11 = arith.constant 0 : index
    %c0_12 = arith.constant 0 : index
    %17 = vector.load %arg3[%c0_11, %c0_12] : memref<64x128xf32, #tpu.memory_space<vmem>>, vector<8x128xf32>
    %cst_13 = arith.constant dense<0.000000e+00> : vector<8x128xf32>
    %18 = tpu.matmul %14, %1, %cst_13 {dimension_numbers = #tpu.dot_dimension_numbers<[1], [0], [0], [1], [0, 0, 1, 1], [], []>} : vector<8x32xf32>, vector<32x128xf32>, vector<8x128xf32> -> vector<8x128xf32>
    %19 = arith.addf %17, %18 : vector<8x128xf32>
    %20 = arith.negf %19 : vector<8x128xf32>
    %21 = math.exp %20 : vector<8x128xf32>
    %cst_14 = arith.constant 1.000000e+00 : f32
    %22 = vector.broadcast %cst_14 : f32 to vector<8x128xf32>
    %23 = arith.addf %22, %21 : vector<8x128xf32>
    %24 = arith.divf %22, %23 : vector<8x128xf32>
    %25 = vector.extract_strided_slice %24 {offsets = [0, 0], sizes = [8, 32], strides = [1, 1]} : vector<8x128xf32> to vector<8x32xf32>
    %26 = vector.extract_strided_slice %24 {offsets = [0, 32], sizes = [8, 32], strides = [1, 1]} : vector<8x128xf32> to vector<8x32xf32>
    %27 = vector.extract_strided_slice %24 {offsets = [0, 64], sizes = [8, 32], strides = [1, 1]} : vector<8x128xf32> to vector<8x32xf32>
    %cst_15 = arith.constant 2.000000e+00 : f32
    %28 = vector.broadcast %cst_15 : f32 to vector<8x32xf32>
    %29 = arith.mulf %28, %27 : vector<8x32xf32>
    %cst_16 = arith.constant 1.000000e+00 : f32
    %30 = vector.broadcast %cst_16 : f32 to vector<8x32xf32>
    %31 = arith.subf %29, %30 : vector<8x32xf32>
    %32 = vector.extract_strided_slice %24 {offsets = [0, 96], sizes = [8, 32], strides = [1, 1]} : vector<8x128xf32> to vector<8x32xf32>
    %33 = arith.mulf %26, %14 : vector<8x32xf32>
    %34 = arith.mulf %25, %31 : vector<8x32xf32>
    %35 = arith.addf %33, %34 : vector<8x32xf32>
    %36 = math.tanh %35 : vector<8x32xf32>
    %37 = arith.mulf %32, %36 : vector<8x32xf32>
    %cst_17 = arith.constant dense<0.000000e+00> : vector<8x128xf32>
    %38 = tpu.matmul %37, %2, %cst_17 {dimension_numbers = #tpu.dot_dimension_numbers<[1], [0], [0], [1], [0, 0, 1, 1], [], []>} : vector<8x32xf32>, vector<32x128xf32>, vector<8x128xf32> -> vector<8x128xf32>
    %39 = arith.addf %38, %16 : vector<8x128xf32>
    %40 = arith.negf %39 : vector<8x128xf32>
    %41 = math.exp %40 : vector<8x128xf32>
    %cst_18 = arith.constant 1.000000e+00 : f32
    %42 = vector.broadcast %cst_18 : f32 to vector<8x128xf32>
    %43 = arith.addf %42, %41 : vector<8x128xf32>
    %44 = arith.divf %42, %43 : vector<8x128xf32>
    %45 = vector.extract_strided_slice %44 {offsets = [0, 0], sizes = [8, 32], strides = [1, 1]} : vector<8x128xf32> to vector<8x32xf32>
    %46 = vector.extract_strided_slice %44 {offsets = [0, 32], sizes = [8, 32], strides = [1, 1]} : vector<8x128xf32> to vector<8x32xf32>
    %47 = vector.extract_strided_slice %44 {offsets = [0, 64], sizes = [8, 32], strides = [1, 1]} : vector<8x128xf32> to vector<8x32xf32>
    %cst_19 = arith.constant 2.000000e+00 : f32
    %48 = vector.broadcast %cst_19 : f32 to vector<8x32xf32>
    %49 = arith.mulf %48, %47 : vector<8x32xf32>
    %cst_20 = arith.constant 1.000000e+00 : f32
    %50 = vector.broadcast %cst_20 : f32 to vector<8x32xf32>
    %51 = arith.subf %49, %50 : vector<8x32xf32>
    %52 = vector.extract_strided_slice %44 {offsets = [0, 96], sizes = [8, 32], strides = [1, 1]} : vector<8x128xf32> to vector<8x32xf32>
    %53 = arith.mulf %46, %14 : vector<8x32xf32>
    %54 = arith.mulf %45, %51 : vector<8x32xf32>
    %55 = arith.addf %53, %54 : vector<8x32xf32>
    %56 = math.tanh %55 : vector<8x32xf32>
    %57 = arith.mulf %52, %56 : vector<8x32xf32>
    %c0_21 = arith.constant 0 : index
    %c0_22 = arith.constant 0 : index
    %58 = vector.load %arg4[%c0_21, %c0_22] : memref<8x256xf32, #tpu.memory_space<vmem>>, vector<8x32xf32>
    tpu.vector_store %arg4[%c0_21, %c0_22], %57 {strides = array<i32>} : memref<8x256xf32, #tpu.memory_space<vmem>>, vector<8x32xf32>,
    %cst_23 = arith.constant dense<0.000000e+00> : vector<8x128xf32>
    %59 = tpu.matmul %57, %3, %cst_23 {dimension_numbers = #tpu.dot_dimension_numbers<[1], [0], [0], [1], [0, 0, 1, 1], [], []>} : vector<8x32xf32>, vector<32x128xf32>, vector<8x128xf32> -> vector<8x128xf32>
    %60 = arith.addf %59, %8 : vector<8x128xf32>
    %c8_24 = arith.constant 8 : index
    %c0_25 = arith.constant 0 : index
    %61 = vector.load %arg3[%c8_24, %c0_25] : memref<64x128xf32, #tpu.memory_space<vmem>>, vector<8x128xf32>
    %cst_26 = arith.constant dense<0.000000e+00> : vector<8x128xf32>
    %62 = tpu.matmul %37, %1, %cst_26 {dimension_numbers = #tpu.dot_dimension_numbers<[1], [0], [0], [1], [0, 0, 1, 1], [], []>} : vector<8x32xf32>, vector<32x128xf32>, vector<8x128xf32> -> vector<8x128xf32>
    %63 = arith.addf %61, %62 : vector<8x128xf32>
    %64 = arith.negf %63 : vector<8x128xf32>
    %65 = math.exp %64 : vector<8x128xf32>
    %cst_27 = arith.constant 1.000000e+00 : f32
    %66 = vector.broadcast %cst_27 : f32 to vector<8x128xf32>
    %67 = arith.addf %66, %65 : vector<8x128xf32>
    %68 = arith.divf %66, %67 : vector<8x128xf32>
    %69 = vector.extract_strided_slice %68 {offsets = [0, 0], sizes = [8, 32], strides = [1, 1]} : vector<8x128xf32> to vector<8x32xf32>
    %70 = vector.extract_strided_slice %68 {offsets = [0, 32], sizes = [8, 32], strides = [1, 1]} : vector<8x128xf32> to vector<8x32xf32>
    %71 = vector.extract_strided_slice %68 {offsets = [0, 64], sizes = [8, 32], strides = [1, 1]} : vector<8x128xf32> to vector<8x32xf32>
    %cst_28 = arith.constant 2.000000e+00 : f32
    %72 = vector.broadcast %cst_28 : f32 to vector<8x32xf32>
    %73 = arith.mulf %72, %71 : vector<8x32xf32>
    %cst_29 = arith.constant 1.000000e+00 : f32
    %74 = vector.broadcast %cst_29 : f32 to vector<8x32xf32>
    %75 = arith.subf %73, %74 : vector<8x32xf32>
    %76 = vector.extract_strided_slice %68 {offsets = [0, 96], sizes = [8, 32], strides = [1, 1]} : vector<8x128xf32> to vector<8x32xf32>
    %77 = arith.mulf %70, %35 : vector<8x32xf32>
    %78 = arith.mulf %69, %75 : vector<8x32xf32>
    %79 = arith.addf %77, %78 : vector<8x32xf32>
    %80 = math.tanh %79 : vector<8x32xf32>
    %81 = arith.mulf %76, %80 : vector<8x32xf32>
    %cst_30 = arith.constant dense<0.000000e+00> : vector<8x128xf32>
    %82 = tpu.matmul %81, %2, %cst_30 {dimension_numbers = #tpu.dot_dimension_numbers<[1], [0], [0], [1], [0, 0, 1, 1], [], []>} : vector<8x32xf32>, vector<32x128xf32>, vector<8x128xf32> -> vector<8x128xf32>
    %83 = arith.addf %82, %60 : vector<8x128xf32>
    %84 = arith.negf %83 : vector<8x128xf32>
    %85 = math.exp %84 : vector<8x128xf32>
    %cst_31 = arith.constant 1.000000e+00 : f32
    %86 = vector.broadcast %cst_31 : f32 to vector<8x128xf32>
    %87 = arith.addf %86, %85 : vector<8x128xf32>
    %88 = arith.divf %86, %87 : vector<8x128xf32>
    %89 = vector.extract_strided_slice %88 {offsets = [0, 0], sizes = [8, 32], strides = [1, 1]} : vector<8x128xf32> to vector<8x32xf32>
    %90 = vector.extract_strided_slice %88 {offsets = [0, 32], sizes = [8, 32], strides = [1, 1]} : vector<8x128xf32> to vector<8x32xf32>
    %91 = vector.extract_strided_slice %88 {offsets = [0, 64], sizes = [8, 32], strides = [1, 1]} : vector<8x128xf32> to vector<8x32xf32>
    %cst_32 = arith.constant 2.000000e+00 : f32
    %92 = vector.broadcast %cst_32 : f32 to vector<8x32xf32>
    %93 = arith.mulf %92, %91 : vector<8x32xf32>
    %cst_33 = arith.constant 1.000000e+00 : f32
    %94 = vector.broadcast %cst_33 : f32 to vector<8x32xf32>
    %95 = arith.subf %93, %94 : vector<8x32xf32>
    %96 = vector.extract_strided_slice %88 {offsets = [0, 96], sizes = [8, 32], strides = [1, 1]} : vector<8x128xf32> to vector<8x32xf32>
    %97 = arith.mulf %90, %55 : vector<8x32xf32>
    %98 = arith.mulf %89, %95 : vector<8x32xf32>
    %99 = arith.addf %97, %98 : vector<8x32xf32>
    %100 = math.tanh %99 : vector<8x32xf32>
    %101 = arith.mulf %96, %100 : vector<8x32xf32>
    %c0_34 = arith.constant 0 : index
    %c32 = arith.constant 32 : index
    %102 = vector.load %arg4[%c0_34, %c32] : memref<8x256xf32, #tpu.memory_space<vmem>>, vector<8x32xf32>
    tpu.vector_store %arg4[%c0_34, %c32], %101 {strides = array<i32>} : memref<8x256xf32, #tpu.memory_space<vmem>>, vector<8x32xf32>,
    %cst_35 = arith.constant dense<0.000000e+00> : vector<8x128xf32>
    %103 = tpu.matmul %101, %3, %cst_35 {dimension_numbers = #tpu.dot_dimension_numbers<[1], [0], [0], [1], [0, 0, 1, 1], [], []>} : vector<8x32xf32>, vector<32x128xf32>, vector<8x128xf32> -> vector<8x128xf32>
    %104 = arith.addf %103, %8 : vector<8x128xf32>
    %c16 = arith.constant 16 : index
    %c0_36 = arith.constant 0 : index
    %105 = vector.load %arg3[%c16, %c0_36] : memref<64x128xf32, #tpu.memory_space<vmem>>, vector<8x128xf32>
    %cst_37 = arith.constant dense<0.000000e+00> : vector<8x128xf32>
    %106 = tpu.matmul %81, %1, %cst_37 {dimension_numbers = #tpu.dot_dimension_numbers<[1], [0], [0], [1], [0, 0, 1, 1], [], []>} : vector<8x32xf32>, vector<32x128xf32>, vector<8x128xf32> -> vector<8x128xf32>
    %107 = arith.addf %105, %106 : vector<8x128xf32>
    %108 = arith.negf %107 : vector<8x128xf32>
    %109 = math.exp %108 : vector<8x128xf32>
    %cst_38 = arith.constant 1.000000e+00 : f32
    %110 = vector.broadcast %cst_38 : f32 to vector<8x128xf32>
    %111 = arith.addf %110, %109 : vector<8x128xf32>
    %112 = arith.divf %110, %111 : vector<8x128xf32>
    %113 = vector.extract_strided_slice %112 {offsets = [0, 0], sizes = [8, 32], strides = [1, 1]} : vector<8x128xf32> to vector<8x32xf32>
    %114 = vector.extract_strided_slice %112 {offsets = [0, 32], sizes = [8, 32], strides = [1, 1]} : vector<8x128xf32> to vector<8x32xf32>
    %115 = vector.extract_strided_slice %112 {offsets = [0, 64], sizes = [8, 32], strides = [1, 1]} : vector<8x128xf32> to vector<8x32xf32>
    %cst_39 = arith.constant 2.000000e+00 : f32
    %116 = vector.broadcast %cst_39 : f32 to vector<8x32xf32>
    %117 = arith.mulf %116, %115 : vector<8x32xf32>
    %cst_40 = arith.constant 1.000000e+00 : f32
    %118 = vector.broadcast %cst_40 : f32 to vector<8x32xf32>
    %119 = arith.subf %117, %118 : vector<8x32xf32>
    %120 = vector.extract_strided_slice %112 {offsets = [0, 96], sizes = [8, 32], strides = [1, 1]} : vector<8x128xf32> to vector<8x32xf32>
    %121 = arith.mulf %114, %79 : vector<8x32xf32>
    %122 = arith.mulf %113, %119 : vector<8x32xf32>
    %123 = arith.addf %121, %122 : vector<8x32xf32>
    %124 = math.tanh %123 : vector<8x32xf32>
    %125 = arith.mulf %120, %124 : vector<8x32xf32>
    %cst_41 = arith.constant dense<0.000000e+00> : vector<8x128xf32>
    %126 = tpu.matmul %125, %2, %cst_41 {dimension_numbers = #tpu.dot_dimension_numbers<[1], [0], [0], [1], [0, 0, 1, 1], [], []>} : vector<8x32xf32>, vector<32x128xf32>, vector<8x128xf32> -> vector<8x128xf32>
    %127 = arith.addf %126, %104 : vector<8x128xf32>
    %128 = arith.negf %127 : vector<8x128xf32>
    %129 = math.exp %128 : vector<8x128xf32>
    %cst_42 = arith.constant 1.000000e+00 : f32
    %130 = vector.broadcast %cst_42 : f32 to vector<8x128xf32>
    %131 = arith.addf %130, %129 : vector<8x128xf32>
    %132 = arith.divf %130, %131 : vector<8x128xf32>
    %133 = vector.extract_strided_slice %132 {offsets = [0, 0], sizes = [8, 32], strides = [1, 1]} : vector<8x128xf32> to vector<8x32xf32>
    %134 = vector.extract_strided_slice %132 {offsets = [0, 32], sizes = [8, 32], strides = [1, 1]} : vector<8x128xf32> to vector<8x32xf32>
    %135 = vector.extract_strided_slice %132 {offsets = [0, 64], sizes = [8, 32], strides = [1, 1]} : vector<8x128xf32> to vector<8x32xf32>
    %cst_43 = arith.constant 2.000000e+00 : f32
    %136 = vector.broadcast %cst_43 : f32 to vector<8x32xf32>
    %137 = arith.mulf %136, %135 : vector<8x32xf32>
    %cst_44 = arith.constant 1.000000e+00 : f32
    %138 = vector.broadcast %cst_44 : f32 to vector<8x32xf32>
    %139 = arith.subf %137, %138 : vector<8x32xf32>
    %140 = vector.extract_strided_slice %132 {offsets = [0, 96], sizes = [8, 32], strides = [1, 1]} : vector<8x128xf32> to vector<8x32xf32>
    %141 = arith.mulf %134, %99 : vector<8x32xf32>
    %142 = arith.mulf %133, %139 : vector<8x32xf32>
    %143 = arith.addf %141, %142 : vector<8x32xf32>
    %144 = math.tanh %143 : vector<8x32xf32>
    %145 = arith.mulf %140, %144 : vector<8x32xf32>
    %c0_45 = arith.constant 0 : index
    %c64 = arith.constant 64 : index
    %146 = vector.load %arg4[%c0_45, %c64] : memref<8x256xf32, #tpu.memory_space<vmem>>, vector<8x32xf32>
    tpu.vector_store %arg4[%c0_45, %c64], %145 {strides = array<i32>} : memref<8x256xf32, #tpu.memory_space<vmem>>, vector<8x32xf32>,
    %cst_46 = arith.constant dense<0.000000e+00> : vector<8x128xf32>
    %147 = tpu.matmul %145, %3, %cst_46 {dimension_numbers = #tpu.dot_dimension_numbers<[1], [0], [0], [1], [0, 0, 1, 1], [], []>} : vector<8x32xf32>, vector<32x128xf32>, vector<8x128xf32> -> vector<8x128xf32>
    %148 = arith.addf %147, %8 : vector<8x128xf32>
    %c24 = arith.constant 24 : index
    %c0_47 = arith.constant 0 : index
    %149 = vector.load %arg3[%c24, %c0_47] : memref<64x128xf32, #tpu.memory_space<vmem>>, vector<8x128xf32>
    %cst_48 = arith.constant dense<0.000000e+00> : vector<8x128xf32>
    %150 = tpu.matmul %125, %1, %cst_48 {dimension_numbers = #tpu.dot_dimension_numbers<[1], [0], [0], [1], [0, 0, 1, 1], [], []>} : vector<8x32xf32>, vector<32x128xf32>, vector<8x128xf32> -> vector<8x128xf32>
    %151 = arith.addf %149, %150 : vector<8x128xf32>
    %152 = arith.negf %151 : vector<8x128xf32>
    %153 = math.exp %152 : vector<8x128xf32>
    %cst_49 = arith.constant 1.000000e+00 : f32
    %154 = vector.broadcast %cst_49 : f32 to vector<8x128xf32>
    %155 = arith.addf %154, %153 : vector<8x128xf32>
    %156 = arith.divf %154, %155 : vector<8x128xf32>
    %157 = vector.extract_strided_slice %156 {offsets = [0, 0], sizes = [8, 32], strides = [1, 1]} : vector<8x128xf32> to vector<8x32xf32>
    %158 = vector.extract_strided_slice %156 {offsets = [0, 32], sizes = [8, 32], strides = [1, 1]} : vector<8x128xf32> to vector<8x32xf32>
    %159 = vector.extract_strided_slice %156 {offsets = [0, 64], sizes = [8, 32], strides = [1, 1]} : vector<8x128xf32> to vector<8x32xf32>
    %cst_50 = arith.constant 2.000000e+00 : f32
    %160 = vector.broadcast %cst_50 : f32 to vector<8x32xf32>
    %161 = arith.mulf %160, %159 : vector<8x32xf32>
    %cst_51 = arith.constant 1.000000e+00 : f32
    %162 = vector.broadcast %cst_51 : f32 to vector<8x32xf32>
    %163 = arith.subf %161, %162 : vector<8x32xf32>
    %164 = vector.extract_strided_slice %156 {offsets = [0, 96], sizes = [8, 32], strides = [1, 1]} : vector<8x128xf32> to vector<8x32xf32>
    %165 = arith.mulf %158, %123 : vector<8x32xf32>
    %166 = arith.mulf %157, %163 : vector<8x32xf32>
    %167 = arith.addf %165, %166 : vector<8x32xf32>
    %168 = math.tanh %167 : vector<8x32xf32>
    %169 = arith.mulf %164, %168 : vector<8x32xf32>
    %cst_52 = arith.constant dense<0.000000e+00> : vector<8x128xf32>
    %170 = tpu.matmul %169, %2, %cst_52 {dimension_numbers = #tpu.dot_dimension_numbers<[1], [0], [0], [1], [0, 0, 1, 1], [], []>} : vector<8x32xf32>, vector<32x128xf32>, vector<8x128xf32> -> vector<8x128xf32>
    %171 = arith.addf %170, %148 : vector<8x128xf32>
    %172 = arith.negf %171 : vector<8x128xf32>
    %173 = math.exp %172 : vector<8x128xf32>
    %cst_53 = arith.constant 1.000000e+00 : f32
    %174 = vector.broadcast %cst_53 : f32 to vector<8x128xf32>
    %175 = arith.addf %174, %173 : vector<8x128xf32>
    %176 = arith.divf %174, %175 : vector<8x128xf32>
    %177 = vector.extract_strided_slice %176 {offsets = [0, 0], sizes = [8, 32], strides = [1, 1]} : vector<8x128xf32> to vector<8x32xf32>
    %178 = vector.extract_strided_slice %176 {offsets = [0, 32], sizes = [8, 32], strides = [1, 1]} : vector<8x128xf32> to vector<8x32xf32>
    %179 = vector.extract_strided_slice %176 {offsets = [0, 64], sizes = [8, 32], strides = [1, 1]} : vector<8x128xf32> to vector<8x32xf32>
    %cst_54 = arith.constant 2.000000e+00 : f32
    %180 = vector.broadcast %cst_54 : f32 to vector<8x32xf32>
    %181 = arith.mulf %180, %179 : vector<8x32xf32>
    %cst_55 = arith.constant 1.000000e+00 : f32
    %182 = vector.broadcast %cst_55 : f32 to vector<8x32xf32>
    %183 = arith.subf %181, %182 : vector<8x32xf32>
    %184 = vector.extract_strided_slice %176 {offsets = [0, 96], sizes = [8, 32], strides = [1, 1]} : vector<8x128xf32> to vector<8x32xf32>
    %185 = arith.mulf %178, %143 : vector<8x32xf32>
    %186 = arith.mulf %177, %183 : vector<8x32xf32>
    %187 = arith.addf %185, %186 : vector<8x32xf32>
    %188 = math.tanh %187 : vector<8x32xf32>
    %189 = arith.mulf %184, %188 : vector<8x32xf32>
    %c0_56 = arith.constant 0 : index
    %c96 = arith.constant 96 : index
    %190 = vector.load %arg4[%c0_56, %c96] : memref<8x256xf32, #tpu.memory_space<vmem>>, vector<8x32xf32>
    tpu.vector_store %arg4[%c0_56, %c96], %189 {strides = array<i32>} : memref<8x256xf32, #tpu.memory_space<vmem>>, vector<8x32xf32>,
    %cst_57 = arith.constant dense<0.000000e+00> : vector<8x128xf32>
    %191 = tpu.matmul %189, %3, %cst_57 {dimension_numbers = #tpu.dot_dimension_numbers<[1], [0], [0], [1], [0, 0, 1, 1], [], []>} : vector<8x32xf32>, vector<32x128xf32>, vector<8x128xf32> -> vector<8x128xf32>
    %192 = arith.addf %191, %8 : vector<8x128xf32>
    %c32_58 = arith.constant 32 : index
    %c0_59 = arith.constant 0 : index
    %193 = vector.load %arg3[%c32_58, %c0_59] : memref<64x128xf32, #tpu.memory_space<vmem>>, vector<8x128xf32>
    %cst_60 = arith.constant dense<0.000000e+00> : vector<8x128xf32>
    %194 = tpu.matmul %169, %1, %cst_60 {dimension_numbers = #tpu.dot_dimension_numbers<[1], [0], [0], [1], [0, 0, 1, 1], [], []>} : vector<8x32xf32>, vector<32x128xf32>, vector<8x128xf32> -> vector<8x128xf32>
    %195 = arith.addf %193, %194 : vector<8x128xf32>
    %196 = arith.negf %195 : vector<8x128xf32>
    %197 = math.exp %196 : vector<8x128xf32>
    %cst_61 = arith.constant 1.000000e+00 : f32
    %198 = vector.broadcast %cst_61 : f32 to vector<8x128xf32>
    %199 = arith.addf %198, %197 : vector<8x128xf32>
    %200 = arith.divf %198, %199 : vector<8x128xf32>
    %201 = vector.extract_strided_slice %200 {offsets = [0, 0], sizes = [8, 32], strides = [1, 1]} : vector<8x128xf32> to vector<8x32xf32>
    %202 = vector.extract_strided_slice %200 {offsets = [0, 32], sizes = [8, 32], strides = [1, 1]} : vector<8x128xf32> to vector<8x32xf32>
    %203 = vector.extract_strided_slice %200 {offsets = [0, 64], sizes = [8, 32], strides = [1, 1]} : vector<8x128xf32> to vector<8x32xf32>
    %cst_62 = arith.constant 2.000000e+00 : f32
    %204 = vector.broadcast %cst_62 : f32 to vector<8x32xf32>
    %205 = arith.mulf %204, %203 : vector<8x32xf32>
    %cst_63 = arith.constant 1.000000e+00 : f32
    %206 = vector.broadcast %cst_63 : f32 to vector<8x32xf32>
    %207 = arith.subf %205, %206 : vector<8x32xf32>
    %208 = vector.extract_strided_slice %200 {offsets = [0, 96], sizes = [8, 32], strides = [1, 1]} : vector<8x128xf32> to vector<8x32xf32>
    %209 = arith.mulf %202, %167 : vector<8x32xf32>
    %210 = arith.mulf %201, %207 : vector<8x32xf32>
    %211 = arith.addf %209, %210 : vector<8x32xf32>
    %212 = math.tanh %211 : vector<8x32xf32>
    %213 = arith.mulf %208, %212 : vector<8x32xf32>
    %cst_64 = arith.constant dense<0.000000e+00> : vector<8x128xf32>
    %214 = tpu.matmul %213, %2, %cst_64 {dimension_numbers = #tpu.dot_dimension_numbers<[1], [0], [0], [1], [0, 0, 1, 1], [], []>} : vector<8x32xf32>, vector<32x128xf32>, vector<8x128xf32> -> vector<8x128xf32>
    %215 = arith.addf %214, %192 : vector<8x128xf32>
    %216 = arith.negf %215 : vector<8x128xf32>
    %217 = math.exp %216 : vector<8x128xf32>
    %cst_65 = arith.constant 1.000000e+00 : f32
    %218 = vector.broadcast %cst_65 : f32 to vector<8x128xf32>
    %219 = arith.addf %218, %217 : vector<8x128xf32>
    %220 = arith.divf %218, %219 : vector<8x128xf32>
    %221 = vector.extract_strided_slice %220 {offsets = [0, 0], sizes = [8, 32], strides = [1, 1]} : vector<8x128xf32> to vector<8x32xf32>
    %222 = vector.extract_strided_slice %220 {offsets = [0, 32], sizes = [8, 32], strides = [1, 1]} : vector<8x128xf32> to vector<8x32xf32>
    %223 = vector.extract_strided_slice %220 {offsets = [0, 64], sizes = [8, 32], strides = [1, 1]} : vector<8x128xf32> to vector<8x32xf32>
    %cst_66 = arith.constant 2.000000e+00 : f32
    %224 = vector.broadcast %cst_66 : f32 to vector<8x32xf32>
    %225 = arith.mulf %224, %223 : vector<8x32xf32>
    %cst_67 = arith.constant 1.000000e+00 : f32
    %226 = vector.broadcast %cst_67 : f32 to vector<8x32xf32>
    %227 = arith.subf %225, %226 : vector<8x32xf32>
    %228 = vector.extract_strided_slice %220 {offsets = [0, 96], sizes = [8, 32], strides = [1, 1]} : vector<8x128xf32> to vector<8x32xf32>
    %229 = arith.mulf %222, %187 : vector<8x32xf32>
    %230 = arith.mulf %221, %227 : vector<8x32xf32>
    %231 = arith.addf %229, %230 : vector<8x32xf32>
    %232 = math.tanh %231 : vector<8x32xf32>
    %233 = arith.mulf %228, %232 : vector<8x32xf32>
    %c0_68 = arith.constant 0 : index
    %c128 = arith.constant 128 : index
    %234 = vector.load %arg4[%c0_68, %c128] : memref<8x256xf32, #tpu.memory_space<vmem>>, vector<8x32xf32>
    tpu.vector_store %arg4[%c0_68, %c128], %233 {strides = array<i32>} : memref<8x256xf32, #tpu.memory_space<vmem>>, vector<8x32xf32>,
    %cst_69 = arith.constant dense<0.000000e+00> : vector<8x128xf32>
    %235 = tpu.matmul %233, %3, %cst_69 {dimension_numbers = #tpu.dot_dimension_numbers<[1], [0], [0], [1], [0, 0, 1, 1], [], []>} : vector<8x32xf32>, vector<32x128xf32>, vector<8x128xf32> -> vector<8x128xf32>
    %236 = arith.addf %235, %8 : vector<8x128xf32>
    %c40_70 = arith.constant 40 : index
    %c0_71 = arith.constant 0 : index
    %237 = vector.load %arg3[%c40_70, %c0_71] : memref<64x128xf32, #tpu.memory_space<vmem>>, vector<8x128xf32>
    %cst_72 = arith.constant dense<0.000000e+00> : vector<8x128xf32>
    %238 = tpu.matmul %213, %1, %cst_72 {dimension_numbers = #tpu.dot_dimension_numbers<[1], [0], [0], [1], [0, 0, 1, 1], [], []>} : vector<8x32xf32>, vector<32x128xf32>, vector<8x128xf32> -> vector<8x128xf32>
    %239 = arith.addf %237, %238 : vector<8x128xf32>
    %240 = arith.negf %239 : vector<8x128xf32>
    %241 = math.exp %240 : vector<8x128xf32>
    %cst_73 = arith.constant 1.000000e+00 : f32
    %242 = vector.broadcast %cst_73 : f32 to vector<8x128xf32>
    %243 = arith.addf %242, %241 : vector<8x128xf32>
    %244 = arith.divf %242, %243 : vector<8x128xf32>
    %245 = vector.extract_strided_slice %244 {offsets = [0, 0], sizes = [8, 32], strides = [1, 1]} : vector<8x128xf32> to vector<8x32xf32>
    %246 = vector.extract_strided_slice %244 {offsets = [0, 32], sizes = [8, 32], strides = [1, 1]} : vector<8x128xf32> to vector<8x32xf32>
    %247 = vector.extract_strided_slice %244 {offsets = [0, 64], sizes = [8, 32], strides = [1, 1]} : vector<8x128xf32> to vector<8x32xf32>
    %cst_74 = arith.constant 2.000000e+00 : f32
    %248 = vector.broadcast %cst_74 : f32 to vector<8x32xf32>
    %249 = arith.mulf %248, %247 : vector<8x32xf32>
    %cst_75 = arith.constant 1.000000e+00 : f32
    %250 = vector.broadcast %cst_75 : f32 to vector<8x32xf32>
    %251 = arith.subf %249, %250 : vector<8x32xf32>
    %252 = vector.extract_strided_slice %244 {offsets = [0, 96], sizes = [8, 32], strides = [1, 1]} : vector<8x128xf32> to vector<8x32xf32>
    %253 = arith.mulf %246, %211 : vector<8x32xf32>
    %254 = arith.mulf %245, %251 : vector<8x32xf32>
    %255 = arith.addf %253, %254 : vector<8x32xf32>
    %256 = math.tanh %255 : vector<8x32xf32>
    %257 = arith.mulf %252, %256 : vector<8x32xf32>
    %cst_76 = arith.constant dense<0.000000e+00> : vector<8x128xf32>
    %258 = tpu.matmul %257, %2, %cst_76 {dimension_numbers = #tpu.dot_dimension_numbers<[1], [0], [0], [1], [0, 0, 1, 1], [], []>} : vector<8x32xf32>, vector<32x128xf32>, vector<8x128xf32> -> vector<8x128xf32>
    %259 = arith.addf %258, %236 : vector<8x128xf32>
    %260 = arith.negf %259 : vector<8x128xf32>
    %261 = math.exp %260 : vector<8x128xf32>
    %cst_77 = arith.constant 1.000000e+00 : f32
    %262 = vector.broadcast %cst_77 : f32 to vector<8x128xf32>
    %263 = arith.addf %262, %261 : vector<8x128xf32>
    %264 = arith.divf %262, %263 : vector<8x128xf32>
    %265 = vector.extract_strided_slice %264 {offsets = [0, 0], sizes = [8, 32], strides = [1, 1]} : vector<8x128xf32> to vector<8x32xf32>
    %266 = vector.extract_strided_slice %264 {offsets = [0, 32], sizes = [8, 32], strides = [1, 1]} : vector<8x128xf32> to vector<8x32xf32>
    %267 = vector.extract_strided_slice %264 {offsets = [0, 64], sizes = [8, 32], strides = [1, 1]} : vector<8x128xf32> to vector<8x32xf32>
    %cst_78 = arith.constant 2.000000e+00 : f32
    %268 = vector.broadcast %cst_78 : f32 to vector<8x32xf32>
    %269 = arith.mulf %268, %267 : vector<8x32xf32>
    %cst_79 = arith.constant 1.000000e+00 : f32
    %270 = vector.broadcast %cst_79 : f32 to vector<8x32xf32>
    %271 = arith.subf %269, %270 : vector<8x32xf32>
    %272 = vector.extract_strided_slice %264 {offsets = [0, 96], sizes = [8, 32], strides = [1, 1]} : vector<8x128xf32> to vector<8x32xf32>
    %273 = arith.mulf %266, %231 : vector<8x32xf32>
    %274 = arith.mulf %265, %271 : vector<8x32xf32>
    %275 = arith.addf %273, %274 : vector<8x32xf32>
    %276 = math.tanh %275 : vector<8x32xf32>
    %277 = arith.mulf %272, %276 : vector<8x32xf32>
    %c0_80 = arith.constant 0 : index
    %c160 = arith.constant 160 : index
    %278 = vector.load %arg4[%c0_80, %c160] : memref<8x256xf32, #tpu.memory_space<vmem>>, vector<8x32xf32>
    tpu.vector_store %arg4[%c0_80, %c160], %277 {strides = array<i32>} : memref<8x256xf32, #tpu.memory_space<vmem>>, vector<8x32xf32>,
    %cst_81 = arith.constant dense<0.000000e+00> : vector<8x128xf32>
    %279 = tpu.matmul %277, %3, %cst_81 {dimension_numbers = #tpu.dot_dimension_numbers<[1], [0], [0], [1], [0, 0, 1, 1], [], []>} : vector<8x32xf32>, vector<32x128xf32>, vector<8x128xf32> -> vector<8x128xf32>
    %280 = arith.addf %279, %8 : vector<8x128xf32>
    %c48 = arith.constant 48 : index
    %c0_82 = arith.constant 0 : index
    %281 = vector.load %arg3[%c48, %c0_82] : memref<64x128xf32, #tpu.memory_space<vmem>>, vector<8x128xf32>
    %cst_83 = arith.constant dense<0.000000e+00> : vector<8x128xf32>
    %282 = tpu.matmul %257, %1, %cst_83 {dimension_numbers = #tpu.dot_dimension_numbers<[1], [0], [0], [1], [0, 0, 1, 1], [], []>} : vector<8x32xf32>, vector<32x128xf32>, vector<8x128xf32> -> vector<8x128xf32>
    %283 = arith.addf %281, %282 : vector<8x128xf32>
    %284 = arith.negf %283 : vector<8x128xf32>
    %285 = math.exp %284 : vector<8x128xf32>
    %cst_84 = arith.constant 1.000000e+00 : f32
    %286 = vector.broadcast %cst_84 : f32 to vector<8x128xf32>
    %287 = arith.addf %286, %285 : vector<8x128xf32>
    %288 = arith.divf %286, %287 : vector<8x128xf32>
    %289 = vector.extract_strided_slice %288 {offsets = [0, 0], sizes = [8, 32], strides = [1, 1]} : vector<8x128xf32> to vector<8x32xf32>
    %290 = vector.extract_strided_slice %288 {offsets = [0, 32], sizes = [8, 32], strides = [1, 1]} : vector<8x128xf32> to vector<8x32xf32>
    %291 = vector.extract_strided_slice %288 {offsets = [0, 64], sizes = [8, 32], strides = [1, 1]} : vector<8x128xf32> to vector<8x32xf32>
    %cst_85 = arith.constant 2.000000e+00 : f32
    %292 = vector.broadcast %cst_85 : f32 to vector<8x32xf32>
    %293 = arith.mulf %292, %291 : vector<8x32xf32>
    %cst_86 = arith.constant 1.000000e+00 : f32
    %294 = vector.broadcast %cst_86 : f32 to vector<8x32xf32>
    %295 = arith.subf %293, %294 : vector<8x32xf32>
    %296 = vector.extract_strided_slice %288 {offsets = [0, 96], sizes = [8, 32], strides = [1, 1]} : vector<8x128xf32> to vector<8x32xf32>
    %297 = arith.mulf %290, %255 : vector<8x32xf32>
    %298 = arith.mulf %289, %295 : vector<8x32xf32>
    %299 = arith.addf %297, %298 : vector<8x32xf32>
    %300 = math.tanh %299 : vector<8x32xf32>
    %301 = arith.mulf %296, %300 : vector<8x32xf32>
    %cst_87 = arith.constant dense<0.000000e+00> : vector<8x128xf32>
    %302 = tpu.matmul %301, %2, %cst_87 {dimension_numbers = #tpu.dot_dimension_numbers<[1], [0], [0], [1], [0, 0, 1, 1], [], []>} : vector<8x32xf32>, vector<32x128xf32>, vector<8x128xf32> -> vector<8x128xf32>
    %303 = arith.addf %302, %280 : vector<8x128xf32>
    %304 = arith.negf %303 : vector<8x128xf32>
    %305 = math.exp %304 : vector<8x128xf32>
    %cst_88 = arith.constant 1.000000e+00 : f32
    %306 = vector.broadcast %cst_88 : f32 to vector<8x128xf32>
    %307 = arith.addf %306, %305 : vector<8x128xf32>
    %308 = arith.divf %306, %307 : vector<8x128xf32>
    %309 = vector.extract_strided_slice %308 {offsets = [0, 0], sizes = [8, 32], strides = [1, 1]} : vector<8x128xf32> to vector<8x32xf32>
    %310 = vector.extract_strided_slice %308 {offsets = [0, 32], sizes = [8, 32], strides = [1, 1]} : vector<8x128xf32> to vector<8x32xf32>
    %311 = vector.extract_strided_slice %308 {offsets = [0, 64], sizes = [8, 32], strides = [1, 1]} : vector<8x128xf32> to vector<8x32xf32>
    %cst_89 = arith.constant 2.000000e+00 : f32
    %312 = vector.broadcast %cst_89 : f32 to vector<8x32xf32>
    %313 = arith.mulf %312, %311 : vector<8x32xf32>
    %cst_90 = arith.constant 1.000000e+00 : f32
    %314 = vector.broadcast %cst_90 : f32 to vector<8x32xf32>
    %315 = arith.subf %313, %314 : vector<8x32xf32>
    %316 = vector.extract_strided_slice %308 {offsets = [0, 96], sizes = [8, 32], strides = [1, 1]} : vector<8x128xf32> to vector<8x32xf32>
    %317 = arith.mulf %310, %275 : vector<8x32xf32>
    %318 = arith.mulf %309, %315 : vector<8x32xf32>
    %319 = arith.addf %317, %318 : vector<8x32xf32>
    %320 = math.tanh %319 : vector<8x32xf32>
    %321 = arith.mulf %316, %320 : vector<8x32xf32>
    %c0_91 = arith.constant 0 : index
    %c192 = arith.constant 192 : index
    %322 = vector.load %arg4[%c0_91, %c192] : memref<8x256xf32, #tpu.memory_space<vmem>>, vector<8x32xf32>
    tpu.vector_store %arg4[%c0_91, %c192], %321 {strides = array<i32>} : memref<8x256xf32, #tpu.memory_space<vmem>>, vector<8x32xf32>,
    %cst_92 = arith.constant dense<0.000000e+00> : vector<8x128xf32>
    %323 = tpu.matmul %321, %3, %cst_92 {dimension_numbers = #tpu.dot_dimension_numbers<[1], [0], [0], [1], [0, 0, 1, 1], [], []>} : vector<8x32xf32>, vector<32x128xf32>, vector<8x128xf32> -> vector<8x128xf32>
    %324 = arith.addf %323, %8 : vector<8x128xf32>
    %c56 = arith.constant 56 : index
    %c0_93 = arith.constant 0 : index
    %325 = vector.load %arg3[%c56, %c0_93] : memref<64x128xf32, #tpu.memory_space<vmem>>, vector<8x128xf32>
    %cst_94 = arith.constant dense<0.000000e+00> : vector<8x128xf32>
    %326 = tpu.matmul %301, %1, %cst_94 {dimension_numbers = #tpu.dot_dimension_numbers<[1], [0], [0], [1], [0, 0, 1, 1], [], []>} : vector<8x32xf32>, vector<32x128xf32>, vector<8x128xf32> -> vector<8x128xf32>
    %327 = arith.addf %325, %326 : vector<8x128xf32>
    %328 = arith.negf %327 : vector<8x128xf32>
    %329 = math.exp %328 : vector<8x128xf32>
    %cst_95 = arith.constant 1.000000e+00 : f32
    %330 = vector.broadcast %cst_95 : f32 to vector<8x128xf32>
    %331 = arith.addf %330, %329 : vector<8x128xf32>
    %332 = arith.divf %330, %331 : vector<8x128xf32>
    %333 = vector.extract_strided_slice %332 {offsets = [0, 0], sizes = [8, 32], strides = [1, 1]} : vector<8x128xf32> to vector<8x32xf32>
    %334 = vector.extract_strided_slice %332 {offsets = [0, 32], sizes = [8, 32], strides = [1, 1]} : vector<8x128xf32> to vector<8x32xf32>
    %335 = vector.extract_strided_slice %332 {offsets = [0, 64], sizes = [8, 32], strides = [1, 1]} : vector<8x128xf32> to vector<8x32xf32>
    %cst_96 = arith.constant 2.000000e+00 : f32
    %336 = vector.broadcast %cst_96 : f32 to vector<8x32xf32>
    %337 = arith.mulf %336, %335 : vector<8x32xf32>
    %cst_97 = arith.constant 1.000000e+00 : f32
    %338 = vector.broadcast %cst_97 : f32 to vector<8x32xf32>
    %339 = arith.subf %337, %338 : vector<8x32xf32>
    %340 = vector.extract_strided_slice %332 {offsets = [0, 96], sizes = [8, 32], strides = [1, 1]} : vector<8x128xf32> to vector<8x32xf32>
    %341 = arith.mulf %334, %299 : vector<8x32xf32>
    %342 = arith.mulf %333, %339 : vector<8x32xf32>
    %343 = arith.addf %341, %342 : vector<8x32xf32>
    %344 = math.tanh %343 : vector<8x32xf32>
    %345 = arith.mulf %340, %344 : vector<8x32xf32>
    %cst_98 = arith.constant dense<0.000000e+00> : vector<8x128xf32>
    %346 = tpu.matmul %345, %2, %cst_98 {dimension_numbers = #tpu.dot_dimension_numbers<[1], [0], [0], [1], [0, 0, 1, 1], [], []>} : vector<8x32xf32>, vector<32x128xf32>, vector<8x128xf32> -> vector<8x128xf32>
    %347 = arith.addf %346, %324 : vector<8x128xf32>
    %348 = arith.negf %347 : vector<8x128xf32>
    %349 = math.exp %348 : vector<8x128xf32>
    %cst_99 = arith.constant 1.000000e+00 : f32
    %350 = vector.broadcast %cst_99 : f32 to vector<8x128xf32>
    %351 = arith.addf %350, %349 : vector<8x128xf32>
    %352 = arith.divf %350, %351 : vector<8x128xf32>
    %353 = vector.extract_strided_slice %352 {offsets = [0, 0], sizes = [8, 32], strides = [1, 1]} : vector<8x128xf32> to vector<8x32xf32>
    %354 = vector.extract_strided_slice %352 {offsets = [0, 32], sizes = [8, 32], strides = [1, 1]} : vector<8x128xf32> to vector<8x32xf32>
    %355 = vector.extract_strided_slice %352 {offsets = [0, 64], sizes = [8, 32], strides = [1, 1]} : vector<8x128xf32> to vector<8x32xf32>
    %cst_100 = arith.constant 2.000000e+00 : f32
    %356 = vector.broadcast %cst_100 : f32 to vector<8x32xf32>
    %357 = arith.mulf %356, %355 : vector<8x32xf32>
    %cst_101 = arith.constant 1.000000e+00 : f32
    %358 = vector.broadcast %cst_101 : f32 to vector<8x32xf32>
    %359 = arith.subf %357, %358 : vector<8x32xf32>
    %360 = vector.extract_strided_slice %352 {offsets = [0, 96], sizes = [8, 32], strides = [1, 1]} : vector<8x128xf32> to vector<8x32xf32>
    %361 = arith.mulf %354, %319 : vector<8x32xf32>
    %362 = arith.mulf %353, %359 : vector<8x32xf32>
    %363 = arith.addf %361, %362 : vector<8x32xf32>
    %364 = math.tanh %363 : vector<8x32xf32>
    %365 = arith.mulf %360, %364 : vector<8x32xf32>
    %c0_102 = arith.constant 0 : index
    %c224 = arith.constant 224 : index
    %366 = vector.load %arg4[%c0_102, %c224] : memref<8x256xf32, #tpu.memory_space<vmem>>, vector<8x32xf32>
    tpu.vector_store %arg4[%c0_102, %c224], %365 {strides = array<i32>} : memref<8x256xf32, #tpu.memory_space<vmem>>, vector<8x32xf32>,
    %367 = vector.extract_strided_slice %4 {offsets = [2, 0], sizes = [1, 32], strides = [1, 1]} : vector<8x128xf32> to vector<1x32xf32>
    %368 = vector.extract_strided_slice %4 {offsets = [5, 0], sizes = [1, 1], strides = [1, 1]} : vector<8x128xf32> to vector<1x1xf32>
    %369 = vector.extract_strided_slice %4 {offsets = [3, 0], sizes = [1, 128], strides = [1, 1]} : vector<8x128xf32> to vector<1x128xf32>
    %370 = vector.extract_strided_slice %4 {offsets = [4, 0], sizes = [1, 128], strides = [1, 1]} : vector<8x128xf32> to vector<1x128xf32>
    %371 = vector.extract_strided_slice %4 {offsets = [5, 1], sizes = [1, 1], strides = [1, 1]} : vector<8x128xf32> to vector<1x1xf32>
    %c104 = arith.constant 104 : index
    %c0_103 = arith.constant 0 : index
    %372 = vector.load %arg1[%c104, %c0_103] : memref<144x128xf32, #tpu.memory_space<vmem>>, vector<32x128xf32>
    %c0_104 = arith.constant 0 : index
    %c0_105 = arith.constant 0 : index
    %373 = vector.load %arg4[%c0_104, %c0_105] : memref<8x256xf32, #tpu.memory_space<vmem>>, vector<8x32xf32>
    %374 = vector.broadcast %367 : vector<1x32xf32> to vector<8x32xf32>
    %375 = arith.mulf %373, %374 : vector<8x32xf32>
    %cst_106 = arith.constant dense<0.000000e+00> : vector<8xf32>
    %376 = vector.multi_reduction <add>, %375, %cst_106 [1] : vector<8x32xf32> to vector<8xf32>
    %377 = vector.shape_cast %376 : vector<8xf32> to vector<8x1xf32>
    %c0_107 = arith.constant 0 : index
    %c32_108 = arith.constant 32 : index
    %378 = vector.load %arg4[%c0_107, %c32_108] : memref<8x256xf32, #tpu.memory_space<vmem>>, vector<8x32xf32>
    %379 = vector.broadcast %367 : vector<1x32xf32> to vector<8x32xf32>
    %380 = arith.mulf %378, %379 : vector<8x32xf32>
    %cst_109 = arith.constant dense<0.000000e+00> : vector<8xf32>
    %381 = vector.multi_reduction <add>, %380, %cst_109 [1] : vector<8x32xf32> to vector<8xf32>
    %382 = vector.shape_cast %381 : vector<8xf32> to vector<8x1xf32>
    %c0_110 = arith.constant 0 : index
    %c64_111 = arith.constant 64 : index
    %383 = vector.load %arg4[%c0_110, %c64_111] : memref<8x256xf32, #tpu.memory_space<vmem>>, vector<8x32xf32>
    %384 = vector.broadcast %367 : vector<1x32xf32> to vector<8x32xf32>
    %385 = arith.mulf %383, %384 : vector<8x32xf32>
    %cst_112 = arith.constant dense<0.000000e+00> : vector<8xf32>
    %386 = vector.multi_reduction <add>, %385, %cst_112 [1] : vector<8x32xf32> to vector<8xf32>
    %387 = vector.shape_cast %386 : vector<8xf32> to vector<8x1xf32>
    %c0_113 = arith.constant 0 : index
    %c96_114 = arith.constant 96 : index
    %388 = vector.load %arg4[%c0_113, %c96_114] : memref<8x256xf32, #tpu.memory_space<vmem>>, vector<8x32xf32>
    %389 = vector.broadcast %367 : vector<1x32xf32> to vector<8x32xf32>
    %390 = arith.mulf %388, %389 : vector<8x32xf32>
    %cst_115 = arith.constant dense<0.000000e+00> : vector<8xf32>
    %391 = vector.multi_reduction <add>, %390, %cst_115 [1] : vector<8x32xf32> to vector<8xf32>
    %392 = vector.shape_cast %391 : vector<8xf32> to vector<8x1xf32>
    %c0_116 = arith.constant 0 : index
    %c128_117 = arith.constant 128 : index
    %393 = vector.load %arg4[%c0_116, %c128_117] : memref<8x256xf32, #tpu.memory_space<vmem>>, vector<8x32xf32>
    %394 = vector.broadcast %367 : vector<1x32xf32> to vector<8x32xf32>
    %395 = arith.mulf %393, %394 : vector<8x32xf32>
    %cst_118 = arith.constant dense<0.000000e+00> : vector<8xf32>
    %396 = vector.multi_reduction <add>, %395, %cst_118 [1] : vector<8x32xf32> to vector<8xf32>
    %397 = vector.shape_cast %396 : vector<8xf32> to vector<8x1xf32>
    %c0_119 = arith.constant 0 : index
    %c160_120 = arith.constant 160 : index
    %398 = vector.load %arg4[%c0_119, %c160_120] : memref<8x256xf32, #tpu.memory_space<vmem>>, vector<8x32xf32>
    %399 = vector.broadcast %367 : vector<1x32xf32> to vector<8x32xf32>
    %400 = arith.mulf %398, %399 : vector<8x32xf32>
    %cst_121 = arith.constant dense<0.000000e+00> : vector<8xf32>
    %401 = vector.multi_reduction <add>, %400, %cst_121 [1] : vector<8x32xf32> to vector<8xf32>
    %402 = vector.shape_cast %401 : vector<8xf32> to vector<8x1xf32>
    %c0_122 = arith.constant 0 : index
    %c192_123 = arith.constant 192 : index
    %403 = vector.load %arg4[%c0_122, %c192_123] : memref<8x256xf32, #tpu.memory_space<vmem>>, vector<8x32xf32>
    %404 = vector.broadcast %367 : vector<1x32xf32> to vector<8x32xf32>
    %405 = arith.mulf %403, %404 : vector<8x32xf32>
    %cst_124 = arith.constant dense<0.000000e+00> : vector<8xf32>
    %406 = vector.multi_reduction <add>, %405, %cst_124 [1] : vector<8x32xf32> to vector<8xf32>
    %407 = vector.shape_cast %406 : vector<8xf32> to vector<8x1xf32>
    %c0_125 = arith.constant 0 : index
    %c224_126 = arith.constant 224 : index
    %408 = vector.load %arg4[%c0_125, %c224_126] : memref<8x256xf32, #tpu.memory_space<vmem>>, vector<8x32xf32>
    %409 = vector.broadcast %367 : vector<1x32xf32> to vector<8x32xf32>
    %410 = arith.mulf %408, %409 : vector<8x32xf32>
    %cst_127 = arith.constant dense<0.000000e+00> : vector<8xf32>
    %411 = vector.multi_reduction <add>, %410, %cst_127 [1] : vector<8x32xf32> to vector<8xf32>
    %412 = vector.shape_cast %411 : vector<8xf32> to vector<8x1xf32>
    %413 = tpu.concatenate %377, %382, %387, %392, %397, %402, %407, %412 in 1 : vector<8x1xf32>, vector<8x1xf32>, vector<8x1xf32>, vector<8x1xf32>, vector<8x1xf32>, vector<8x1xf32>, vector<8x1xf32>, vector<8x1xf32> -> vector<8x8xf32>
    %414 = vector.broadcast %368 : vector<1x1xf32> to vector<8x8xf32>
    %415 = arith.addf %413, %414 : vector<8x8xf32>
    %416 = math.tanh %415 : vector<8x8xf32>
    %cst_128 = arith.constant dense<0xFF800000> : vector<8xf32>
    %417 = vector.multi_reduction <maximumf>, %416, %cst_128 [1] : vector<8x8xf32> to vector<8xf32>
    %418 = vector.shape_cast %417 : vector<8xf32> to vector<8x1xf32>
    %419 = vector.broadcast %418 : vector<8x1xf32> to vector<8x8xf32>
    %420 = arith.subf %416, %419 : vector<8x8xf32>
    %421 = math.exp %420 : vector<8x8xf32>
    %cst_129 = arith.constant dense<0.000000e+00> : vector<8xf32>
    %422 = vector.multi_reduction <add>, %421, %cst_129 [1] : vector<8x8xf32> to vector<8xf32>
    %423 = vector.shape_cast %422 : vector<8xf32> to vector<8x1xf32>
    %424 = vector.broadcast %423 : vector<8x1xf32> to vector<8x8xf32>
    %425 = arith.divf %421, %424 : vector<8x8xf32>
    %cst_130 = arith.constant 0.000000e+00 : f32
    %426 = vector.broadcast %cst_130 : f32 to vector<8x32xf32>
    %427 = vector.extract_strided_slice %425 {offsets = [0, 0], sizes = [8, 1], strides = [1, 1]} : vector<8x8xf32> to vector<8x1xf32>
    %c0_131 = arith.constant 0 : index
    %c0_132 = arith.constant 0 : index
    %428 = vector.load %arg4[%c0_131, %c0_132] : memref<8x256xf32, #tpu.memory_space<vmem>>, vector<8x32xf32>
    %429 = vector.broadcast %427 : vector<8x1xf32> to vector<8x32xf32>
    %430 = arith.mulf %429, %428 : vector<8x32xf32>
    %431 = arith.addf %426, %430 : vector<8x32xf32>
    %432 = vector.extract_strided_slice %425 {offsets = [0, 1], sizes = [8, 1], strides = [1, 1]} : vector<8x8xf32> to vector<8x1xf32>
    %c0_133 = arith.constant 0 : index
    %c32_134 = arith.constant 32 : index
    %433 = vector.load %arg4[%c0_133, %c32_134] : memref<8x256xf32, #tpu.memory_space<vmem>>, vector<8x32xf32>
    %434 = vector.broadcast %432 : vector<8x1xf32> to vector<8x32xf32>
    %435 = arith.mulf %434, %433 : vector<8x32xf32>
    %436 = arith.addf %431, %435 : vector<8x32xf32>
    %437 = vector.extract_strided_slice %425 {offsets = [0, 2], sizes = [8, 1], strides = [1, 1]} : vector<8x8xf32> to vector<8x1xf32>
    %c0_135 = arith.constant 0 : index
    %c64_136 = arith.constant 64 : index
    %438 = vector.load %arg4[%c0_135, %c64_136] : memref<8x256xf32, #tpu.memory_space<vmem>>, vector<8x32xf32>
    %439 = vector.broadcast %437 : vector<8x1xf32> to vector<8x32xf32>
    %440 = arith.mulf %439, %438 : vector<8x32xf32>
    %441 = arith.addf %436, %440 : vector<8x32xf32>
    %442 = vector.extract_strided_slice %425 {offsets = [0, 3], sizes = [8, 1], strides = [1, 1]} : vector<8x8xf32> to vector<8x1xf32>
    %c0_137 = arith.constant 0 : index
    %c96_138 = arith.constant 96 : index
    %443 = vector.load %arg4[%c0_137, %c96_138] : memref<8x256xf32, #tpu.memory_space<vmem>>, vector<8x32xf32>
    %444 = vector.broadcast %442 : vector<8x1xf32> to vector<8x32xf32>
    %445 = arith.mulf %444, %443 : vector<8x32xf32>
    %446 = arith.addf %441, %445 : vector<8x32xf32>
    %447 = vector.extract_strided_slice %425 {offsets = [0, 4], sizes = [8, 1], strides = [1, 1]} : vector<8x8xf32> to vector<8x1xf32>
    %c0_139 = arith.constant 0 : index
    %c128_140 = arith.constant 128 : index
    %448 = vector.load %arg4[%c0_139, %c128_140] : memref<8x256xf32, #tpu.memory_space<vmem>>, vector<8x32xf32>
    %449 = vector.broadcast %447 : vector<8x1xf32> to vector<8x32xf32>
    %450 = arith.mulf %449, %448 : vector<8x32xf32>
    %451 = arith.addf %446, %450 : vector<8x32xf32>
    %452 = vector.extract_strided_slice %425 {offsets = [0, 5], sizes = [8, 1], strides = [1, 1]} : vector<8x8xf32> to vector<8x1xf32>
    %c0_141 = arith.constant 0 : index
    %c160_142 = arith.constant 160 : index
    %453 = vector.load %arg4[%c0_141, %c160_142] : memref<8x256xf32, #tpu.memory_space<vmem>>, vector<8x32xf32>
    %454 = vector.broadcast %452 : vector<8x1xf32> to vector<8x32xf32>
    %455 = arith.mulf %454, %453 : vector<8x32xf32>
    %456 = arith.addf %451, %455 : vector<8x32xf32>
    %457 = vector.extract_strided_slice %425 {offsets = [0, 6], sizes = [8, 1], strides = [1, 1]} : vector<8x8xf32> to vector<8x1xf32>
    %c0_143 = arith.constant 0 : index
    %c192_144 = arith.constant 192 : index
    %458 = vector.load %arg4[%c0_143, %c192_144] : memref<8x256xf32, #tpu.memory_space<vmem>>, vector<8x32xf32>
    %459 = vector.broadcast %457 : vector<8x1xf32> to vector<8x32xf32>
    %460 = arith.mulf %459, %458 : vector<8x32xf32>
    %461 = arith.addf %456, %460 : vector<8x32xf32>
    %462 = vector.extract_strided_slice %425 {offsets = [0, 7], sizes = [8, 1], strides = [1, 1]} : vector<8x8xf32> to vector<8x1xf32>
    %c0_145 = arith.constant 0 : index
    %c224_146 = arith.constant 224 : index
    %463 = vector.load %arg4[%c0_145, %c224_146] : memref<8x256xf32, #tpu.memory_space<vmem>>, vector<8x32xf32>
    %464 = vector.broadcast %462 : vector<8x1xf32> to vector<8x32xf32>
    %465 = arith.mulf %464, %463 : vector<8x32xf32>
    %466 = arith.addf %461, %465 : vector<8x32xf32>
    %cst_147 = arith.constant dense<0.000000e+00> : vector<8x128xf32>
    %467 = tpu.matmul %466, %372, %cst_147 {dimension_numbers = #tpu.dot_dimension_numbers<[1], [0], [0], [1], [0, 0, 1, 1], [], []>} : vector<8x32xf32>, vector<32x128xf32>, vector<8x128xf32> -> vector<8x128xf32>
    %468 = vector.broadcast %369 : vector<1x128xf32> to vector<8x128xf32>
    %469 = arith.addf %467, %468 : vector<8x128xf32>
    %cst_148 = arith.constant 0.000000e+00 : f32
    %470 = vector.broadcast %cst_148 : f32 to vector<8x128xf32>
    %471 = arith.maximumf %469, %470 : vector<8x128xf32>
    %472 = vector.broadcast %370 : vector<1x128xf32> to vector<8x128xf32>
    %473 = arith.mulf %471, %472 : vector<8x128xf32>
    %cst_149 = arith.constant dense<0.000000e+00> : vector<8xf32>
    %474 = vector.multi_reduction <add>, %473, %cst_149 [1] : vector<8x128xf32> to vector<8xf32>
    %475 = vector.shape_cast %474 : vector<8xf32> to vector<8x1xf32>
    %476 = vector.broadcast %371 : vector<1x1xf32> to vector<8x1xf32>
    %477 = arith.addf %475, %476 : vector<8x1xf32>
    %c0_150 = arith.constant 0 : index
    %c0_151 = arith.constant 0 : index
    %478 = vector.load %arg2[%c0_150, %c0_151] : memref<8x1xf32, #tpu.memory_space<vmem>>, vector<8x1xf32>
    tpu.vector_store %arg2[%c0_150, %c0_151], %477 {strides = array<i32>} : memref<8x1xf32, #tpu.memory_space<vmem>>, vector<8x1xf32>,
    return
  }
}

</mosaic_0001>

<llo_original>
// kernel: lstm_model_forward.1
$region0: #{lstm_model_forward.1}
  #allocation0 [shape = 'u32[]', space=smem, size = 0x4, offset = 0x4, fixed_abs, tag = 'smem constant byte address 0x4 - core index']
  #allocation1 [shape = 'u32[144,128]{1,0:T(1,128)}', space=vmem, size = 0x12000, scoped, tag = 'internal scratch']
  #allocation2 [shape = 'f32[64,128]{1,0:T(8,128)}', space=vmem, size = 0x8000, scoped, tag = 'scratch operand']
  #allocation3 [shape = 'f32[8,256]{1,0:T(8,128)}', space=vmem, size = 0x2000, scoped, tag = 'scratch operand']
  %s0 = inlined_call_operand.vmem [shape: f32[64,8], index: 0, kind: input, shape index: {}]
  %s1 = inlined_call_operand.vmem [shape: f32[144,128], index: 1, kind: input, shape index: {}]
  %s2 = inlined_call_operand.vmem [shape: f32[8,1], index: 2, kind: output, shape index: {}]
  %s3 = sld [smem:[#allocation0]]
  $region18: #{lstm_model_forward.1} parent=0
    _
  %s5 = ssub.s32 1, %s3
  %s6 = scalar_select 0, %s5, %s3
  // Predicated region
  $region2: #{lstm_model_forward.1} parent=0 // pred_check
    _
  $region3: #{lstm_model_forward.1} parent=0 // pred_check_branch
    %8 = sbr.rel (0) target = $region5
  $region4: #{lstm_model_forward.1} parent=0 // pred_region
    _
  $region5: #{lstm_model_forward.1} parent=0 // pred_fallthru
    _
  // Predicated region
  $region6: #{lstm_model_forward.1} parent=0 // pred_check
    _
  $region7: #{lstm_model_forward.1} parent=0 // pred_check_branch
    %10 = sbr.rel (0) target = $region9
  $region8: #{lstm_model_forward.1} parent=0 // pred_region
    _
  $region9: #{lstm_model_forward.1} parent=0 // pred_fallthru
    _
  %v11 = vld [vmem:[%s1] sm:$0xff]
  %v12 = vld [vmem:[%s1 + $0x8] sm:$0xff]
  %v13 = vld [vmem:[%s1 + $0x10] sm:$0xff]
  %v14 = vld [vmem:[%s1 + $0x18] sm:$0xff]
  %v15 = vld [vmem:[%s1 + $0x20] sm:$0xff]
  %v16 = vld [vmem:[%s1 + $0x28] sm:$0xff]
  %v17 = vld [vmem:[%s1 + $0x30] sm:$0xff]
  %v18 = vld [vmem:[%s1 + $0x38] sm:$0xff]
  %v19 = vld [vmem:[%s1 + $0x40] sm:$0xff]
  %v20 = vld [vmem:[%s1 + $0x48] sm:$0xff]
  %v21 = vld [vmem:[%s1 + $0x50] sm:$0xff]
  %v22 = vld [vmem:[%s1 + $0x58] sm:$0xff]
  %v23 = vld [vmem:[%s1 + $0x60] sm:$0xff]
  %v24 = vld [vmem:[%s1 + $0x88] sm:$0xff]
  %v25 = vlaneseq
  %v26 = vshrl.u32 %v25, 7
  %v27 = vsub.s32 1, %v26
  %v28 = vrot.slane %v24, %v27
  %v29 = vld [vmem:[%s0] sm:$0xff]
  %v30 = vld [vmem:[%s0 + $0x8] sm:$0xff]
  %v31 = vld [vmem:[%s0 + $0x10] sm:$0xff]
  %v32 = vld [vmem:[%s0 + $0x18] sm:$0xff]
  %v33 = vld [vmem:[%s0 + $0x20] sm:$0xff]
  %v34 = vld [vmem:[%s0 + $0x28] sm:$0xff]
  %v35 = vld [vmem:[%s0 + $0x30] sm:$0xff]
  %v36 = vld [vmem:[%s0 + $0x38] sm:$0xff]
  %v37 = vlaneseq
  %v38 = vshrl.u32 %v37, 7
  %v39 = vsub.s32 0, %v38
  %v40 = vrot.slane %v24, %v39
  %vm41 = vcmask 64512
  %v43 = vsel %vm41, %v29, 0
  %v46 = vsel %vm41, %v30, 0
  %v49 = vsel %vm41, %v31, 0
  %v52 = vsel %vm41, %v32, 0
  %v55 = vsel %vm41, %v33, 0
  %v58 = vsel %vm41, %v34, 0
  %v61 = vsel %vm41, %v35, 0
  %v64 = vsel %vm41, %v36, 0
  %66 = vmatprep.subr.mxu0 0.0
  %67 = vmatpush1.msra.mxu0 %v11
  %68 = vmatprep.subr.mxu0 0.0
  %69 = vmatpush1.msra.mxu0 0.0
  %70 = vmatprep.subr.mxu0 0.0
  %71 = vmatpush1.msra.mxu0 0.0
  %72 = vmatprep.subr.mxu0 0.0
  %73 = vmatpush1.msra.mxu0 0.0
  %74 = vmatprep.subr.mxu0 0.0
  %75 = vmatpush1.msra.mxu0 0.0
  %76 = vmatprep.subr.mxu0 0.0
  %77 = vmatpush1.msra.mxu0 0.0
  %78 = vmatprep.subr.mxu0 0.0
  %79 = vmatpush1.msra.mxu0 0.0
  %80 = vmatprep.subr.mxu0 0.0
  %81 = vmatpush1.msra.mxu0 0.0
  %82 = vmatprep.subr.mxu0 0.0
  %83 = vmatpush1.msra.mxu0 0.0
  %84 = vmatprep.subr.mxu0 0.0
  %85 = vmatpush1.msra.mxu0 0.0
  %86 = vmatprep.subr.mxu0 0.0
  %87 = vmatpush1.msra.mxu0 0.0
  %88 = vmatprep.subr.mxu0 0.0
  %89 = vmatpush1.msra.mxu0 0.0
  %90 = vmatprep.subr.mxu0 0.0
  %91 = vmatpush1.msra.mxu0 0.0
  %92 = vmatprep.subr.mxu0 0.0
  %93 = vmatpush1.msra.mxu0 0.0
  %94 = vmatprep.subr.mxu0 0.0
  %95 = vmatpush1.msra.mxu0 0.0
  %96 = vmatprep.subr.mxu0 0.0
  %97 = vmatpush1.msra.mxu0 0.0
  %98 = vmatprep.subr.mxu0 0.0
  %99 = vmatpush1.msra.mxu0 0.0
  %100 = vmatprep.subr.mxu0 0.0
  %101 = vmatpush1.msra.mxu0 0.0
  %102 = vmatprep.subr.mxu0 0.0
  %103 = vmatpush1.msra.mxu0 0.0
  %104 = vmatprep.subr.mxu0 0.0
  %105 = vmatpush1.msra.mxu0 0.0
  %106 = vmatprep.subr.mxu0 0.0
  %107 = vmatpush1.msra.mxu0 0.0
  %108 = vmatprep.subr.mxu0 0.0
  %109 = vmatpush1.msra.mxu0 0.0
  %110 = vmatprep.subr.mxu0 0.0
  %111 = vmatpush1.msra.mxu0 0.0
  %112 = vmatprep.subr.mxu0 0.0
  %113 = vmatpush1.msra.mxu0 0.0
  %114 = vmatprep.subr.mxu0 0.0
  %115 = vmatpush1.msra.mxu0 0.0
  %116 = vmatprep.subr.mxu0 0.0
  %117 = vmatpush1.msra.mxu0 0.0
  %118 = vmatprep.subr.mxu0 0.0
  %119 = vmatpush1.msra.mxu0 0.0
  %120 = vmatprep.subr.mxu0 0.0
  %121 = vmatpush1.msra.mxu0 0.0
  %122 = vmatprep.subr.mxu0 0.0
  %123 = vmatpush1.msra.mxu0 0.0
  %124 = vmatprep.subr.mxu0 0.0
  %125 = vmatpush1.msra.mxu0 0.0
  %126 = vmatprep.subr.mxu0 0.0
  %127 = vmatpush1.msra.mxu0 0.0
  %128 = vmatprep.subr.mxu0 0.0
  %129 = vmatpush1.msra.mxu0 0.0
  %130 = vmatprep.mubr.f32.mxu0 0.0
  %131 = vmatmul.mubr.f32.gmra.mrb[0].mxu0 %v43
  %v132 = vpop.f32.mrb[0].mxu0
  %v133 = vadd.f32 %v40, %v132
  %v134 = vpop.f32.mrb[0].mxu0
  %135 = vmatprep.mubr.f32.mxu0 0.0
  %136 = vmatmul.mubr.f32.gmra.mrb[0].mxu0 %v46
  %v137 = vpop.f32.mrb[0].mxu0
  %v138 = vadd.f32 %v40, %v137
  %v139 = vpop.f32.mrb[0].mxu0
  %140 = vmatprep.mubr.f32.mxu0 0.0
  %141 = vmatmul.mubr.f32.gmra.mrb[0].mxu0 %v49
  %v142 = vpop.f32.mrb[0].mxu0
  %v143 = vadd.f32 %v40, %v142
  %v144 = vpop.f32.mrb[0].mxu0
  %145 = vmatprep.mubr.f32.mxu0 0.0
  %146 = vmatmul.mubr.f32.gmra.mrb[0].mxu0 %v52
  %v147 = vpop.f32.mrb[0].mxu0
  %v148 = vadd.f32 %v40, %v147
  %v149 = vpop.f32.mrb[0].mxu0
  %150 = vmatprep.mubr.f32.mxu0 0.0
  %151 = vmatmul.mubr.f32.gmra.mrb[0].mxu0 %v55
  %v152 = vpop.f32.mrb[0].mxu0
  %v153 = vadd.f32 %v40, %v152
  %v154 = vpop.f32.mrb[0].mxu0
  %155 = vmatprep.mubr.f32.mxu0 0.0
  %156 = vmatmul.mubr.f32.gmra.mrb[0].mxu0 %v58
  %v157 = vpop.f32.mrb[0].mxu0
  %v158 = vadd.f32 %v40, %v157
  %v159 = vpop.f32.mrb[0].mxu0
  %160 = vmatprep.mubr.f32.mxu0 0.0
  %161 = vmatmul.mubr.f32.gmra.mrb[0].mxu0 %v61
  %v162 = vpop.f32.mrb[0].mxu0
  %v163 = vadd.f32 %v40, %v162
  %v164 = vpop.f32.mrb[0].mxu0
  %165 = vmatprep.mubr.f32.mxu0 0.0
  %166 = vmatmul.mubr.f32.gmra.mrb[0].mxu0 %v64
  %v167 = vpop.f32.mrb[0].mxu0
  %v168 = vadd.f32 %v40, %v167
  %v169 = vpop.f32.mrb[0].mxu0
  %170 = vdwg.mxu0
  %171 = vst [vmem:[#allocation2] sm:$0xff] %v133
  %172 = vst [vmem:[#allocation2 + $0x8] sm:$0xff] %v138
  %173 = vst [vmem:[#allocation2 + $0x10] sm:$0xff] %v143
  %174 = vst [vmem:[#allocation2 + $0x18] sm:$0xff] %v148
  %175 = vst [vmem:[#allocation2 + $0x20] sm:$0xff] %v153
  %176 = vst [vmem:[#allocation2 + $0x28] sm:$0xff] %v158
  %177 = vst [vmem:[#allocation2 + $0x30] sm:$0xff] %v163
  %178 = vst [vmem:[#allocation2 + $0x38] sm:$0xff] %v168
  %vm179 = vcmask 261120
  %v181 = vsel %vm179, 0.0, 0
  %183 = vmatprep.subr.mxu0 0.0
  %184 = vmatpush1.msra.mxu0 %v20
  %185 = vmatprep.subr.mxu0 0.0
  %186 = vmatpush1.msra.mxu0 %v21
  %187 = vmatprep.subr.mxu0 0.0
  %188 = vmatpush1.msra.mxu0 %v22
  %189 = vmatprep.subr.mxu0 0.0
  %190 = vmatpush1.msra.mxu0 %v23
  %191 = vmatprep.subr.mxu0 0.0
  %192 = vmatpush1.msra.mxu0 0.0
  %193 = vmatprep.subr.mxu0 0.0
  %194 = vmatpush1.msra.mxu0 0.0
  %195 = vmatprep.subr.mxu0 0.0
  %196 = vmatpush1.msra.mxu0 0.0
  %197 = vmatprep.subr.mxu0 0.0
  %198 = vmatpush1.msra.mxu0 0.0
  %199 = vmatprep.subr.mxu0 0.0
  %200 = vmatpush1.msra.mxu0 0.0
  %201 = vmatprep.subr.mxu0 0.0
  %202 = vmatpush1.msra.mxu0 0.0
  %203 = vmatprep.subr.mxu0 0.0
  %204 = vmatpush1.msra.mxu0 0.0
  %205 = vmatprep.subr.mxu0 0.0
  %206 = vmatpush1.msra.mxu0 0.0
  %207 = vmatprep.subr.mxu0 0.0
  %208 = vmatpush1.msra.mxu0 0.0
  %209 = vmatprep.subr.mxu0 0.0
  %210 = vmatpush1.msra.mxu0 0.0
  %211 = vmatprep.subr.mxu0 0.0
  %212 = vmatpush1.msra.mxu0 0.0
  %213 = vmatprep.subr.mxu0 0.0
  %214 = vmatpush1.msra.mxu0 0.0
  %215 = vmatprep.subr.mxu0 0.0
  %216 = vmatpush1.msra.mxu0 0.0
  %217 = vmatprep.subr.mxu0 0.0
  %218 = vmatpush1.msra.mxu0 0.0
  %219 = vmatprep.subr.mxu0 0.0
  %220 = vmatpush1.msra.mxu0 0.0
  %221 = vmatprep.subr.mxu0 0.0
  %222 = vmatpush1.msra.mxu0 0.0
  %223 = vmatprep.subr.mxu0 0.0
  %224 = vmatpush1.msra.mxu0 0.0
  %225 = vmatprep.subr.mxu0 0.0
  %226 = vmatpush1.msra.mxu0 0.0
  %227 = vmatprep.subr.mxu0 0.0
  %228 = vmatpush1.msra.mxu0 0.0
  %229 = vmatprep.subr.mxu0 0.0
  %230 = vmatpush1.msra.mxu0 0.0
  %231 = vmatprep.subr.mxu0 0.0
  %232 = vmatpush1.msra.mxu0 0.0
  %233 = vmatprep.subr.mxu0 0.0
  %234 = vmatpush1.msra.mxu0 0.0
  %235 = vmatprep.subr.mxu0 0.0
  %236 = vmatpush1.msra.mxu0 0.0
  %237 = vmatprep.subr.mxu0 0.0
  %238 = vmatpush1.msra.mxu0 0.0
  %239 = vmatprep.subr.mxu0 0.0
  %240 = vmatpush1.msra.mxu0 0.0
  %241 = vmatprep.subr.mxu0 0.0
  %242 = vmatpush1.msra.mxu0 0.0
  %243 = vmatprep.subr.mxu0 0.0
  %244 = vmatpush1.msra.mxu0 0.0
  %245 = vmatprep.subr.mxu0 0.0
  %246 = vmatpush1.msra.mxu0 0.0
  %247 = vmatprep.mubr.f32.mxu0 0.0
  %248 = vmatmul.mubr.f32.gmra.mrb[0].mxu0 %v181
  %v249 = vpop.f32.mrb[0].mxu0
  %v250 = vadd.f32 %v28, %v249
  %v251 = vpop.f32.mrb[0].mxu0
  %252 = vdwg.mxu0
  %v253 = vld [vmem:[#allocation2] sm:$0xff]
  %254 = vmatprep.subr.mxu0 0.0
  %255 = vmatpush1.msra.mxu0 %v12
  %256 = vmatprep.subr.mxu0 0.0
  %257 = vmatpush1.msra.mxu0 %v13
  %258 = vmatprep.subr.mxu0 0.0
  %259 = vmatpush1.msra.mxu0 %v14
  %260 = vmatprep.subr.mxu0 0.0
  %261 = vmatpush1.msra.mxu0 %v15
  %262 = vmatprep.subr.mxu0 0.0
  %263 = vmatpush1.msra.mxu0 0.0
  %264 = vmatprep.subr.mxu0 0.0
  %265 = vmatpush1.msra.mxu0 0.0
  %266 = vmatprep.subr.mxu0 0.0
  %267 = vmatpush1.msra.mxu0 0.0
  %268 = vmatprep.subr.mxu0 0.0
  %269 = vmatpush1.msra.mxu0 0.0
  %270 = vmatprep.subr.mxu0 0.0
  %271 = vmatpush1.msra.mxu0 0.0
  %272 = vmatprep.subr.mxu0 0.0
  %273 = vmatpush1.msra.mxu0 0.0
  %274 = vmatprep.subr.mxu0 0.0
  %275 = vmatpush1.msra.mxu0 0.0
  %276 = vmatprep.subr.mxu0 0.0
  %277 = vmatpush1.msra.mxu0 0.0
  %278 = vmatprep.subr.mxu0 0.0
  %279 = vmatpush1.msra.mxu0 0.0
  %280 = vmatprep.subr.mxu0 0.0
  %281 = vmatpush1.msra.mxu0 0.0
  %282 = vmatprep.subr.mxu0 0.0
  %283 = vmatpush1.msra.mxu0 0.0
  %284 = vmatprep.subr.mxu0 0.0
  %285 = vmatpush1.msra.mxu0 0.0
  %286 = vmatprep.subr.mxu0 0.0
  %287 = vmatpush1.msra.mxu0 0.0
  %288 = vmatprep.subr.mxu0 0.0
  %289 = vmatpush1.msra.mxu0 0.0
  %290 = vmatprep.subr.mxu0 0.0
  %291 = vmatpush1.msra.mxu0 0.0
  %292 = vmatprep.subr.mxu0 0.0
  %293 = vmatpush1.msra.mxu0 0.0
  %294 = vmatprep.subr.mxu0 0.0
  %295 = vmatpush1.msra.mxu0 0.0
  %296 = vmatprep.subr.mxu0 0.0
  %297 = vmatpush1.msra.mxu0 0.0
  %298 = vmatprep.subr.mxu0 0.0
  %299 = vmatpush1.msra.mxu0 0.0
  %300 = vmatprep.subr.mxu0 0.0
  %301 = vmatpush1.msra.mxu0 0.0
  %302 = vmatprep.subr.mxu0 0.0
  %303 = vmatpush1.msra.mxu0 0.0
  %304 = vmatprep.subr.mxu0 0.0
  %305 = vmatpush1.msra.mxu0 0.0
  %306 = vmatprep.subr.mxu0 0.0
  %307 = vmatpush1.msra.mxu0 0.0
  %308 = vmatprep.subr.mxu0 0.0
  %309 = vmatpush1.msra.mxu0 0.0
  %310 = vmatprep.subr.mxu0 0.0
  %311 = vmatpush1.msra.mxu0 0.0
  %312 = vmatprep.subr.mxu0 0.0
  %313 = vmatpush1.msra.mxu0 0.0
  %314 = vmatprep.subr.mxu0 0.0
  %315 = vmatpush1.msra.mxu0 0.0
  %316 = vmatprep.subr.mxu0 0.0
  %317 = vmatpush1.msra.mxu0 0.0
  %318 = vmatprep.mubr.f32.mxu0 0.0
  %319 = vmatmul.mubr.f32.gmra.mrb[0].mxu0 %v181
  %v320 = vpop.f32.mrb[0].mxu0
  %v321 = vadd.f32 0.0, %v320
  %v322 = vpop.f32.mrb[0].mxu0
  %323 = vdwg.mxu0
  %v324 = vadd.f32 %v253, %v321
  %v325 = vxor.u32 %v324, 2147483648
  %v326 = vmul.f32 %v325, 1.442695
  %v327 = vpow.pop %v326
  %v328 = vadd.f32 %v327, 1.0
  %v329 = vrcp.pop %v328
  %v330 = vmul.f32 1.0, %v329
  %v331 = vmul.f32 %v330, 2.0
  %v332 = vsub.f32 %v331, 1.0
  %v333 = vmul.f32 %v330, 0.0
  %335 = vrot.lane.b32.xlu0 %v332, 64
  %v336 = vpop.permute.xlu0 %335
  %v338 = vmul.f32 %v330, %v336
  %340 = vrot.lane.b32.xlu0 %v338, 32
  %v341 = vpop.permute.xlu0 %340
  %v343 = vadd.f32 %v333, %v341
  %v344 = vtanh.pop %v343
  %346 = vrot.lane.b32.xlu0 %v344, 64
  %v347 = vpop.permute.xlu0 %346
  %v349 = vmul.f32 %v330, %v347
  %351 = vrot.lane.b32.xlu0 %v349, 32
  %v352 = vpop.permute.xlu0 %351
  %v353 = vsel %vm179, %v352, 0
  %355 = vmatprep.subr.mxu0 0.0
  %356 = vmatpush1.msra.mxu0 %v16
  %357 = vmatprep.subr.mxu0 0.0
  %358 = vmatpush1.msra.mxu0 %v17
  %359 = vmatprep.subr.mxu0 0.0
  %360 = vmatpush1.msra.mxu0 %v18
  %361 = vmatprep.subr.mxu0 0.0
  %362 = vmatpush1.msra.mxu0 %v19
  %363 = vmatprep.subr.mxu0 0.0
  %364 = vmatpush1.msra.mxu0 0.0
  %365 = vmatprep.subr.mxu0 0.0
  %366 = vmatpush1.msra.mxu0 0.0
  %367 = vmatprep.subr.mxu0 0.0
  %368 = vmatpush1.msra.mxu0 0.0
  %369 = vmatprep.subr.mxu0 0.0
  %370 = vmatpush1.msra.mxu0 0.0
  %371 = vmatprep.subr.mxu0 0.0
  %372 = vmatpush1.msra.mxu0 0.0
  %373 = vmatprep.subr.mxu0 0.0
  %374 = vmatpush1.msra.mxu0 0.0
  %375 = vmatprep.subr.mxu0 0.0
  %376 = vmatpush1.msra.mxu0 0.0
  %377 = vmatprep.subr.mxu0 0.0
  %378 = vmatpush1.msra.mxu0 0.0
  %379 = vmatprep.subr.mxu0 0.0
  %380 = vmatpush1.msra.mxu0 0.0
  %381 = vmatprep.subr.mxu0 0.0
  %382 = vmatpush1.msra.mxu0 0.0
  %383 = vmatprep.subr.mxu0 0.0
  %384 = vmatpush1.msra.mxu0 0.0
  %385 = vmatprep.subr.mxu0 0.0
  %386 = vmatpush1.msra.mxu0 0.0
  %387 = vmatprep.subr.mxu0 0.0
  %388 = vmatpush1.msra.mxu0 0.0
  %389 = vmatprep.subr.mxu0 0.0
  %390 = vmatpush1.msra.mxu0 0.0
  %391 = vmatprep.subr.mxu0 0.0
  %392 = vmatpush1.msra.mxu0 0.0
  %393 = vmatprep.subr.mxu0 0.0
  %394 = vmatpush1.msra.mxu0 0.0
  %395 = vmatprep.subr.mxu0 0.0
  %396 = vmatpush1.msra.mxu0 0.0
  %397 = vmatprep.subr.mxu0 0.0
  %398 = vmatpush1.msra.mxu0 0.0
  %399 = vmatprep.subr.mxu0 0.0
  %400 = vmatpush1.msra.mxu0 0.0
  %401 = vmatprep.subr.mxu0 0.0
  %402 = vmatpush1.msra.mxu0 0.0
  %403 = vmatprep.subr.mxu0 0.0
  %404 = vmatpush1.msra.mxu0 0.0
  %405 = vmatprep.subr.mxu0 0.0
  %406 = vmatpush1.msra.mxu0 0.0
  %407 = vmatprep.subr.mxu0 0.0
  %408 = vmatpush1.msra.mxu0 0.0
  %409 = vmatprep.subr.mxu0 0.0
  %410 = vmatpush1.msra.mxu0 0.0
  %411 = vmatprep.subr.mxu0 0.0
  %412 = vmatpush1.msra.mxu0 0.0
  %413 = vmatprep.subr.mxu0 0.0
  %414 = vmatpush1.msra.mxu0 0.0
  %415 = vmatprep.subr.mxu0 0.0
  %416 = vmatpush1.msra.mxu0 0.0
  %417 = vmatprep.subr.mxu0 0.0
  %418 = vmatpush1.msra.mxu0 0.0
  %419 = vmatprep.mubr.f32.mxu0 0.0
  %420 = vmatmul.mubr.f32.gmra.mrb[0].mxu0 %v353
  %v421 = vpop.f32.mrb[0].mxu0
  %v422 = vadd.f32 %v250, %v421
  %v423 = vpop.f32.mrb[0].mxu0
  %424 = vdwg.mxu0
  %v425 = vxor.u32 %v422, 2147483648
  %v426 = vmul.f32 %v425, 1.442695
  %v427 = vpow.pop %v426
  %v428 = vadd.f32 %v427, 1.0
  %v429 = vrcp.pop %v428
  %v430 = vmul.f32 1.0, %v429
  %v431 = vmul.f32 %v430, 2.0
  %v432 = vsub.f32 %v431, 1.0
  %v433 = vmul.f32 %v430, 0.0
  %435 = vrot.lane.b32.xlu0 %v432, 64
  %v436 = vpop.permute.xlu0 %435
  %v438 = vmul.f32 %v430, %v436
  %440 = vrot.lane.b32.xlu0 %v438, 32
  %v441 = vpop.permute.xlu0 %440
  %v443 = vadd.f32 %v433, %v441
  %v444 = vtanh.pop %v443
  %446 = vrot.lane.b32.xlu0 %v444, 64
  %v447 = vpop.permute.xlu0 %446
  %v449 = vmul.f32 %v430, %v447
  %451 = vrot.lane.b32.xlu0 %v449, 32
  %v452 = vpop.permute.xlu0 %451
  %454 = vst.msk [vmem:[#allocation3] sm:$0xff] %vm179, %v452
  %v455 = vsel %vm179, %v452, 0
  %457 = vmatprep.subr.mxu0 0.0
  %458 = vmatpush1.msra.mxu0 %v20
  %459 = vmatprep.subr.mxu0 0.0
  %460 = vmatpush1.msra.mxu0 %v21
  %461 = vmatprep.subr.mxu0 0.0
  %462 = vmatpush1.msra.mxu0 %v22
  %463 = vmatprep.subr.mxu0 0.0
  %464 = vmatpush1.msra.mxu0 %v23
  %465 = vmatprep.subr.mxu0 0.0
  %466 = vmatpush1.msra.mxu0 0.0
  %467 = vmatprep.subr.mxu0 0.0
  %468 = vmatpush1.msra.mxu0 0.0
  %469 = vmatprep.subr.mxu0 0.0
  %470 = vmatpush1.msra.mxu0 0.0
  %471 = vmatprep.subr.mxu0 0.0
  %472 = vmatpush1.msra.mxu0 0.0
  %473 = vmatprep.subr.mxu0 0.0
  %474 = vmatpush1.msra.mxu0 0.0
  %475 = vmatprep.subr.mxu0 0.0
  %476 = vmatpush1.msra.mxu0 0.0
  %477 = vmatprep.subr.mxu0 0.0
  %478 = vmatpush1.msra.mxu0 0.0
  %479 = vmatprep.subr.mxu0 0.0
  %480 = vmatpush1.msra.mxu0 0.0
  %481 = vmatprep.subr.mxu0 0.0
  %482 = vmatpush1.msra.mxu0 0.0
  %483 = vmatprep.subr.mxu0 0.0
  %484 = vmatpush1.msra.mxu0 0.0
  %485 = vmatprep.subr.mxu0 0.0
  %486 = vmatpush1.msra.mxu0 0.0
  %487 = vmatprep.subr.mxu0 0.0
  %488 = vmatpush1.msra.mxu0 0.0
  %489 = vmatprep.subr.mxu0 0.0
  %490 = vmatpush1.msra.mxu0 0.0
  %491 = vmatprep.subr.mxu0 0.0
  %492 = vmatpush1.msra.mxu0 0.0
  %493 = vmatprep.subr.mxu0 0.0
  %494 = vmatpush1.msra.mxu0 0.0
  %495 = vmatprep.subr.mxu0 0.0
  %496 = vmatpush1.msra.mxu0 0.0
  %497 = vmatprep.subr.mxu0 0.0
  %498 = vmatpush1.msra.mxu0 0.0
  %499 = vmatprep.subr.mxu0 0.0
  %500 = vmatpush1.msra.mxu0 0.0
  %501 = vmatprep.subr.mxu0 0.0
  %502 = vmatpush1.msra.mxu0 0.0
  %503 = vmatprep.subr.mxu0 0.0
  %504 = vmatpush1.msra.mxu0 0.0
  %505 = vmatprep.subr.mxu0 0.0
  %506 = vmatpush1.msra.mxu0 0.0
  %507 = vmatprep.subr.mxu0 0.0
  %508 = vmatpush1.msra.mxu0 0.0
  %509 = vmatprep.subr.mxu0 0.0
  %510 = vmatpush1.msra.mxu0 0.0
  %511 = vmatprep.subr.mxu0 0.0
  %512 = vmatpush1.msra.mxu0 0.0
  %513 = vmatprep.subr.mxu0 0.0
  %514 = vmatpush1.msra.mxu0 0.0
  %515 = vmatprep.subr.mxu0 0.0
  %516 = vmatpush1.msra.mxu0 0.0
  %517 = vmatprep.subr.mxu0 0.0
  %518 = vmatpush1.msra.mxu0 0.0
  %519 = vmatprep.subr.mxu0 0.0
  %520 = vmatpush1.msra.mxu0 0.0
  %521 = vmatprep.mubr.f32.mxu0 0.0
  %522 = vmatmul.mubr.f32.gmra.mrb[0].mxu0 %v455
  %v523 = vpop.f32.mrb[0].mxu0
  %v524 = vadd.f32 %v28, %v523
  %v525 = vpop.f32.mrb[0].mxu0
  %526 = vdwg.mxu0
  %v527 = vld [vmem:[#allocation2 + $0x8] sm:$0xff]
  %528 = vmatprep.subr.mxu0 0.0
  %529 = vmatpush1.msra.mxu0 %v12
  %530 = vmatprep.subr.mxu0 0.0
  %531 = vmatpush1.msra.mxu0 %v13
  %532 = vmatprep.subr.mxu0 0.0
  %533 = vmatpush1.msra.mxu0 %v14
  %534 = vmatprep.subr.mxu0 0.0
  %535 = vmatpush1.msra.mxu0 %v15
  %536 = vmatprep.subr.mxu0 0.0
  %537 = vmatpush1.msra.mxu0 0.0
  %538 = vmatprep.subr.mxu0 0.0
  %539 = vmatpush1.msra.mxu0 0.0
  %540 = vmatprep.subr.mxu0 0.0
  %541 = vmatpush1.msra.mxu0 0.0
  %542 = vmatprep.subr.mxu0 0.0
  %543 = vmatpush1.msra.mxu0 0.0
  %544 = vmatprep.subr.mxu0 0.0
  %545 = vmatpush1.msra.mxu0 0.0
  %546 = vmatprep.subr.mxu0 0.0
  %547 = vmatpush1.msra.mxu0 0.0
  %548 = vmatprep.subr.mxu0 0.0
  %549 = vmatpush1.msra.mxu0 0.0
  %550 = vmatprep.subr.mxu0 0.0
  %551 = vmatpush1.msra.mxu0 0.0
  %552 = vmatprep.subr.mxu0 0.0
  %553 = vmatpush1.msra.mxu0 0.0
  %554 = vmatprep.subr.mxu0 0.0
  %555 = vmatpush1.msra.mxu0 0.0
  %556 = vmatprep.subr.mxu0 0.0
  %557 = vmatpush1.msra.mxu0 0.0
  %558 = vmatprep.subr.mxu0 0.0
  %559 = vmatpush1.msra.mxu0 0.0
  %560 = vmatprep.subr.mxu0 0.0
  %561 = vmatpush1.msra.mxu0 0.0
  %562 = vmatprep.subr.mxu0 0.0
  %563 = vmatpush1.msra.mxu0 0.0
  %564 = vmatprep.subr.mxu0 0.0
  %565 = vmatpush1.msra.mxu0 0.0
  %566 = vmatprep.subr.mxu0 0.0
  %567 = vmatpush1.msra.mxu0 0.0
  %568 = vmatprep.subr.mxu0 0.0
  %569 = vmatpush1.msra.mxu0 0.0
  %570 = vmatprep.subr.mxu0 0.0
  %571 = vmatpush1.msra.mxu0 0.0
  %572 = vmatprep.subr.mxu0 0.0
  %573 = vmatpush1.msra.mxu0 0.0
  %574 = vmatprep.subr.mxu0 0.0
  %575 = vmatpush1.msra.mxu0 0.0
  %576 = vmatprep.subr.mxu0 0.0
  %577 = vmatpush1.msra.mxu0 0.0
  %578 = vmatprep.subr.mxu0 0.0
  %579 = vmatpush1.msra.mxu0 0.0
  %580 = vmatprep.subr.mxu0 0.0
  %581 = vmatpush1.msra.mxu0 0.0
  %582 = vmatprep.subr.mxu0 0.0
  %583 = vmatpush1.msra.mxu0 0.0
  %584 = vmatprep.subr.mxu0 0.0
  %585 = vmatpush1.msra.mxu0 0.0
  %586 = vmatprep.subr.mxu0 0.0
  %587 = vmatpush1.msra.mxu0 0.0
  %588 = vmatprep.subr.mxu0 0.0
  %589 = vmatpush1.msra.mxu0 0.0
  %590 = vmatprep.subr.mxu0 0.0
  %591 = vmatpush1.msra.mxu0 0.0
  %592 = vmatprep.mubr.f32.mxu0 0.0
  %593 = vmatmul.mubr.f32.gmra.mrb[0].mxu0 %v353
  %v594 = vpop.f32.mrb[0].mxu0
  %v595 = vadd.f32 0.0, %v594
  %v596 = vpop.f32.mrb[0].mxu0
  %597 = vdwg.mxu0
  %v598 = vadd.f32 %v527, %v595
  %v599 = vxor.u32 %v598, 2147483648
  %v600 = vmul.f32 %v599, 1.442695
  %v601 = vpow.pop %v600
  %v602 = vadd.f32 %v601, 1.0
  %v603 = vrcp.pop %v602
  %v604 = vmul.f32 1.0, %v603
  %v605 = vmul.f32 %v604, 2.0
  %v606 = vsub.f32 %v605, 1.0
  %v607 = vmul.f32 %v604, %v343
  %609 = vrot.lane.b32.xlu0 %v606, 64
  %v610 = vpop.permute.xlu0 %609
  %v612 = vmul.f32 %v604, %v610
  %614 = vrot.lane.b32.xlu0 %v612, 32
  %v615 = vpop.permute.xlu0 %614
  %v617 = vadd.f32 %v607, %v615
  %v618 = vtanh.pop %v617
  %620 = vrot.lane.b32.xlu0 %v618, 64
  %v621 = vpop.permute.xlu0 %620
  %v623 = vmul.f32 %v604, %v621
  %625 = vrot.lane.b32.xlu0 %v623, 32
  %v626 = vpop.permute.xlu0 %625
  %v627 = vsel %vm179, %v626, 0
  %629 = vmatprep.subr.mxu0 0.0
  %630 = vmatpush1.msra.mxu0 %v16
  %631 = vmatprep.subr.mxu0 0.0
  %632 = vmatpush1.msra.mxu0 %v17
  %633 = vmatprep.subr.mxu0 0.0
  %634 = vmatpush1.msra.mxu0 %v18
  %635 = vmatprep.subr.mxu0 0.0
  %636 = vmatpush1.msra.mxu0 %v19
  %637 = vmatprep.subr.mxu0 0.0
  %638 = vmatpush1.msra.mxu0 0.0
  %639 = vmatprep.subr.mxu0 0.0
  %640 = vmatpush1.msra.mxu0 0.0
  %641 = vmatprep.subr.mxu0 0.0
  %642 = vmatpush1.msra.mxu0 0.0
  %643 = vmatprep.subr.mxu0 0.0
  %644 = vmatpush1.msra.mxu0 0.0
  %645 = vmatprep.subr.mxu0 0.0
  %646 = vmatpush1.msra.mxu0 0.0
  %647 = vmatprep.subr.mxu0 0.0
  %648 = vmatpush1.msra.mxu0 0.0
  %649 = vmatprep.subr.mxu0 0.0
  %650 = vmatpush1.msra.mxu0 0.0
  %651 = vmatprep.subr.mxu0 0.0
  %652 = vmatpush1.msra.mxu0 0.0
  %653 = vmatprep.subr.mxu0 0.0
  %654 = vmatpush1.msra.mxu0 0.0
  %655 = vmatprep.subr.mxu0 0.0
  %656 = vmatpush1.msra.mxu0 0.0
  %657 = vmatprep.subr.mxu0 0.0
  %658 = vmatpush1.msra.mxu0 0.0
  %659 = vmatprep.subr.mxu0 0.0
  %660 = vmatpush1.msra.mxu0 0.0
  %661 = vmatprep.subr.mxu0 0.0
  %662 = vmatpush1.msra.mxu0 0.0
  %663 = vmatprep.subr.mxu0 0.0
  %664 = vmatpush1.msra.mxu0 0.0
  %665 = vmatprep.subr.mxu0 0.0
  %666 = vmatpush1.msra.mxu0 0.0
  %667 = vmatprep.subr.mxu0 0.0
  %668 = vmatpush1.msra.mxu0 0.0
  %669 = vmatprep.subr.mxu0 0.0
  %670 = vmatpush1.msra.mxu0 0.0
  %671 = vmatprep.subr.mxu0 0.0
  %672 = vmatpush1.msra.mxu0 0.0
  %673 = vmatprep.subr.mxu0 0.0
  %674 = vmatpush1.msra.mxu0 0.0
  %675 = vmatprep.subr.mxu0 0.0
  %676 = vmatpush1.msra.mxu0 0.0
  %677 = vmatprep.subr.mxu0 0.0
  %678 = vmatpush1.msra.mxu0 0.0
  %679 = vmatprep.subr.mxu0 0.0
  %680 = vmatpush1.msra.mxu0 0.0
  %681 = vmatprep.subr.mxu0 0.0
  %682 = vmatpush1.msra.mxu0 0.0
  %683 = vmatprep.subr.mxu0 0.0
  %684 = vmatpush1.msra.mxu0 0.0
  %685 = vmatprep.subr.mxu0 0.0
  %686 = vmatpush1.msra.mxu0 0.0
  %687 = vmatprep.subr.mxu0 0.0
  %688 = vmatpush1.msra.mxu0 0.0
  %689 = vmatprep.subr.mxu0 0.0
  %690 = vmatpush1.msra.mxu0 0.0
  %691 = vmatprep.subr.mxu0 0.0
  %692 = vmatpush1.msra.mxu0 0.0
  %693 = vmatprep.mubr.f32.mxu0 0.0
  %694 = vmatmul.mubr.f32.gmra.mrb[0].mxu0 %v627
  %v695 = vpop.f32.mrb[0].mxu0
  %v696 = vadd.f32 %v524, %v695
  %v697 = vpop.f32.mrb[0].mxu0
  %698 = vdwg.mxu0
  %v699 = vxor.u32 %v696, 2147483648
  %v700 = vmul.f32 %v699, 1.442695
  %v701 = vpow.pop %v700
  %v702 = vadd.f32 %v701, 1.0
  %v703 = vrcp.pop %v702
  %v704 = vmul.f32 1.0, %v703
  %v705 = vmul.f32 %v704, 2.0
  %v706 = vsub.f32 %v705, 1.0
  %v707 = vmul.f32 %v704, %v443
  %709 = vrot.lane.b32.xlu0 %v706, 64
  %v710 = vpop.permute.xlu0 %709
  %v712 = vmul.f32 %v704, %v710
  %714 = vrot.lane.b32.xlu0 %v712, 32
  %v715 = vpop.permute.xlu0 %714
  %v717 = vadd.f32 %v707, %v715
  %v718 = vtanh.pop %v717
  %720 = vrot.lane.b32.xlu0 %v718, 64
  %v721 = vpop.permute.xlu0 %720
  %v723 = vmul.f32 %v704, %v721
  %725 = vrot.lane.b32.xlu0 %v723, 64
  %v726 = vpop.permute.xlu0 %725
  %vm728 = vcmask 523520
  %729 = vst.msk [vmem:[#allocation3] sm:$0xff] %vm728, %v726
  %730 = vrot.lane.b32.xlu0 %v723, 32
  %v731 = vpop.permute.xlu0 %730
  %v732 = vsel %vm179, %v731, 0
  %734 = vmatprep.subr.mxu0 0.0
  %735 = vmatpush1.msra.mxu0 %v20
  %736 = vmatprep.subr.mxu0 0.0
  %737 = vmatpush1.msra.mxu0 %v21
  %738 = vmatprep.subr.mxu0 0.0
  %739 = vmatpush1.msra.mxu0 %v22
  %740 = vmatprep.subr.mxu0 0.0
  %741 = vmatpush1.msra.mxu0 %v23
  %742 = vmatprep.subr.mxu0 0.0
  %743 = vmatpush1.msra.mxu0 0.0
  %744 = vmatprep.subr.mxu0 0.0
  %745 = vmatpush1.msra.mxu0 0.0
  %746 = vmatprep.subr.mxu0 0.0
  %747 = vmatpush1.msra.mxu0 0.0
  %748 = vmatprep.subr.mxu0 0.0
  %749 = vmatpush1.msra.mxu0 0.0
  %750 = vmatprep.subr.mxu0 0.0
  %751 = vmatpush1.msra.mxu0 0.0
  %752 = vmatprep.subr.mxu0 0.0
  %753 = vmatpush1.msra.mxu0 0.0
  %754 = vmatprep.subr.mxu0 0.0
  %755 = vmatpush1.msra.mxu0 0.0
  %756 = vmatprep.subr.mxu0 0.0
  %757 = vmatpush1.msra.mxu0 0.0
  %758 = vmatprep.subr.mxu0 0.0
  %759 = vmatpush1.msra.mxu0 0.0
  %760 = vmatprep.subr.mxu0 0.0
  %761 = vmatpush1.msra.mxu0 0.0
  %762 = vmatprep.subr.mxu0 0.0
  %763 = vmatpush1.msra.mxu0 0.0
  %764 = vmatprep.subr.mxu0 0.0
  %765 = vmatpush1.msra.mxu0 0.0
  %766 = vmatprep.subr.mxu0 0.0
  %767 = vmatpush1.msra.mxu0 0.0
  %768 = vmatprep.subr.mxu0 0.0
  %769 = vmatpush1.msra.mxu0 0.0
  %770 = vmatprep.subr.mxu0 0.0
  %771 = vmatpush1.msra.mxu0 0.0
  %772 = vmatprep.subr.mxu0 0.0
  %773 = vmatpush1.msra.mxu0 0.0
  %774 = vmatprep.subr.mxu0 0.0
  %775 = vmatpush1.msra.mxu0 0.0
  %776 = vmatprep.subr.mxu0 0.0
  %777 = vmatpush1.msra.mxu0 0.0
  %778 = vmatprep.subr.mxu0 0.0
  %779 = vmatpush1.msra.mxu0 0.0
  %780 = vmatprep.subr.mxu0 0.0
  %781 = vmatpush1.msra.mxu0 0.0
  %782 = vmatprep.subr.mxu0 0.0
  %783 = vmatpush1.msra.mxu0 0.0
  %784 = vmatprep.subr.mxu0 0.0
  %785 = vmatpush1.msra.mxu0 0.0
  %786 = vmatprep.subr.mxu0 0.0
  %787 = vmatpush1.msra.mxu0 0.0
  %788 = vmatprep.subr.mxu0 0.0
  %789 = vmatpush1.msra.mxu0 0.0
  %790 = vmatprep.subr.mxu0 0.0
  %791 = vmatpush1.msra.mxu0 0.0
  %792 = vmatprep.subr.mxu0 0.0
  %793 = vmatpush1.msra.mxu0 0.0
  %794 = vmatprep.subr.mxu0 0.0
  %795 = vmatpush1.msra.mxu0 0.0
  %796 = vmatprep.subr.mxu0 0.0
  %797 = vmatpush1.msra.mxu0 0.0
  %798 = vmatprep.mubr.f32.mxu0 0.0
  %799 = vmatmul.mubr.f32.gmra.mrb[0].mxu0 %v732
  %v800 = vpop.f32.mrb[0].mxu0
  %v801 = vadd.f32 %v28, %v800
  %v802 = vpop.f32.mrb[0].mxu0
  %803 = vdwg.mxu0
  %v804 = vld [vmem:[#allocation2 + $0x10] sm:$0xff]
  %805 = vmatprep.subr.mxu0 0.0
  %806 = vmatpush1.msra.mxu0 %v12
  %807 = vmatprep.subr.mxu0 0.0
  %808 = vmatpush1.msra.mxu0 %v13
  %809 = vmatprep.subr.mxu0 0.0
  %810 = vmatpush1.msra.mxu0 %v14
  %811 = vmatprep.subr.mxu0 0.0
  %812 = vmatpush1.msra.mxu0 %v15
  %813 = vmatprep.subr.mxu0 0.0
  %814 = vmatpush1.msra.mxu0 0.0
  %815 = vmatprep.subr.mxu0 0.0
  %816 = vmatpush1.msra.mxu0 0.0
  %817 = vmatprep.subr.mxu0 0.0
  %818 = vmatpush1.msra.mxu0 0.0
  %819 = vmatprep.subr.mxu0 0.0
  %820 = vmatpush1.msra.mxu0 0.0
  %821 = vmatprep.subr.mxu0 0.0
  %822 = vmatpush1.msra.mxu0 0.0
  %823 = vmatprep.subr.mxu0 0.0
  %824 = vmatpush1.msra.mxu0 0.0
  %825 = vmatprep.subr.mxu0 0.0
  %826 = vmatpush1.msra.mxu0 0.0
  %827 = vmatprep.subr.mxu0 0.0
  %828 = vmatpush1.msra.mxu0 0.0
  %829 = vmatprep.subr.mxu0 0.0
  %830 = vmatpush1.msra.mxu0 0.0
  %831 = vmatprep.subr.mxu0 0.0
  %832 = vmatpush1.msra.mxu0 0.0
  %833 = vmatprep.subr.mxu0 0.0
  %834 = vmatpush1.msra.mxu0 0.0
  %835 = vmatprep.subr.mxu0 0.0
  %836 = vmatpush1.msra.mxu0 0.0
  %837 = vmatprep.subr.mxu0 0.0
  %838 = vmatpush1.msra.mxu0 0.0
  %839 = vmatprep.subr.mxu0 0.0
  %840 = vmatpush1.msra.mxu0 0.0
  %841 = vmatprep.subr.mxu0 0.0
  %842 = vmatpush1.msra.mxu0 0.0
  %843 = vmatprep.subr.mxu0 0.0
  %844 = vmatpush1.msra.mxu0 0.0
  %845 = vmatprep.subr.mxu0 0.0
  %846 = vmatpush1.msra.mxu0 0.0
  %847 = vmatprep.subr.mxu0 0.0
  %848 = vmatpush1.msra.mxu0 0.0
  %849 = vmatprep.subr.mxu0 0.0
  %850 = vmatpush1.msra.mxu0 0.0
  %851 = vmatprep.subr.mxu0 0.0
  %852 = vmatpush1.msra.mxu0 0.0
  %853 = vmatprep.subr.mxu0 0.0
  %854 = vmatpush1.msra.mxu0 0.0
  %855 = vmatprep.subr.mxu0 0.0
  %856 = vmatpush1.msra.mxu0 0.0
  %857 = vmatprep.subr.mxu0 0.0
  %858 = vmatpush1.msra.mxu0 0.0
  %859 = vmatprep.subr.mxu0 0.0
  %860 = vmatpush1.msra.mxu0 0.0
  %861 = vmatprep.subr.mxu0 0.0
  %862 = vmatpush1.msra.mxu0 0.0
  %863 = vmatprep.subr.mxu0 0.0
  %864 = vmatpush1.msra.mxu0 0.0
  %865 = vmatprep.subr.mxu0 0.0
  %866 = vmatpush1.msra.mxu0 0.0
  %867 = vmatprep.subr.mxu0 0.0
  %868 = vmatpush1.msra.mxu0 0.0
  %869 = vmatprep.mubr.f32.mxu0 0.0
  %870 = vmatmul.mubr.f32.gmra.mrb[0].mxu0 %v627
  %v871 = vpop.f32.mrb[0].mxu0
  %v872 = vadd.f32 0.0, %v871
  %v873 = vpop.f32.mrb[0].mxu0
  %874 = vdwg.mxu0
  %v875 = vadd.f32 %v804, %v872
  %v876 = vxor.u32 %v875, 2147483648
  %v877 = vmul.f32 %v876, 1.442695
  %v878 = vpow.pop %v877
  %v879 = vadd.f32 %v878, 1.0
  %v880 = vrcp.pop %v879
  %v881 = vmul.f32 1.0, %v880
  %v882 = vmul.f32 %v881, 2.0
  %v883 = vsub.f32 %v882, 1.0
  %v884 = vmul.f32 %v881, %v617
  %886 = vrot.lane.b32.xlu0 %v883, 64
  %v887 = vpop.permute.xlu0 %886
  %v889 = vmul.f32 %v881, %v887
  %891 = vrot.lane.b32.xlu0 %v889, 32
  %v892 = vpop.permute.xlu0 %891
  %v894 = vadd.f32 %v884, %v892
  %v895 = vtanh.pop %v894
  %897 = vrot.lane.b32.xlu0 %v895, 64
  %v898 = vpop.permute.xlu0 %897
  %v900 = vmul.f32 %v881, %v898
  %902 = vrot.lane.b32.xlu0 %v900, 32
  %v903 = vpop.permute.xlu0 %902
  %v904 = vsel %vm179, %v903, 0
  %906 = vmatprep.subr.mxu0 0.0
  %907 = vmatpush1.msra.mxu0 %v16
  %908 = vmatprep.subr.mxu0 0.0
  %909 = vmatpush1.msra.mxu0 %v17
  %910 = vmatprep.subr.mxu0 0.0
  %911 = vmatpush1.msra.mxu0 %v18
  %912 = vmatprep.subr.mxu0 0.0
  %913 = vmatpush1.msra.mxu0 %v19
  %914 = vmatprep.subr.mxu0 0.0
  %915 = vmatpush1.msra.mxu0 0.0
  %916 = vmatprep.subr.mxu0 0.0
  %917 = vmatpush1.msra.mxu0 0.0
  %918 = vmatprep.subr.mxu0 0.0
  %919 = vmatpush1.msra.mxu0 0.0
  %920 = vmatprep.subr.mxu0 0.0
  %921 = vmatpush1.msra.mxu0 0.0
  %922 = vmatprep.subr.mxu0 0.0
  %923 = vmatpush1.msra.mxu0 0.0
  %924 = vmatprep.subr.mxu0 0.0
  %925 = vmatpush1.msra.mxu0 0.0
  %926 = vmatprep.subr.mxu0 0.0
  %927 = vmatpush1.msra.mxu0 0.0
  %928 = vmatprep.subr.mxu0 0.0
  %929 = vmatpush1.msra.mxu0 0.0
  %930 = vmatprep.subr.mxu0 0.0
  %931 = vmatpush1.msra.mxu0 0.0
  %932 = vmatprep.subr.mxu0 0.0
  %933 = vmatpush1.msra.mxu0 0.0
  %934 = vmatprep.subr.mxu0 0.0
  %935 = vmatpush1.msra.mxu0 0.0
  %936 = vmatprep.subr.mxu0 0.0
  %937 = vmatpush1.msra.mxu0 0.0
  %938 = vmatprep.subr.mxu0 0.0
  %939 = vmatpush1.msra.mxu0 0.0
  %940 = vmatprep.subr.mxu0 0.0
  %941 = vmatpush1.msra.mxu0 0.0
  %942 = vmatprep.subr.mxu0 0.0
  %943 = vmatpush1.msra.mxu0 0.0
  %944 = vmatprep.subr.mxu0 0.0
  %945 = vmatpush1.msra.mxu0 0.0
  %946 = vmatprep.subr.mxu0 0.0
  %947 = vmatpush1.msra.mxu0 0.0
  %948 = vmatprep.subr.mxu0 0.0
  %949 = vmatpush1.msra.mxu0 0.0
  %950 = vmatprep.subr.mxu0 0.0
  %951 = vmatpush1.msra.mxu0 0.0
  %952 = vmatprep.subr.mxu0 0.0
  %953 = vmatpush1.msra.mxu0 0.0
  %954 = vmatprep.subr.mxu0 0.0
  %955 = vmatpush1.msra.mxu0 0.0
  %956 = vmatprep.subr.mxu0 0.0
  %957 = vmatpush1.msra.mxu0 0.0
  %958 = vmatprep.subr.mxu0 0.0
  %959 = vmatpush1.msra.mxu0 0.0
  %960 = vmatprep.subr.mxu0 0.0
  %961 = vmatpush1.msra.mxu0 0.0
  %962 = vmatprep.subr.mxu0 0.0
  %963 = vmatpush1.msra.mxu0 0.0
  %964 = vmatprep.subr.mxu0 0.0
  %965 = vmatpush1.msra.mxu0 0.0
  %966 = vmatprep.subr.mxu0 0.0
  %967 = vmatpush1.msra.mxu0 0.0
  %968 = vmatprep.subr.mxu0 0.0
  %969 = vmatpush1.msra.mxu0 0.0
  %970 = vmatprep.mubr.f32.mxu0 0.0
  %971 = vmatmul.mubr.f32.gmra.mrb[0].mxu0 %v904
  %v972 = vpop.f32.mrb[0].mxu0
  %v973 = vadd.f32 %v801, %v972
  %v974 = vpop.f32.mrb[0].mxu0
  %975 = vdwg.mxu0
  %v976 = vxor.u32 %v973, 2147483648
  %v977 = vmul.f32 %v976, 1.442695
  %v978 = vpow.pop %v977
  %v979 = vadd.f32 %v978, 1.0
  %v980 = vrcp.pop %v979
  %v981 = vmul.f32 1.0, %v980
  %v982 = vmul.f32 %v981, 2.0
  %v983 = vsub.f32 %v982, 1.0
  %v984 = vmul.f32 %v981, %v717
  %986 = vrot.lane.b32.xlu0 %v983, 64
  %v987 = vpop.permute.xlu0 %986
  %v989 = vmul.f32 %v981, %v987
  %991 = vrot.lane.b32.xlu0 %v989, 32
  %v992 = vpop.permute.xlu0 %991
  %v994 = vadd.f32 %v984, %v992
  %v995 = vtanh.pop %v994
  %997 = vrot.lane.b32.xlu0 %v995, 64
  %v998 = vpop.permute.xlu0 %997
  %v1000 = vmul.f32 %v981, %v998
  %1002 = vrot.lane.b32.xlu0 %v1000, 96
  %v1003 = vpop.permute.xlu0 %1002
  %vm1005 = vcmask 785920
  %1006 = vst.msk [vmem:[#allocation3] sm:$0xff] %vm1005, %v1003
  %1007 = vrot.lane.b32.xlu0 %v1000, 32
  %v1008 = vpop.permute.xlu0 %1007
  %v1009 = vsel %vm179, %v1008, 0
  %1011 = vmatprep.subr.mxu0 0.0
  %1012 = vmatpush1.msra.mxu0 %v20
  %1013 = vmatprep.subr.mxu0 0.0
  %1014 = vmatpush1.msra.mxu0 %v21
  %1015 = vmatprep.subr.mxu0 0.0
  %1016 = vmatpush1.msra.mxu0 %v22
  %1017 = vmatprep.subr.mxu0 0.0
  %1018 = vmatpush1.msra.mxu0 %v23
  %1019 = vmatprep.subr.mxu0 0.0
  %1020 = vmatpush1.msra.mxu0 0.0
  %1021 = vmatprep.subr.mxu0 0.0
  %1022 = vmatpush1.msra.mxu0 0.0
  %1023 = vmatprep.subr.mxu0 0.0
  %1024 = vmatpush1.msra.mxu0 0.0
  %1025 = vmatprep.subr.mxu0 0.0
  %1026 = vmatpush1.msra.mxu0 0.0
  %1027 = vmatprep.subr.mxu0 0.0
  %1028 = vmatpush1.msra.mxu0 0.0
  %1029 = vmatprep.subr.mxu0 0.0
  %1030 = vmatpush1.msra.mxu0 0.0
  %1031 = vmatprep.subr.mxu0 0.0
  %1032 = vmatpush1.msra.mxu0 0.0
  %1033 = vmatprep.subr.mxu0 0.0
  %1034 = vmatpush1.msra.mxu0 0.0
  %1035 = vmatprep.subr.mxu0 0.0
  %1036 = vmatpush1.msra.mxu0 0.0
  %1037 = vmatprep.subr.mxu0 0.0
  %1038 = vmatpush1.msra.mxu0 0.0
  %1039 = vmatprep.subr.mxu0 0.0
  %1040 = vmatpush1.msra.mxu0 0.0
  %1041 = vmatprep.subr.mxu0 0.0
  %1042 = vmatpush1.msra.mxu0 0.0
  %1043 = vmatprep.subr.mxu0 0.0
  %1044 = vmatpush1.msra.mxu0 0.0
  %1045 = vmatprep.subr.mxu0 0.0
  %1046 = vmatpush1.msra.mxu0 0.0
  %1047 = vmatprep.subr.mxu0 0.0
  %1048 = vmatpush1.msra.mxu0 0.0
  %1049 = vmatprep.subr.mxu0 0.0
  %1050 = vmatpush1.msra.mxu0 0.0
  %1051 = vmatprep.subr.mxu0 0.0
  %1052 = vmatpush1.msra.mxu0 0.0
  %1053 = vmatprep.subr.mxu0 0.0
  %1054 = vmatpush1.msra.mxu0 0.0
  %1055 = vmatprep.subr.mxu0 0.0
  %1056 = vmatpush1.msra.mxu0 0.0
  %1057 = vmatprep.subr.mxu0 0.0
  %1058 = vmatpush1.msra.mxu0 0.0
  %1059 = vmatprep.subr.mxu0 0.0
  %1060 = vmatpush1.msra.mxu0 0.0
  %1061 = vmatprep.subr.mxu0 0.0
  %1062 = vmatpush1.msra.mxu0 0.0
  %1063 = vmatprep.subr.mxu0 0.0
  %1064 = vmatpush1.msra.mxu0 0.0
  %1065 = vmatprep.subr.mxu0 0.0
  %1066 = vmatpush1.msra.mxu0 0.0
  %1067 = vmatprep.subr.mxu0 0.0
  %1068 = vmatpush1.msra.mxu0 0.0
  %1069 = vmatprep.subr.mxu0 0.0
  %1070 = vmatpush1.msra.mxu0 0.0
  %1071 = vmatprep.subr.mxu0 0.0
  %1072 = vmatpush1.msra.mxu0 0.0
  %1073 = vmatprep.subr.mxu0 0.0
  %1074 = vmatpush1.msra.mxu0 0.0
  %1075 = vmatprep.mubr.f32.mxu0 0.0
  %1076 = vmatmul.mubr.f32.gmra.mrb[0].mxu0 %v1009
  %v1077 = vpop.f32.mrb[0].mxu0
  %v1078 = vadd.f32 %v28, %v1077
  %v1079 = vpop.f32.mrb[0].mxu0
  %1080 = vdwg.mxu0
  %v1081 = vld [vmem:[#allocation2 + $0x18] sm:$0xff]
  %1082 = vmatprep.subr.mxu0 0.0
  %1083 = vmatpush1.msra.mxu0 %v12
  %1084 = vmatprep.subr.mxu0 0.0
  %1085 = vmatpush1.msra.mxu0 %v13
  %1086 = vmatprep.subr.mxu0 0.0
  %1087 = vmatpush1.msra.mxu0 %v14
  %1088 = vmatprep.subr.mxu0 0.0
  %1089 = vmatpush1.msra.mxu0 %v15
  %1090 = vmatprep.subr.mxu0 0.0
  %1091 = vmatpush1.msra.mxu0 0.0
  %1092 = vmatprep.subr.mxu0 0.0
  %1093 = vmatpush1.msra.mxu0 0.0
  %1094 = vmatprep.subr.mxu0 0.0
  %1095 = vmatpush1.msra.mxu0 0.0
  %1096 = vmatprep.subr.mxu0 0.0
  %1097 = vmatpush1.msra.mxu0 0.0
  %1098 = vmatprep.subr.mxu0 0.0
  %1099 = vmatpush1.msra.mxu0 0.0
  %1100 = vmatprep.subr.mxu0 0.0
  %1101 = vmatpush1.msra.mxu0 0.0
  %1102 = vmatprep.subr.mxu0 0.0
  %1103 = vmatpush1.msra.mxu0 0.0
  %1104 = vmatprep.subr.mxu0 0.0
  %1105 = vmatpush1.msra.mxu0 0.0
  %1106 = vmatprep.subr.mxu0 0.0
  %1107 = vmatpush1.msra.mxu0 0.0
  %1108 = vmatprep.subr.mxu0 0.0
  %1109 = vmatpush1.msra.mxu0 0.0
  %1110 = vmatprep.subr.mxu0 0.0
  %1111 = vmatpush1.msra.mxu0 0.0
  %1112 = vmatprep.subr.mxu0 0.0
  %1113 = vmatpush1.msra.mxu0 0.0
  %1114 = vmatprep.subr.mxu0 0.0
  %1115 = vmatpush1.msra.mxu0 0.0
  %1116 = vmatprep.subr.mxu0 0.0
  %1117 = vmatpush1.msra.mxu0 0.0
  %1118 = vmatprep.subr.mxu0 0.0
  %1119 = vmatpush1.msra.mxu0 0.0
  %1120 = vmatprep.subr.mxu0 0.0
  %1121 = vmatpush1.msra.mxu0 0.0
  %1122 = vmatprep.subr.mxu0 0.0
  %1123 = vmatpush1.msra.mxu0 0.0
  %1124 = vmatprep.subr.mxu0 0.0
  %1125 = vmatpush1.msra.mxu0 0.0
  %1126 = vmatprep.subr.mxu0 0.0
  %1127 = vmatpush1.msra.mxu0 0.0
  %1128 = vmatprep.subr.mxu0 0.0
  %1129 = vmatpush1.msra.mxu0 0.0
  %1130 = vmatprep.subr.mxu0 0.0
  %1131 = vmatpush1.msra.mxu0 0.0
  %1132 = vmatprep.subr.mxu0 0.0
  %1133 = vmatpush1.msra.mxu0 0.0
  %1134 = vmatprep.subr.mxu0 0.0
  %1135 = vmatpush1.msra.mxu0 0.0
  %1136 = vmatprep.subr.mxu0 0.0
  %1137 = vmatpush1.msra.mxu0 0.0
  %1138 = vmatprep.subr.mxu0 0.0
  %1139 = vmatpush1.msra.mxu0 0.0
  %1140 = vmatprep.subr.mxu0 0.0
  %1141 = vmatpush1.msra.mxu0 0.0
  %1142 = vmatprep.subr.mxu0 0.0
  %1143 = vmatpush1.msra.mxu0 0.0
  %1144 = vmatprep.subr.mxu0 0.0
  %1145 = vmatpush1.msra.mxu0 0.0
  %1146 = vmatprep.mubr.f32.mxu0 0.0
  %1147 = vmatmul.mubr.f32.gmra.mrb[0].mxu0 %v904
  %v1148 = vpop.f32.mrb[0].mxu0
  %v1149 = vadd.f32 0.0, %v1148
  %v1150 = vpop.f32.mrb[0].mxu0
  %1151 = vdwg.mxu0
  %v1152 = vadd.f32 %v1081, %v1149
  %v1153 = vxor.u32 %v1152, 2147483648
  %v1154 = vmul.f32 %v1153, 1.442695
  %v1155 = vpow.pop %v1154
  %v1156 = vadd.f32 %v1155, 1.0
  %v1157 = vrcp.pop %v1156
  %v1158 = vmul.f32 1.0, %v1157
  %v1159 = vmul.f32 %v1158, 2.0
  %v1160 = vsub.f32 %v1159, 1.0
  %v1161 = vmul.f32 %v1158, %v894
  %1163 = vrot.lane.b32.xlu0 %v1160, 64
  %v1164 = vpop.permute.xlu0 %1163
  %v1166 = vmul.f32 %v1158, %v1164
  %1168 = vrot.lane.b32.xlu0 %v1166, 32
  %v1169 = vpop.permute.xlu0 %1168
  %v1171 = vadd.f32 %v1161, %v1169
  %v1172 = vtanh.pop %v1171
  %1174 = vrot.lane.b32.xlu0 %v1172, 64
  %v1175 = vpop.permute.xlu0 %1174
  %v1177 = vmul.f32 %v1158, %v1175
  %1179 = vrot.lane.b32.xlu0 %v1177, 32
  %v1180 = vpop.permute.xlu0 %1179
  %v1181 = vsel %vm179, %v1180, 0
  %1183 = vmatprep.subr.mxu0 0.0
  %1184 = vmatpush1.msra.mxu0 %v16
  %1185 = vmatprep.subr.mxu0 0.0
  %1186 = vmatpush1.msra.mxu0 %v17
  %1187 = vmatprep.subr.mxu0 0.0
  %1188 = vmatpush1.msra.mxu0 %v18
  %1189 = vmatprep.subr.mxu0 0.0
  %1190 = vmatpush1.msra.mxu0 %v19
  %1191 = vmatprep.subr.mxu0 0.0
  %1192 = vmatpush1.msra.mxu0 0.0
  %1193 = vmatprep.subr.mxu0 0.0
  %1194 = vmatpush1.msra.mxu0 0.0
  %1195 = vmatprep.subr.mxu0 0.0
  %1196 = vmatpush1.msra.mxu0 0.0
  %1197 = vmatprep.subr.mxu0 0.0
  %1198 = vmatpush1.msra.mxu0 0.0
  %1199 = vmatprep.subr.mxu0 0.0
  %1200 = vmatpush1.msra.mxu0 0.0
  %1201 = vmatprep.subr.mxu0 0.0
  %1202 = vmatpush1.msra.mxu0 0.0
  %1203 = vmatprep.subr.mxu0 0.0
  %1204 = vmatpush1.msra.mxu0 0.0
  %1205 = vmatprep.subr.mxu0 0.0
  %1206 = vmatpush1.msra.mxu0 0.0
  %1207 = vmatprep.subr.mxu0 0.0
  %1208 = vmatpush1.msra.mxu0 0.0
  %1209 = vmatprep.subr.mxu0 0.0
  %1210 = vmatpush1.msra.mxu0 0.0
  %1211 = vmatprep.subr.mxu0 0.0
  %1212 = vmatpush1.msra.mxu0 0.0
  %1213 = vmatprep.subr.mxu0 0.0
  %1214 = vmatpush1.msra.mxu0 0.0
  %1215 = vmatprep.subr.mxu0 0.0
  %1216 = vmatpush1.msra.mxu0 0.0
  %1217 = vmatprep.subr.mxu0 0.0
  %1218 = vmatpush1.msra.mxu0 0.0
  %1219 = vmatprep.subr.mxu0 0.0
  %1220 = vmatpush1.msra.mxu0 0.0
  %1221 = vmatprep.subr.mxu0 0.0
  %1222 = vmatpush1.msra.mxu0 0.0
  %1223 = vmatprep.subr.mxu0 0.0
  %1224 = vmatpush1.msra.mxu0 0.0
  %1225 = vmatprep.subr.mxu0 0.0
  %1226 = vmatpush1.msra.mxu0 0.0
  %1227 = vmatprep.subr.mxu0 0.0
  %1228 = vmatpush1.msra.mxu0 0.0
  %1229 = vmatprep.subr.mxu0 0.0
  %1230 = vmatpush1.msra.mxu0 0.0
  %1231 = vmatprep.subr.mxu0 0.0
  %1232 = vmatpush1.msra.mxu0 0.0
  %1233 = vmatprep.subr.mxu0 0.0
  %1234 = vmatpush1.msra.mxu0 0.0
  %1235 = vmatprep.subr.mxu0 0.0
  %1236 = vmatpush1.msra.mxu0 0.0
  %1237 = vmatprep.subr.mxu0 0.0
  %1238 = vmatpush1.msra.mxu0 0.0
  %1239 = vmatprep.subr.mxu0 0.0
  %1240 = vmatpush1.msra.mxu0 0.0
  %1241 = vmatprep.subr.mxu0 0.0
  %1242 = vmatpush1.msra.mxu0 0.0
  %1243 = vmatprep.subr.mxu0 0.0
  %1244 = vmatpush1.msra.mxu0 0.0
  %1245 = vmatprep.subr.mxu0 0.0
  %1246 = vmatpush1.msra.mxu0 0.0
  %1247 = vmatprep.mubr.f32.mxu0 0.0
  %1248 = vmatmul.mubr.f32.gmra.mrb[0].mxu0 %v1181
  %v1249 = vpop.f32.mrb[0].mxu0
  %v1250 = vadd.f32 %v1078, %v1249
  %v1251 = vpop.f32.mrb[0].mxu0
  %1252 = vdwg.mxu0
  %v1253 = vxor.u32 %v1250, 2147483648
  %v1254 = vmul.f32 %v1253, 1.442695
  %v1255 = vpow.pop %v1254
  %v1256 = vadd.f32 %v1255, 1.0
  %v1257 = vrcp.pop %v1256
  %v1258 = vmul.f32 1.0, %v1257
  %v1259 = vmul.f32 %v1258, 2.0
  %v1260 = vsub.f32 %v1259, 1.0
  %v1261 = vmul.f32 %v1258, %v994
  %1263 = vrot.lane.b32.xlu0 %v1260, 64
  %v1264 = vpop.permute.xlu0 %1263
  %v1266 = vmul.f32 %v1258, %v1264
  %1268 = vrot.lane.b32.xlu0 %v1266, 32
  %v1269 = vpop.permute.xlu0 %1268
  %v1271 = vadd.f32 %v1261, %v1269
  %v1272 = vtanh.pop %v1271
  %1274 = vrot.lane.b32.xlu0 %v1272, 64
  %v1275 = vpop.permute.xlu0 %1274
  %v1277 = vmul.f32 %v1258, %v1275
  %vm1278 = vcmask 1048320
  %1279 = vst.msk [vmem:[#allocation3] sm:$0xff] %vm1278, %v1277
  %1281 = vrot.lane.b32.xlu0 %v1277, 32
  %v1282 = vpop.permute.xlu0 %1281
  %v1283 = vsel %vm179, %v1282, 0
  %1285 = vmatprep.subr.mxu0 0.0
  %1286 = vmatpush1.msra.mxu0 %v20
  %1287 = vmatprep.subr.mxu0 0.0
  %1288 = vmatpush1.msra.mxu0 %v21
  %1289 = vmatprep.subr.mxu0 0.0
  %1290 = vmatpush1.msra.mxu0 %v22
  %1291 = vmatprep.subr.mxu0 0.0
  %1292 = vmatpush1.msra.mxu0 %v23
  %1293 = vmatprep.subr.mxu0 0.0
  %1294 = vmatpush1.msra.mxu0 0.0
  %1295 = vmatprep.subr.mxu0 0.0
  %1296 = vmatpush1.msra.mxu0 0.0
  %1297 = vmatprep.subr.mxu0 0.0
  %1298 = vmatpush1.msra.mxu0 0.0
  %1299 = vmatprep.subr.mxu0 0.0
  %1300 = vmatpush1.msra.mxu0 0.0
  %1301 = vmatprep.subr.mxu0 0.0
  %1302 = vmatpush1.msra.mxu0 0.0
  %1303 = vmatprep.subr.mxu0 0.0
  %1304 = vmatpush1.msra.mxu0 0.0
  %1305 = vmatprep.subr.mxu0 0.0
  %1306 = vmatpush1.msra.mxu0 0.0
  %1307 = vmatprep.subr.mxu0 0.0
  %1308 = vmatpush1.msra.mxu0 0.0
  %1309 = vmatprep.subr.mxu0 0.0
  %1310 = vmatpush1.msra.mxu0 0.0
  %1311 = vmatprep.subr.mxu0 0.0
  %1312 = vmatpush1.msra.mxu0 0.0
  %1313 = vmatprep.subr.mxu0 0.0
  %1314 = vmatpush1.msra.mxu0 0.0
  %1315 = vmatprep.subr.mxu0 0.0
  %1316 = vmatpush1.msra.mxu0 0.0
  %1317 = vmatprep.subr.mxu0 0.0
  %1318 = vmatpush1.msra.mxu0 0.0
  %1319 = vmatprep.subr.mxu0 0.0
  %1320 = vmatpush1.msra.mxu0 0.0
  %1321 = vmatprep.subr.mxu0 0.0
  %1322 = vmatpush1.msra.mxu0 0.0
  %1323 = vmatprep.subr.mxu0 0.0
  %1324 = vmatpush1.msra.mxu0 0.0
  %1325 = vmatprep.subr.mxu0 0.0
  %1326 = vmatpush1.msra.mxu0 0.0
  %1327 = vmatprep.subr.mxu0 0.0
  %1328 = vmatpush1.msra.mxu0 0.0
  %1329 = vmatprep.subr.mxu0 0.0
  %1330 = vmatpush1.msra.mxu0 0.0
  %1331 = vmatprep.subr.mxu0 0.0
  %1332 = vmatpush1.msra.mxu0 0.0
  %1333 = vmatprep.subr.mxu0 0.0
  %1334 = vmatpush1.msra.mxu0 0.0
  %1335 = vmatprep.subr.mxu0 0.0
  %1336 = vmatpush1.msra.mxu0 0.0
  %1337 = vmatprep.subr.mxu0 0.0
  %1338 = vmatpush1.msra.mxu0 0.0
  %1339 = vmatprep.subr.mxu0 0.0
  %1340 = vmatpush1.msra.mxu0 0.0
  %1341 = vmatprep.subr.mxu0 0.0
  %1342 = vmatpush1.msra.mxu0 0.0
  %1343 = vmatprep.subr.mxu0 0.0
  %1344 = vmatpush1.msra.mxu0 0.0
  %1345 = vmatprep.subr.mxu0 0.0
  %1346 = vmatpush1.msra.mxu0 0.0
  %1347 = vmatprep.subr.mxu0 0.0
  %1348 = vmatpush1.msra.mxu0 0.0
  %1349 = vmatprep.mubr.f32.mxu0 0.0
  %1350 = vmatmul.mubr.f32.gmra.mrb[0].mxu0 %v1283
  %v1351 = vpop.f32.mrb[0].mxu0
  %v1352 = vadd.f32 %v28, %v1351
  %v1353 = vpop.f32.mrb[0].mxu0
  %1354 = vdwg.mxu0
  %v1355 = vld [vmem:[#allocation2 + $0x20] sm:$0xff]
  %1356 = vmatprep.subr.mxu0 0.0
  %1357 = vmatpush1.msra.mxu0 %v12
  %1358 = vmatprep.subr.mxu0 0.0
  %1359 = vmatpush1.msra.mxu0 %v13
  %1360 = vmatprep.subr.mxu0 0.0
  %1361 = vmatpush1.msra.mxu0 %v14
  %1362 = vmatprep.subr.mxu0 0.0
  %1363 = vmatpush1.msra.mxu0 %v15
  %1364 = vmatprep.subr.mxu0 0.0
  %1365 = vmatpush1.msra.mxu0 0.0
  %1366 = vmatprep.subr.mxu0 0.0
  %1367 = vmatpush1.msra.mxu0 0.0
  %1368 = vmatprep.subr.mxu0 0.0
  %1369 = vmatpush1.msra.mxu0 0.0
  %1370 = vmatprep.subr.mxu0 0.0
  %1371 = vmatpush1.msra.mxu0 0.0
  %1372 = vmatprep.subr.mxu0 0.0
  %1373 = vmatpush1.msra.mxu0 0.0
  %1374 = vmatprep.subr.mxu0 0.0
  %1375 = vmatpush1.msra.mxu0 0.0
  %1376 = vmatprep.subr.mxu0 0.0
  %1377 = vmatpush1.msra.mxu0 0.0
  %1378 = vmatprep.subr.mxu0 0.0
  %1379 = vmatpush1.msra.mxu0 0.0
  %1380 = vmatprep.subr.mxu0 0.0
  %1381 = vmatpush1.msra.mxu0 0.0
  %1382 = vmatprep.subr.mxu0 0.0
  %1383 = vmatpush1.msra.mxu0 0.0
  %1384 = vmatprep.subr.mxu0 0.0
  %1385 = vmatpush1.msra.mxu0 0.0
  %1386 = vmatprep.subr.mxu0 0.0
  %1387 = vmatpush1.msra.mxu0 0.0
  %1388 = vmatprep.subr.mxu0 0.0
  %1389 = vmatpush1.msra.mxu0 0.0
  %1390 = vmatprep.subr.mxu0 0.0
  %1391 = vmatpush1.msra.mxu0 0.0
  %1392 = vmatprep.subr.mxu0 0.0
  %1393 = vmatpush1.msra.mxu0 0.0
  %1394 = vmatprep.subr.mxu0 0.0
  %1395 = vmatpush1.msra.mxu0 0.0
  %1396 = vmatprep.subr.mxu0 0.0
  %1397 = vmatpush1.msra.mxu0 0.0
  %1398 = vmatprep.subr.mxu0 0.0
  %1399 = vmatpush1.msra.mxu0 0.0
  %1400 = vmatprep.subr.mxu0 0.0
  %1401 = vmatpush1.msra.mxu0 0.0
  %1402 = vmatprep.subr.mxu0 0.0
  %1403 = vmatpush1.msra.mxu0 0.0
  %1404 = vmatprep.subr.mxu0 0.0
  %1405 = vmatpush1.msra.mxu0 0.0
  %1406 = vmatprep.subr.mxu0 0.0
  %1407 = vmatpush1.msra.mxu0 0.0
  %1408 = vmatprep.subr.mxu0 0.0
  %1409 = vmatpush1.msra.mxu0 0.0
  %1410 = vmatprep.subr.mxu0 0.0
  %1411 = vmatpush1.msra.mxu0 0.0
  %1412 = vmatprep.subr.mxu0 0.0
  %1413 = vmatpush1.msra.mxu0 0.0
  %1414 = vmatprep.subr.mxu0 0.0
  %1415 = vmatpush1.msra.mxu0 0.0
  %1416 = vmatprep.subr.mxu0 0.0
  %1417 = vmatpush1.msra.mxu0 0.0
  %1418 = vmatprep.subr.mxu0 0.0
  %1419 = vmatpush1.msra.mxu0 0.0
  %1420 = vmatprep.mubr.f32.mxu0 0.0
  %1421 = vmatmul.mubr.f32.gmra.mrb[0].mxu0 %v1181
  %v1422 = vpop.f32.mrb[0].mxu0
  %v1423 = vadd.f32 0.0, %v1422
  %v1424 = vpop.f32.mrb[0].mxu0
  %1425 = vdwg.mxu0
  %v1426 = vadd.f32 %v1355, %v1423
  %v1427 = vxor.u32 %v1426, 2147483648
  %v1428 = vmul.f32 %v1427, 1.442695
  %v1429 = vpow.pop %v1428
  %v1430 = vadd.f32 %v1429, 1.0
  %v1431 = vrcp.pop %v1430
  %v1432 = vmul.f32 1.0, %v1431
  %v1433 = vmul.f32 %v1432, 2.0
  %v1434 = vsub.f32 %v1433, 1.0
  %v1435 = vmul.f32 %v1432, %v1171
  %1437 = vrot.lane.b32.xlu0 %v1434, 64
  %v1438 = vpop.permute.xlu0 %1437
  %v1440 = vmul.f32 %v1432, %v1438
  %1442 = vrot.lane.b32.xlu0 %v1440, 32
  %v1443 = vpop.permute.xlu0 %1442
  %v1445 = vadd.f32 %v1435, %v1443
  %v1446 = vtanh.pop %v1445
  %1448 = vrot.lane.b32.xlu0 %v1446, 64
  %v1449 = vpop.permute.xlu0 %1448
  %v1451 = vmul.f32 %v1432, %v1449
  %1453 = vrot.lane.b32.xlu0 %v1451, 32
  %v1454 = vpop.permute.xlu0 %1453
  %v1455 = vsel %vm179, %v1454, 0
  %1457 = vmatprep.subr.mxu0 0.0
  %1458 = vmatpush1.msra.mxu0 %v16
  %1459 = vmatprep.subr.mxu0 0.0
  %1460 = vmatpush1.msra.mxu0 %v17
  %1461 = vmatprep.subr.mxu0 0.0
  %1462 = vmatpush1.msra.mxu0 %v18
  %1463 = vmatprep.subr.mxu0 0.0
  %1464 = vmatpush1.msra.mxu0 %v19
  %1465 = vmatprep.subr.mxu0 0.0
  %1466 = vmatpush1.msra.mxu0 0.0
  %1467 = vmatprep.subr.mxu0 0.0
  %1468 = vmatpush1.msra.mxu0 0.0
  %1469 = vmatprep.subr.mxu0 0.0
  %1470 = vmatpush1.msra.mxu0 0.0
  %1471 = vmatprep.subr.mxu0 0.0
  %1472 = vmatpush1.msra.mxu0 0.0
  %1473 = vmatprep.subr.mxu0 0.0
  %1474 = vmatpush1.msra.mxu0 0.0
  %1475 = vmatprep.subr.mxu0 0.0
  %1476 = vmatpush1.msra.mxu0 0.0
  %1477 = vmatprep.subr.mxu0 0.0
  %1478 = vmatpush1.msra.mxu0 0.0
  %1479 = vmatprep.subr.mxu0 0.0
  %1480 = vmatpush1.msra.mxu0 0.0
  %1481 = vmatprep.subr.mxu0 0.0
  %1482 = vmatpush1.msra.mxu0 0.0
  %1483 = vmatprep.subr.mxu0 0.0
  %1484 = vmatpush1.msra.mxu0 0.0
  %1485 = vmatprep.subr.mxu0 0.0
  %1486 = vmatpush1.msra.mxu0 0.0
  %1487 = vmatprep.subr.mxu0 0.0
  %1488 = vmatpush1.msra.mxu0 0.0
  %1489 = vmatprep.subr.mxu0 0.0
  %1490 = vmatpush1.msra.mxu0 0.0
  %1491 = vmatprep.subr.mxu0 0.0
  %1492 = vmatpush1.msra.mxu0 0.0
  %1493 = vmatprep.subr.mxu0 0.0
  %1494 = vmatpush1.msra.mxu0 0.0
  %1495 = vmatprep.subr.mxu0 0.0
  %1496 = vmatpush1.msra.mxu0 0.0
  %1497 = vmatprep.subr.mxu0 0.0
  %1498 = vmatpush1.msra.mxu0 0.0
  %1499 = vmatprep.subr.mxu0 0.0
  %1500 = vmatpush1.msra.mxu0 0.0
  %1501 = vmatprep.subr.mxu0 0.0
  %1502 = vmatpush1.msra.mxu0 0.0
  %1503 = vmatprep.subr.mxu0 0.0
  %1504 = vmatpush1.msra.mxu0 0.0
  %1505 = vmatprep.subr.mxu0 0.0
  %1506 = vmatpush1.msra.mxu0 0.0
  %1507 = vmatprep.subr.mxu0 0.0
  %1508 = vmatpush1.msra.mxu0 0.0
  %1509 = vmatprep.subr.mxu0 0.0
  %1510 = vmatpush1.msra.mxu0 0.0
  %1511 = vmatprep.subr.mxu0 0.0
  %1512 = vmatpush1.msra.mxu0 0.0
  %1513 = vmatprep.subr.mxu0 0.0
  %1514 = vmatpush1.msra.mxu0 0.0
  %1515 = vmatprep.subr.mxu0 0.0
  %1516 = vmatpush1.msra.mxu0 0.0
  %1517 = vmatprep.subr.mxu0 0.0
  %1518 = vmatpush1.msra.mxu0 0.0
  %1519 = vmatprep.subr.mxu0 0.0
  %1520 = vmatpush1.msra.mxu0 0.0
  %1521 = vmatprep.mubr.f32.mxu0 0.0
  %1522 = vmatmul.mubr.f32.gmra.mrb[0].mxu0 %v1455
  %v1523 = vpop.f32.mrb[0].mxu0
  %v1524 = vadd.f32 %v1352, %v1523
  %v1525 = vpop.f32.mrb[0].mxu0
  %1526 = vdwg.mxu0
  %v1527 = vxor.u32 %v1524, 2147483648
  %v1528 = vmul.f32 %v1527, 1.442695
  %v1529 = vpow.pop %v1528
  %v1530 = vadd.f32 %v1529, 1.0
  %v1531 = vrcp.pop %v1530
  %v1532 = vmul.f32 1.0, %v1531
  %v1533 = vmul.f32 %v1532, 2.0
  %v1534 = vsub.f32 %v1533, 1.0
  %v1535 = vmul.f32 %v1532, %v1271
  %1537 = vrot.lane.b32.xlu0 %v1534, 64
  %v1538 = vpop.permute.xlu0 %1537
  %v1540 = vmul.f32 %v1532, %v1538
  %1542 = vrot.lane.b32.xlu0 %v1540, 32
  %v1543 = vpop.permute.xlu0 %1542
  %v1545 = vadd.f32 %v1535, %v1543
  %v1546 = vtanh.pop %v1545
  %1548 = vrot.lane.b32.xlu0 %v1546, 64
  %v1549 = vpop.permute.xlu0 %1548
  %v1551 = vmul.f32 %v1532, %v1549
  %1553 = vrot.lane.b32.xlu0 %v1551, 32
  %v1554 = vpop.permute.xlu0 %1553
  %1556 = vst.msk [vmem:[#allocation3 + $0x8] sm:$0xff] %vm179, %v1554
  %v1557 = vsel %vm179, %v1554, 0
  %1559 = vmatprep.subr.mxu0 0.0
  %1560 = vmatpush1.msra.mxu0 %v20
  %1561 = vmatprep.subr.mxu0 0.0
  %1562 = vmatpush1.msra.mxu0 %v21
  %1563 = vmatprep.subr.mxu0 0.0
  %1564 = vmatpush1.msra.mxu0 %v22
  %1565 = vmatprep.subr.mxu0 0.0
  %1566 = vmatpush1.msra.mxu0 %v23
  %1567 = vmatprep.subr.mxu0 0.0
  %1568 = vmatpush1.msra.mxu0 0.0
  %1569 = vmatprep.subr.mxu0 0.0
  %1570 = vmatpush1.msra.mxu0 0.0
  %1571 = vmatprep.subr.mxu0 0.0
  %1572 = vmatpush1.msra.mxu0 0.0
  %1573 = vmatprep.subr.mxu0 0.0
  %1574 = vmatpush1.msra.mxu0 0.0
  %1575 = vmatprep.subr.mxu0 0.0
  %1576 = vmatpush1.msra.mxu0 0.0
  %1577 = vmatprep.subr.mxu0 0.0
  %1578 = vmatpush1.msra.mxu0 0.0
  %1579 = vmatprep.subr.mxu0 0.0
  %1580 = vmatpush1.msra.mxu0 0.0
  %1581 = vmatprep.subr.mxu0 0.0
  %1582 = vmatpush1.msra.mxu0 0.0
  %1583 = vmatprep.subr.mxu0 0.0
  %1584 = vmatpush1.msra.mxu0 0.0
  %1585 = vmatprep.subr.mxu0 0.0
  %1586 = vmatpush1.msra.mxu0 0.0
  %1587 = vmatprep.subr.mxu0 0.0
  %1588 = vmatpush1.msra.mxu0 0.0
  %1589 = vmatprep.subr.mxu0 0.0
  %1590 = vmatpush1.msra.mxu0 0.0
  %1591 = vmatprep.subr.mxu0 0.0
  %1592 = vmatpush1.msra.mxu0 0.0
  %1593 = vmatprep.subr.mxu0 0.0
  %1594 = vmatpush1.msra.mxu0 0.0
  %1595 = vmatprep.subr.mxu0 0.0
  %1596 = vmatpush1.msra.mxu0 0.0
  %1597 = vmatprep.subr.mxu0 0.0
  %1598 = vmatpush1.msra.mxu0 0.0
  %1599 = vmatprep.subr.mxu0 0.0
  %1600 = vmatpush1.msra.mxu0 0.0
  %1601 = vmatprep.subr.mxu0 0.0
  %1602 = vmatpush1.msra.mxu0 0.0
  %1603 = vmatprep.subr.mxu0 0.0
  %1604 = vmatpush1.msra.mxu0 0.0
  %1605 = vmatprep.subr.mxu0 0.0
  %1606 = vmatpush1.msra.mxu0 0.0
  %1607 = vmatprep.subr.mxu0 0.0
  %1608 = vmatpush1.msra.mxu0 0.0
  %1609 = vmatprep.subr.mxu0 0.0
  %1610 = vmatpush1.msra.mxu0 0.0
  %1611 = vmatprep.subr.mxu0 0.0
  %1612 = vmatpush1.msra.mxu0 0.0
  %1613 = vmatprep.subr.mxu0 0.0
  %1614 = vmatpush1.msra.mxu0 0.0
  %1615 = vmatprep.subr.mxu0 0.0
  %1616 = vmatpush1.msra.mxu0 0.0
  %1617 = vmatprep.subr.mxu0 0.0
  %1618 = vmatpush1.msra.mxu0 0.0
  %1619 = vmatprep.subr.mxu0 0.0
  %1620 = vmatpush1.msra.mxu0 0.0
  %1621 = vmatprep.subr.mxu0 0.0
  %1622 = vmatpush1.msra.mxu0 0.0
  %1623 = vmatprep.mubr.f32.mxu0 0.0
  %1624 = vmatmul.mubr.f32.gmra.mrb[0].mxu0 %v1557
  %v1625 = vpop.f32.mrb[0].mxu0
  %v1626 = vadd.f32 %v28, %v1625
  %v1627 = vpop.f32.mrb[0].mxu0
  %1628 = vdwg.mxu0
  %v1629 = vld [vmem:[#allocation2 + $0x28] sm:$0xff]
  %1630 = vmatprep.subr.mxu0 0.0
  %1631 = vmatpush1.msra.mxu0 %v12
  %1632 = vmatprep.subr.mxu0 0.0
  %1633 = vmatpush1.msra.mxu0 %v13
  %1634 = vmatprep.subr.mxu0 0.0
  %1635 = vmatpush1.msra.mxu0 %v14
  %1636 = vmatprep.subr.mxu0 0.0
  %1637 = vmatpush1.msra.mxu0 %v15
  %1638 = vmatprep.subr.mxu0 0.0
  %1639 = vmatpush1.msra.mxu0 0.0
  %1640 = vmatprep.subr.mxu0 0.0
  %1641 = vmatpush1.msra.mxu0 0.0
  %1642 = vmatprep.subr.mxu0 0.0
  %1643 = vmatpush1.msra.mxu0 0.0
  %1644 = vmatprep.subr.mxu0 0.0
  %1645 = vmatpush1.msra.mxu0 0.0
  %1646 = vmatprep.subr.mxu0 0.0
  %1647 = vmatpush1.msra.mxu0 0.0
  %1648 = vmatprep.subr.mxu0 0.0
  %1649 = vmatpush1.msra.mxu0 0.0
  %1650 = vmatprep.subr.mxu0 0.0
  %1651 = vmatpush1.msra.mxu0 0.0
  %1652 = vmatprep.subr.mxu0 0.0
  %1653 = vmatpush1.msra.mxu0 0.0
  %1654 = vmatprep.subr.mxu0 0.0
  %1655 = vmatpush1.msra.mxu0 0.0
  %1656 = vmatprep.subr.mxu0 0.0
  %1657 = vmatpush1.msra.mxu0 0.0
  %1658 = vmatprep.subr.mxu0 0.0
  %1659 = vmatpush1.msra.mxu0 0.0
  %1660 = vmatprep.subr.mxu0 0.0
  %1661 = vmatpush1.msra.mxu0 0.0
  %1662 = vmatprep.subr.mxu0 0.0
  %1663 = vmatpush1.msra.mxu0 0.0
  %1664 = vmatprep.subr.mxu0 0.0
  %1665 = vmatpush1.msra.mxu0 0.0
  %1666 = vmatprep.subr.mxu0 0.0
  %1667 = vmatpush1.msra.mxu0 0.0
  %1668 = vmatprep.subr.mxu0 0.0
  %1669 = vmatpush1.msra.mxu0 0.0
  %1670 = vmatprep.subr.mxu0 0.0
  %1671 = vmatpush1.msra.mxu0 0.0
  %1672 = vmatprep.subr.mxu0 0.0
  %1673 = vmatpush1.msra.mxu0 0.0
  %1674 = vmatprep.subr.mxu0 0.0
  %1675 = vmatpush1.msra.mxu0 0.0
  %1676 = vmatprep.subr.mxu0 0.0
  %1677 = vmatpush1.msra.mxu0 0.0
  %1678 = vmatprep.subr.mxu0 0.0
  %1679 = vmatpush1.msra.mxu0 0.0
  %1680 = vmatprep.subr.mxu0 0.0
  %1681 = vmatpush1.msra.mxu0 0.0
  %1682 = vmatprep.subr.mxu0 0.0
  %1683 = vmatpush1.msra.mxu0 0.0
  %1684 = vmatprep.subr.mxu0 0.0
  %1685 = vmatpush1.msra.mxu0 0.0
  %1686 = vmatprep.subr.mxu0 0.0
  %1687 = vmatpush1.msra.mxu0 0.0
  %1688 = vmatprep.subr.mxu0 0.0
  %1689 = vmatpush1.msra.mxu0 0.0
  %1690 = vmatprep.subr.mxu0 0.0
  %1691 = vmatpush1.msra.mxu0 0.0
  %1692 = vmatprep.subr.mxu0 0.0
  %1693 = vmatpush1.msra.mxu0 0.0
  %1694 = vmatprep.mubr.f32.mxu0 0.0
  %1695 = vmatmul.mubr.f32.gmra.mrb[0].mxu0 %v1455
  %v1696 = vpop.f32.mrb[0].mxu0
  %v1697 = vadd.f32 0.0, %v1696
  %v1698 = vpop.f32.mrb[0].mxu0
  %1699 = vdwg.mxu0
  %v1700 = vadd.f32 %v1629, %v1697
  %v1701 = vxor.u32 %v1700, 2147483648
  %v1702 = vmul.f32 %v1701, 1.442695
  %v1703 = vpow.pop %v1702
  %v1704 = vadd.f32 %v1703, 1.0
  %v1705 = vrcp.pop %v1704
  %v1706 = vmul.f32 1.0, %v1705
  %v1707 = vmul.f32 %v1706, 2.0
  %v1708 = vsub.f32 %v1707, 1.0
  %v1709 = vmul.f32 %v1706, %v1445
  %1711 = vrot.lane.b32.xlu0 %v1708, 64
  %v1712 = vpop.permute.xlu0 %1711
  %v1714 = vmul.f32 %v1706, %v1712
  %1716 = vrot.lane.b32.xlu0 %v1714, 32
  %v1717 = vpop.permute.xlu0 %1716
  %v1719 = vadd.f32 %v1709, %v1717
  %v1720 = vtanh.pop %v1719
  %1722 = vrot.lane.b32.xlu0 %v1720, 64
  %v1723 = vpop.permute.xlu0 %1722
  %v1725 = vmul.f32 %v1706, %v1723
  %1727 = vrot.lane.b32.xlu0 %v1725, 32
  %v1728 = vpop.permute.xlu0 %1727
  %v1729 = vsel %vm179, %v1728, 0
  %1731 = vmatprep.subr.mxu0 0.0
  %1732 = vmatpush1.msra.mxu0 %v16
  %1733 = vmatprep.subr.mxu0 0.0
  %1734 = vmatpush1.msra.mxu0 %v17
  %1735 = vmatprep.subr.mxu0 0.0
  %1736 = vmatpush1.msra.mxu0 %v18
  %1737 = vmatprep.subr.mxu0 0.0
  %1738 = vmatpush1.msra.mxu0 %v19
  %1739 = vmatprep.subr.mxu0 0.0
  %1740 = vmatpush1.msra.mxu0 0.0
  %1741 = vmatprep.subr.mxu0 0.0
  %1742 = vmatpush1.msra.mxu0 0.0
  %1743 = vmatprep.subr.mxu0 0.0
  %1744 = vmatpush1.msra.mxu0 0.0
  %1745 = vmatprep.subr.mxu0 0.0
  %1746 = vmatpush1.msra.mxu0 0.0
  %1747 = vmatprep.subr.mxu0 0.0
  %1748 = vmatpush1.msra.mxu0 0.0
  %1749 = vmatprep.subr.mxu0 0.0
  %1750 = vmatpush1.msra.mxu0 0.0
  %1751 = vmatprep.subr.mxu0 0.0
  %1752 = vmatpush1.msra.mxu0 0.0
  %1753 = vmatprep.subr.mxu0 0.0
  %1754 = vmatpush1.msra.mxu0 0.0
  %1755 = vmatprep.subr.mxu0 0.0
  %1756 = vmatpush1.msra.mxu0 0.0
  %1757 = vmatprep.subr.mxu0 0.0
  %1758 = vmatpush1.msra.mxu0 0.0
  %1759 = vmatprep.subr.mxu0 0.0
  %1760 = vmatpush1.msra.mxu0 0.0
  %1761 = vmatprep.subr.mxu0 0.0
  %1762 = vmatpush1.msra.mxu0 0.0
  %1763 = vmatprep.subr.mxu0 0.0
  %1764 = vmatpush1.msra.mxu0 0.0
  %1765 = vmatprep.subr.mxu0 0.0
  %1766 = vmatpush1.msra.mxu0 0.0
  %1767 = vmatprep.subr.mxu0 0.0
  %1768 = vmatpush1.msra.mxu0 0.0
  %1769 = vmatprep.subr.mxu0 0.0
  %1770 = vmatpush1.msra.mxu0 0.0
  %1771 = vmatprep.subr.mxu0 0.0
  %1772 = vmatpush1.msra.mxu0 0.0
  %1773 = vmatprep.subr.mxu0 0.0
  %1774 = vmatpush1.msra.mxu0 0.0
  %1775 = vmatprep.subr.mxu0 0.0
  %1776 = vmatpush1.msra.mxu0 0.0
  %1777 = vmatprep.subr.mxu0 0.0
  %1778 = vmatpush1.msra.mxu0 0.0
  %1779 = vmatprep.subr.mxu0 0.0
  %1780 = vmatpush1.msra.mxu0 0.0
  %1781 = vmatprep.subr.mxu0 0.0
  %1782 = vmatpush1.msra.mxu0 0.0
  %1783 = vmatprep.subr.mxu0 0.0
  %1784 = vmatpush1.msra.mxu0 0.0
  %1785 = vmatprep.subr.mxu0 0.0
  %1786 = vmatpush1.msra.mxu0 0.0
  %1787 = vmatprep.subr.mxu0 0.0
  %1788 = vmatpush1.msra.mxu0 0.0
  %1789 = vmatprep.subr.mxu0 0.0
  %1790 = vmatpush1.msra.mxu0 0.0
  %1791 = vmatprep.subr.mxu0 0.0
  %1792 = vmatpush1.msra.mxu0 0.0
  %1793 = vmatprep.subr.mxu0 0.0
  %1794 = vmatpush1.msra.mxu0 0.0
  %1795 = vmatprep.mubr.f32.mxu0 0.0
  %1796 = vmatmul.mubr.f32.gmra.mrb[0].mxu0 %v1729
  %v1797 = vpop.f32.mrb[0].mxu0
  %v1798 = vadd.f32 %v1626, %v1797
  %v1799 = vpop.f32.mrb[0].mxu0
  %1800 = vdwg.mxu0
  %v1801 = vxor.u32 %v1798, 2147483648
  %v1802 = vmul.f32 %v1801, 1.442695
  %v1803 = vpow.pop %v1802
  %v1804 = vadd.f32 %v1803, 1.0
  %v1805 = vrcp.pop %v1804
  %v1806 = vmul.f32 1.0, %v1805
  %v1807 = vmul.f32 %v1806, 2.0
  %v1808 = vsub.f32 %v1807, 1.0
  %v1809 = vmul.f32 %v1806, %v1545
  %1811 = vrot.lane.b32.xlu0 %v1808, 64
  %v1812 = vpop.permute.xlu0 %1811
  %v1814 = vmul.f32 %v1806, %v1812
  %1816 = vrot.lane.b32.xlu0 %v1814, 32
  %v1817 = vpop.permute.xlu0 %1816
  %v1819 = vadd.f32 %v1809, %v1817
  %v1820 = vtanh.pop %v1819
  %1822 = vrot.lane.b32.xlu0 %v1820, 64
  %v1823 = vpop.permute.xlu0 %1822
  %v1825 = vmul.f32 %v1806, %v1823
  %1827 = vrot.lane.b32.xlu0 %v1825, 64
  %v1828 = vpop.permute.xlu0 %1827
  %1830 = vst.msk [vmem:[#allocation3 + $0x8] sm:$0xff] %vm728, %v1828
  %1831 = vrot.lane.b32.xlu0 %v1825, 32
  %v1832 = vpop.permute.xlu0 %1831
  %v1833 = vsel %vm179, %v1832, 0
  %1835 = vmatprep.subr.mxu0 0.0
  %1836 = vmatpush1.msra.mxu0 %v20
  %1837 = vmatprep.subr.mxu0 0.0
  %1838 = vmatpush1.msra.mxu0 %v21
  %1839 = vmatprep.subr.mxu0 0.0
  %1840 = vmatpush1.msra.mxu0 %v22
  %1841 = vmatprep.subr.mxu0 0.0
  %1842 = vmatpush1.msra.mxu0 %v23
  %1843 = vmatprep.subr.mxu0 0.0
  %1844 = vmatpush1.msra.mxu0 0.0
  %1845 = vmatprep.subr.mxu0 0.0
  %1846 = vmatpush1.msra.mxu0 0.0
  %1847 = vmatprep.subr.mxu0 0.0
  %1848 = vmatpush1.msra.mxu0 0.0
  %1849 = vmatprep.subr.mxu0 0.0
  %1850 = vmatpush1.msra.mxu0 0.0
  %1851 = vmatprep.subr.mxu0 0.0
  %1852 = vmatpush1.msra.mxu0 0.0
  %1853 = vmatprep.subr.mxu0 0.0
  %1854 = vmatpush1.msra.mxu0 0.0
  %1855 = vmatprep.subr.mxu0 0.0
  %1856 = vmatpush1.msra.mxu0 0.0
  %1857 = vmatprep.subr.mxu0 0.0
  %1858 = vmatpush1.msra.mxu0 0.0
  %1859 = vmatprep.subr.mxu0 0.0
  %1860 = vmatpush1.msra.mxu0 0.0
  %1861 = vmatprep.subr.mxu0 0.0
  %1862 = vmatpush1.msra.mxu0 0.0
  %1863 = vmatprep.subr.mxu0 0.0
  %1864 = vmatpush1.msra.mxu0 0.0
  %1865 = vmatprep.subr.mxu0 0.0
  %1866 = vmatpush1.msra.mxu0 0.0
  %1867 = vmatprep.subr.mxu0 0.0
  %1868 = vmatpush1.msra.mxu0 0.0
  %1869 = vmatprep.subr.mxu0 0.0
  %1870 = vmatpush1.msra.mxu0 0.0
  %1871 = vmatprep.subr.mxu0 0.0
  %1872 = vmatpush1.msra.mxu0 0.0
  %1873 = vmatprep.subr.mxu0 0.0
  %1874 = vmatpush1.msra.mxu0 0.0
  %1875 = vmatprep.subr.mxu0 0.0
  %1876 = vmatpush1.msra.mxu0 0.0
  %1877 = vmatprep.subr.mxu0 0.0
  %1878 = vmatpush1.msra.mxu0 0.0
  %1879 = vmatprep.subr.mxu0 0.0
  %1880 = vmatpush1.msra.mxu0 0.0
  %1881 = vmatprep.subr.mxu0 0.0
  %1882 = vmatpush1.msra.mxu0 0.0
  %1883 = vmatprep.subr.mxu0 0.0
  %1884 = vmatpush1.msra.mxu0 0.0
  %1885 = vmatprep.subr.mxu0 0.0
  %1886 = vmatpush1.msra.mxu0 0.0
  %1887 = vmatprep.subr.mxu0 0.0
  %1888 = vmatpush1.msra.mxu0 0.0
  %1889 = vmatprep.subr.mxu0 0.0
  %1890 = vmatpush1.msra.mxu0 0.0
  %1891 = vmatprep.subr.mxu0 0.0
  %1892 = vmatpush1.msra.mxu0 0.0
  %1893 = vmatprep.subr.mxu0 0.0
  %1894 = vmatpush1.msra.mxu0 0.0
  %1895 = vmatprep.subr.mxu0 0.0
  %1896 = vmatpush1.msra.mxu0 0.0
  %1897 = vmatprep.subr.mxu0 0.0
  %1898 = vmatpush1.msra.mxu0 0.0
  %1899 = vmatprep.mubr.f32.mxu0 0.0
  %1900 = vmatmul.mubr.f32.gmra.mrb[0].mxu0 %v1833
  %v1901 = vpop.f32.mrb[0].mxu0
  %v1902 = vadd.f32 %v28, %v1901
  %v1903 = vpop.f32.mrb[0].mxu0
  %1904 = vdwg.mxu0
  %v1905 = vld [vmem:[#allocation2 + $0x30] sm:$0xff]
  %1906 = vmatprep.subr.mxu0 0.0
  %1907 = vmatpush1.msra.mxu0 %v12
  %1908 = vmatprep.subr.mxu0 0.0
  %1909 = vmatpush1.msra.mxu0 %v13
  %1910 = vmatprep.subr.mxu0 0.0
  %1911 = vmatpush1.msra.mxu0 %v14
  %1912 = vmatprep.subr.mxu0 0.0
  %1913 = vmatpush1.msra.mxu0 %v15
  %1914 = vmatprep.subr.mxu0 0.0
  %1915 = vmatpush1.msra.mxu0 0.0
  %1916 = vmatprep.subr.mxu0 0.0
  %1917 = vmatpush1.msra.mxu0 0.0
  %1918 = vmatprep.subr.mxu0 0.0
  %1919 = vmatpush1.msra.mxu0 0.0
  %1920 = vmatprep.subr.mxu0 0.0
  %1921 = vmatpush1.msra.mxu0 0.0
  %1922 = vmatprep.subr.mxu0 0.0
  %1923 = vmatpush1.msra.mxu0 0.0
  %1924 = vmatprep.subr.mxu0 0.0
  %1925 = vmatpush1.msra.mxu0 0.0
  %1926 = vmatprep.subr.mxu0 0.0
  %1927 = vmatpush1.msra.mxu0 0.0
  %1928 = vmatprep.subr.mxu0 0.0
  %1929 = vmatpush1.msra.mxu0 0.0
  %1930 = vmatprep.subr.mxu0 0.0
  %1931 = vmatpush1.msra.mxu0 0.0
  %1932 = vmatprep.subr.mxu0 0.0
  %1933 = vmatpush1.msra.mxu0 0.0
  %1934 = vmatprep.subr.mxu0 0.0
  %1935 = vmatpush1.msra.mxu0 0.0
  %1936 = vmatprep.subr.mxu0 0.0
  %1937 = vmatpush1.msra.mxu0 0.0
  %1938 = vmatprep.subr.mxu0 0.0
  %1939 = vmatpush1.msra.mxu0 0.0
  %1940 = vmatprep.subr.mxu0 0.0
  %1941 = vmatpush1.msra.mxu0 0.0
  %1942 = vmatprep.subr.mxu0 0.0
  %1943 = vmatpush1.msra.mxu0 0.0
  %1944 = vmatprep.subr.mxu0 0.0
  %1945 = vmatpush1.msra.mxu0 0.0
  %1946 = vmatprep.subr.mxu0 0.0
  %1947 = vmatpush1.msra.mxu0 0.0
  %1948 = vmatprep.subr.mxu0 0.0
  %1949 = vmatpush1.msra.mxu0 0.0
  %1950 = vmatprep.subr.mxu0 0.0
  %1951 = vmatpush1.msra.mxu0 0.0
  %1952 = vmatprep.subr.mxu0 0.0
  %1953 = vmatpush1.msra.mxu0 0.0
  %1954 = vmatprep.subr.mxu0 0.0
  %1955 = vmatpush1.msra.mxu0 0.0
  %1956 = vmatprep.subr.mxu0 0.0
  %1957 = vmatpush1.msra.mxu0 0.0
  %1958 = vmatprep.subr.mxu0 0.0
  %1959 = vmatpush1.msra.mxu0 0.0
  %1960 = vmatprep.subr.mxu0 0.0
  %1961 = vmatpush1.msra.mxu0 0.0
  %1962 = vmatprep.subr.mxu0 0.0
  %1963 = vmatpush1.msra.mxu0 0.0
  %1964 = vmatprep.subr.mxu0 0.0
  %1965 = vmatpush1.msra.mxu0 0.0
  %1966 = vmatprep.subr.mxu0 0.0
  %1967 = vmatpush1.msra.mxu0 0.0
  %1968 = vmatprep.subr.mxu0 0.0
  %1969 = vmatpush1.msra.mxu0 0.0
  %1970 = vmatprep.mubr.f32.mxu0 0.0
  %1971 = vmatmul.mubr.f32.gmra.mrb[0].mxu0 %v1729
  %v1972 = vpop.f32.mrb[0].mxu0
  %v1973 = vadd.f32 0.0, %v1972
  %v1974 = vpop.f32.mrb[0].mxu0
  %1975 = vdwg.mxu0
  %v1976 = vadd.f32 %v1905, %v1973
  %v1977 = vxor.u32 %v1976, 2147483648
  %v1978 = vmul.f32 %v1977, 1.442695
  %v1979 = vpow.pop %v1978
  %v1980 = vadd.f32 %v1979, 1.0
  %v1981 = vrcp.pop %v1980
  %v1982 = vmul.f32 1.0, %v1981
  %v1983 = vmul.f32 %v1982, 2.0
  %v1984 = vsub.f32 %v1983, 1.0
  %v1985 = vmul.f32 %v1982, %v1719
  %1987 = vrot.lane.b32.xlu0 %v1984, 64
  %v1988 = vpop.permute.xlu0 %1987
  %v1990 = vmul.f32 %v1982, %v1988
  %1992 = vrot.lane.b32.xlu0 %v1990, 32
  %v1993 = vpop.permute.xlu0 %1992
  %v1995 = vadd.f32 %v1985, %v1993
  %v1996 = vtanh.pop %v1995
  %1998 = vrot.lane.b32.xlu0 %v1996, 64
  %v1999 = vpop.permute.xlu0 %1998
  %v2001 = vmul.f32 %v1982, %v1999
  %2003 = vrot.lane.b32.xlu0 %v2001, 32
  %v2004 = vpop.permute.xlu0 %2003
  %v2005 = vsel %vm179, %v2004, 0
  %2007 = vmatprep.subr.mxu0 0.0
  %2008 = vmatpush1.msra.mxu0 %v16
  %2009 = vmatprep.subr.mxu0 0.0
  %2010 = vmatpush1.msra.mxu0 %v17
  %2011 = vmatprep.subr.mxu0 0.0
  %2012 = vmatpush1.msra.mxu0 %v18
  %2013 = vmatprep.subr.mxu0 0.0
  %2014 = vmatpush1.msra.mxu0 %v19
  %2015 = vmatprep.subr.mxu0 0.0
  %2016 = vmatpush1.msra.mxu0 0.0
  %2017 = vmatprep.subr.mxu0 0.0
  %2018 = vmatpush1.msra.mxu0 0.0
  %2019 = vmatprep.subr.mxu0 0.0
  %2020 = vmatpush1.msra.mxu0 0.0
  %2021 = vmatprep.subr.mxu0 0.0
  %2022 = vmatpush1.msra.mxu0 0.0
  %2023 = vmatprep.subr.mxu0 0.0
  %2024 = vmatpush1.msra.mxu0 0.0
  %2025 = vmatprep.subr.mxu0 0.0
  %2026 = vmatpush1.msra.mxu0 0.0
  %2027 = vmatprep.subr.mxu0 0.0
  %2028 = vmatpush1.msra.mxu0 0.0
  %2029 = vmatprep.subr.mxu0 0.0
  %2030 = vmatpush1.msra.mxu0 0.0
  %2031 = vmatprep.subr.mxu0 0.0
  %2032 = vmatpush1.msra.mxu0 0.0
  %2033 = vmatprep.subr.mxu0 0.0
  %2034 = vmatpush1.msra.mxu0 0.0
  %2035 = vmatprep.subr.mxu0 0.0
  %2036 = vmatpush1.msra.mxu0 0.0
  %2037 = vmatprep.subr.mxu0 0.0
  %2038 = vmatpush1.msra.mxu0 0.0
  %2039 = vmatprep.subr.mxu0 0.0
  %2040 = vmatpush1.msra.mxu0 0.0
  %2041 = vmatprep.subr.mxu0 0.0
  %2042 = vmatpush1.msra.mxu0 0.0
  %2043 = vmatprep.subr.mxu0 0.0
  %2044 = vmatpush1.msra.mxu0 0.0
  %2045 = vmatprep.subr.mxu0 0.0
  %2046 = vmatpush1.msra.mxu0 0.0
  %2047 = vmatprep.subr.mxu0 0.0
  %2048 = vmatpush1.msra.mxu0 0.0
  %2049 = vmatprep.subr.mxu0 0.0
  %2050 = vmatpush1.msra.mxu0 0.0
  %2051 = vmatprep.subr.mxu0 0.0
  %2052 = vmatpush1.msra.mxu0 0.0
  %2053 = vmatprep.subr.mxu0 0.0
  %2054 = vmatpush1.msra.mxu0 0.0
  %2055 = vmatprep.subr.mxu0 0.0
  %2056 = vmatpush1.msra.mxu0 0.0
  %2057 = vmatprep.subr.mxu0 0.0
  %2058 = vmatpush1.msra.mxu0 0.0
  %2059 = vmatprep.subr.mxu0 0.0
  %2060 = vmatpush1.msra.mxu0 0.0
  %2061 = vmatprep.subr.mxu0 0.0
  %2062 = vmatpush1.msra.mxu0 0.0
  %2063 = vmatprep.subr.mxu0 0.0
  %2064 = vmatpush1.msra.mxu0 0.0
  %2065 = vmatprep.subr.mxu0 0.0
  %2066 = vmatpush1.msra.mxu0 0.0
  %2067 = vmatprep.subr.mxu0 0.0
  %2068 = vmatpush1.msra.mxu0 0.0
  %2069 = vmatprep.subr.mxu0 0.0
  %2070 = vmatpush1.msra.mxu0 0.0
  %2071 = vmatprep.mubr.f32.mxu0 0.0
  %2072 = vmatmul.mubr.f32.gmra.mrb[0].mxu0 %v2005
  %v2073 = vpop.f32.mrb[0].mxu0
  %v2074 = vadd.f32 %v1902, %v2073
  %v2075 = vpop.f32.mrb[0].mxu0
  %2076 = vdwg.mxu0
  %v2077 = vxor.u32 %v2074, 2147483648
  %v2078 = vmul.f32 %v2077, 1.442695
  %v2079 = vpow.pop %v2078
  %v2080 = vadd.f32 %v2079, 1.0
  %v2081 = vrcp.pop %v2080
  %v2082 = vmul.f32 1.0, %v2081
  %v2083 = vmul.f32 %v2082, 2.0
  %v2084 = vsub.f32 %v2083, 1.0
  %v2085 = vmul.f32 %v2082, %v1819
  %2087 = vrot.lane.b32.xlu0 %v2084, 64
  %v2088 = vpop.permute.xlu0 %2087
  %v2090 = vmul.f32 %v2082, %v2088
  %2092 = vrot.lane.b32.xlu0 %v2090, 32
  %v2093 = vpop.permute.xlu0 %2092
  %v2095 = vadd.f32 %v2085, %v2093
  %v2096 = vtanh.pop %v2095
  %2098 = vrot.lane.b32.xlu0 %v2096, 64
  %v2099 = vpop.permute.xlu0 %2098
  %v2101 = vmul.f32 %v2082, %v2099
  %2103 = vrot.lane.b32.xlu0 %v2101, 96
  %v2104 = vpop.permute.xlu0 %2103
  %2106 = vst.msk [vmem:[#allocation3 + $0x8] sm:$0xff] %vm1005, %v2104
  %2107 = vrot.lane.b32.xlu0 %v2101, 32
  %v2108 = vpop.permute.xlu0 %2107
  %v2109 = vsel %vm179, %v2108, 0
  %2111 = vmatprep.subr.mxu0 0.0
  %2112 = vmatpush1.msra.mxu0 %v20
  %2113 = vmatprep.subr.mxu0 0.0
  %2114 = vmatpush1.msra.mxu0 %v21
  %2115 = vmatprep.subr.mxu0 0.0
  %2116 = vmatpush1.msra.mxu0 %v22
  %2117 = vmatprep.subr.mxu0 0.0
  %2118 = vmatpush1.msra.mxu0 %v23
  %2119 = vmatprep.subr.mxu0 0.0
  %2120 = vmatpush1.msra.mxu0 0.0
  %2121 = vmatprep.subr.mxu0 0.0
  %2122 = vmatpush1.msra.mxu0 0.0
  %2123 = vmatprep.subr.mxu0 0.0
  %2124 = vmatpush1.msra.mxu0 0.0
  %2125 = vmatprep.subr.mxu0 0.0
  %2126 = vmatpush1.msra.mxu0 0.0
  %2127 = vmatprep.subr.mxu0 0.0
  %2128 = vmatpush1.msra.mxu0 0.0
  %2129 = vmatprep.subr.mxu0 0.0
  %2130 = vmatpush1.msra.mxu0 0.0
  %2131 = vmatprep.subr.mxu0 0.0
  %2132 = vmatpush1.msra.mxu0 0.0
  %2133 = vmatprep.subr.mxu0 0.0
  %2134 = vmatpush1.msra.mxu0 0.0
  %2135 = vmatprep.subr.mxu0 0.0
  %2136 = vmatpush1.msra.mxu0 0.0
  %2137 = vmatprep.subr.mxu0 0.0
  %2138 = vmatpush1.msra.mxu0 0.0
  %2139 = vmatprep.subr.mxu0 0.0
  %2140 = vmatpush1.msra.mxu0 0.0
  %2141 = vmatprep.subr.mxu0 0.0
  %2142 = vmatpush1.msra.mxu0 0.0
  %2143 = vmatprep.subr.mxu0 0.0
  %2144 = vmatpush1.msra.mxu0 0.0
  %2145 = vmatprep.subr.mxu0 0.0
  %2146 = vmatpush1.msra.mxu0 0.0
  %2147 = vmatprep.subr.mxu0 0.0
  %2148 = vmatpush1.msra.mxu0 0.0
  %2149 = vmatprep.subr.mxu0 0.0
  %2150 = vmatpush1.msra.mxu0 0.0
  %2151 = vmatprep.subr.mxu0 0.0
  %2152 = vmatpush1.msra.mxu0 0.0
  %2153 = vmatprep.subr.mxu0 0.0
  %2154 = vmatpush1.msra.mxu0 0.0
  %2155 = vmatprep.subr.mxu0 0.0
  %2156 = vmatpush1.msra.mxu0 0.0
  %2157 = vmatprep.subr.mxu0 0.0
  %2158 = vmatpush1.msra.mxu0 0.0
  %2159 = vmatprep.subr.mxu0 0.0
  %2160 = vmatpush1.msra.mxu0 0.0
  %2161 = vmatprep.subr.mxu0 0.0
  %2162 = vmatpush1.msra.mxu0 0.0
  %2163 = vmatprep.subr.mxu0 0.0
  %2164 = vmatpush1.msra.mxu0 0.0
  %2165 = vmatprep.subr.mxu0 0.0
  %2166 = vmatpush1.msra.mxu0 0.0
  %2167 = vmatprep.subr.mxu0 0.0
  %2168 = vmatpush1.msra.mxu0 0.0
  %2169 = vmatprep.subr.mxu0 0.0
  %2170 = vmatpush1.msra.mxu0 0.0
  %2171 = vmatprep.subr.mxu0 0.0
  %2172 = vmatpush1.msra.mxu0 0.0
  %2173 = vmatprep.subr.mxu0 0.0
  %2174 = vmatpush1.msra.mxu0 0.0
  %2175 = vmatprep.mubr.f32.mxu0 0.0
  %2176 = vmatmul.mubr.f32.gmra.mrb[0].mxu0 %v2109
  %v2177 = vpop.f32.mrb[0].mxu0
  %v2178 = vadd.f32 %v28, %v2177
  %v2179 = vpop.f32.mrb[0].mxu0
  %2180 = vdwg.mxu0
  %v2181 = vld [vmem:[#allocation2 + $0x38] sm:$0xff]
  %2182 = vmatprep.subr.mxu0 0.0
  %2183 = vmatpush1.msra.mxu0 %v12
  %2184 = vmatprep.subr.mxu0 0.0
  %2185 = vmatpush1.msra.mxu0 %v13
  %2186 = vmatprep.subr.mxu0 0.0
  %2187 = vmatpush1.msra.mxu0 %v14
  %2188 = vmatprep.subr.mxu0 0.0
  %2189 = vmatpush1.msra.mxu0 %v15
  %2190 = vmatprep.subr.mxu0 0.0
  %2191 = vmatpush1.msra.mxu0 0.0
  %2192 = vmatprep.subr.mxu0 0.0
  %2193 = vmatpush1.msra.mxu0 0.0
  %2194 = vmatprep.subr.mxu0 0.0
  %2195 = vmatpush1.msra.mxu0 0.0
  %2196 = vmatprep.subr.mxu0 0.0
  %2197 = vmatpush1.msra.mxu0 0.0
  %2198 = vmatprep.subr.mxu0 0.0
  %2199 = vmatpush1.msra.mxu0 0.0
  %2200 = vmatprep.subr.mxu0 0.0
  %2201 = vmatpush1.msra.mxu0 0.0
  %2202 = vmatprep.subr.mxu0 0.0
  %2203 = vmatpush1.msra.mxu0 0.0
  %2204 = vmatprep.subr.mxu0 0.0
  %2205 = vmatpush1.msra.mxu0 0.0
  %2206 = vmatprep.subr.mxu0 0.0
  %2207 = vmatpush1.msra.mxu0 0.0
  %2208 = vmatprep.subr.mxu0 0.0
  %2209 = vmatpush1.msra.mxu0 0.0
  %2210 = vmatprep.subr.mxu0 0.0
  %2211 = vmatpush1.msra.mxu0 0.0
  %2212 = vmatprep.subr.mxu0 0.0
  %2213 = vmatpush1.msra.mxu0 0.0
  %2214 = vmatprep.subr.mxu0 0.0
  %2215 = vmatpush1.msra.mxu0 0.0
  %2216 = vmatprep.subr.mxu0 0.0
  %2217 = vmatpush1.msra.mxu0 0.0
  %2218 = vmatprep.subr.mxu0 0.0
  %2219 = vmatpush1.msra.mxu0 0.0
  %2220 = vmatprep.subr.mxu0 0.0
  %2221 = vmatpush1.msra.mxu0 0.0
  %2222 = vmatprep.subr.mxu0 0.0
  %2223 = vmatpush1.msra.mxu0 0.0
  %2224 = vmatprep.subr.mxu0 0.0
  %2225 = vmatpush1.msra.mxu0 0.0
  %2226 = vmatprep.subr.mxu0 0.0
  %2227 = vmatpush1.msra.mxu0 0.0
  %2228 = vmatprep.subr.mxu0 0.0
  %2229 = vmatpush1.msra.mxu0 0.0
  %2230 = vmatprep.subr.mxu0 0.0
  %2231 = vmatpush1.msra.mxu0 0.0
  %2232 = vmatprep.subr.mxu0 0.0
  %2233 = vmatpush1.msra.mxu0 0.0
  %2234 = vmatprep.subr.mxu0 0.0
  %2235 = vmatpush1.msra.mxu0 0.0
  %2236 = vmatprep.subr.mxu0 0.0
  %2237 = vmatpush1.msra.mxu0 0.0
  %2238 = vmatprep.subr.mxu0 0.0
  %2239 = vmatpush1.msra.mxu0 0.0
  %2240 = vmatprep.subr.mxu0 0.0
  %2241 = vmatpush1.msra.mxu0 0.0
  %2242 = vmatprep.subr.mxu0 0.0
  %2243 = vmatpush1.msra.mxu0 0.0
  %2244 = vmatprep.subr.mxu0 0.0
  %2245 = vmatpush1.msra.mxu0 0.0
  %2246 = vmatprep.mubr.f32.mxu0 0.0
  %2247 = vmatmul.mubr.f32.gmra.mrb[0].mxu0 %v2005
  %v2248 = vpop.f32.mrb[0].mxu0
  %v2249 = vadd.f32 0.0, %v2248
  %v2250 = vpop.f32.mrb[0].mxu0
  %2251 = vdwg.mxu0
  %v2252 = vadd.f32 %v2181, %v2249
  %v2253 = vxor.u32 %v2252, 2147483648
  %v2254 = vmul.f32 %v2253, 1.442695
  %v2255 = vpow.pop %v2254
  %v2256 = vadd.f32 %v2255, 1.0
  %v2257 = vrcp.pop %v2256
  %v2258 = vmul.f32 1.0, %v2257
  %v2259 = vmul.f32 %v2258, 2.0
  %v2260 = vsub.f32 %v2259, 1.0
  %v2261 = vmul.f32 %v2258, %v1995
  %2263 = vrot.lane.b32.xlu0 %v2260, 64
  %v2264 = vpop.permute.xlu0 %2263
  %v2266 = vmul.f32 %v2258, %v2264
  %2268 = vrot.lane.b32.xlu0 %v2266, 32
  %v2269 = vpop.permute.xlu0 %2268
  %v2271 = vadd.f32 %v2261, %v2269
  %v2272 = vtanh.pop %v2271
  %2274 = vrot.lane.b32.xlu0 %v2272, 64
  %v2275 = vpop.permute.xlu0 %2274
  %v2277 = vmul.f32 %v2258, %v2275
  %2279 = vrot.lane.b32.xlu0 %v2277, 32
  %v2280 = vpop.permute.xlu0 %2279
  %v2281 = vsel %vm179, %v2280, 0
  %2283 = vmatprep.subr.mxu0 0.0
  %2284 = vmatpush1.msra.mxu0 %v16
  %2285 = vmatprep.subr.mxu0 0.0
  %2286 = vmatpush1.msra.mxu0 %v17
  %2287 = vmatprep.subr.mxu0 0.0
  %2288 = vmatpush1.msra.mxu0 %v18
  %2289 = vmatprep.subr.mxu0 0.0
  %2290 = vmatpush1.msra.mxu0 %v19
  %2291 = vmatprep.subr.mxu0 0.0
  %2292 = vmatpush1.msra.mxu0 0.0
  %2293 = vmatprep.subr.mxu0 0.0
  %2294 = vmatpush1.msra.mxu0 0.0
  %2295 = vmatprep.subr.mxu0 0.0
  %2296 = vmatpush1.msra.mxu0 0.0
  %2297 = vmatprep.subr.mxu0 0.0
  %2298 = vmatpush1.msra.mxu0 0.0
  %2299 = vmatprep.subr.mxu0 0.0
  %2300 = vmatpush1.msra.mxu0 0.0
  %2301 = vmatprep.subr.mxu0 0.0
  %2302 = vmatpush1.msra.mxu0 0.0
  %2303 = vmatprep.subr.mxu0 0.0
  %2304 = vmatpush1.msra.mxu0 0.0
  %2305 = vmatprep.subr.mxu0 0.0
  %2306 = vmatpush1.msra.mxu0 0.0
  %2307 = vmatprep.subr.mxu0 0.0
  %2308 = vmatpush1.msra.mxu0 0.0
  %2309 = vmatprep.subr.mxu0 0.0
  %2310 = vmatpush1.msra.mxu0 0.0
  %2311 = vmatprep.subr.mxu0 0.0
  %2312 = vmatpush1.msra.mxu0 0.0
  %2313 = vmatprep.subr.mxu0 0.0
  %2314 = vmatpush1.msra.mxu0 0.0
  %2315 = vmatprep.subr.mxu0 0.0
  %2316 = vmatpush1.msra.mxu0 0.0
  %2317 = vmatprep.subr.mxu0 0.0
  %2318 = vmatpush1.msra.mxu0 0.0
  %2319 = vmatprep.subr.mxu0 0.0
  %2320 = vmatpush1.msra.mxu0 0.0
  %2321 = vmatprep.subr.mxu0 0.0
  %2322 = vmatpush1.msra.mxu0 0.0
  %2323 = vmatprep.subr.mxu0 0.0
  %2324 = vmatpush1.msra.mxu0 0.0
  %2325 = vmatprep.subr.mxu0 0.0
  %2326 = vmatpush1.msra.mxu0 0.0
  %2327 = vmatprep.subr.mxu0 0.0
  %2328 = vmatpush1.msra.mxu0 0.0
  %2329 = vmatprep.subr.mxu0 0.0
  %2330 = vmatpush1.msra.mxu0 0.0
  %2331 = vmatprep.subr.mxu0 0.0
  %2332 = vmatpush1.msra.mxu0 0.0
  %2333 = vmatprep.subr.mxu0 0.0
  %2334 = vmatpush1.msra.mxu0 0.0
  %2335 = vmatprep.subr.mxu0 0.0
  %2336 = vmatpush1.msra.mxu0 0.0
  %2337 = vmatprep.subr.mxu0 0.0
  %2338 = vmatpush1.msra.mxu0 0.0
  %2339 = vmatprep.subr.mxu0 0.0
  %2340 = vmatpush1.msra.mxu0 0.0
  %2341 = vmatprep.subr.mxu0 0.0
  %2342 = vmatpush1.msra.mxu0 0.0
  %2343 = vmatprep.subr.mxu0 0.0
  %2344 = vmatpush1.msra.mxu0 0.0
  %2345 = vmatprep.subr.mxu0 0.0
  %2346 = vmatpush1.msra.mxu0 0.0
  %2347 = vmatprep.mubr.f32.mxu0 0.0
  %2348 = vmatmul.mubr.f32.gmra.mrb[0].mxu0 %v2281
  %v2349 = vpop.f32.mrb[0].mxu0
  %v2350 = vadd.f32 %v2178, %v2349
  %v2351 = vpop.f32.mrb[0].mxu0
  %2352 = vdwg.mxu0
  %v2353 = vxor.u32 %v2350, 2147483648
  %v2354 = vmul.f32 %v2353, 1.442695
  %v2355 = vpow.pop %v2354
  %v2356 = vadd.f32 %v2355, 1.0
  %v2357 = vrcp.pop %v2356
  %v2358 = vmul.f32 1.0, %v2357
  %v2359 = vmul.f32 %v2358, 2.0
  %v2360 = vsub.f32 %v2359, 1.0
  %v2361 = vmul.f32 %v2358, %v2095
  %2363 = vrot.lane.b32.xlu0 %v2360, 64
  %v2364 = vpop.permute.xlu0 %2363
  %v2366 = vmul.f32 %v2358, %v2364
  %2368 = vrot.lane.b32.xlu0 %v2366, 32
  %v2369 = vpop.permute.xlu0 %2368
  %v2371 = vadd.f32 %v2361, %v2369
  %v2372 = vtanh.pop %v2371
  %2374 = vrot.lane.b32.xlu0 %v2372, 64
  %v2375 = vpop.permute.xlu0 %2374
  %v2377 = vmul.f32 %v2358, %v2375
  %2378 = vst.msk [vmem:[#allocation3 + $0x8] sm:$0xff] %vm1278, %v2377
  %v2379 = vld [vmem:[%s1 + $0x68] sm:$0xff]
  %v2380 = vld [vmem:[%s1 + $0x70] sm:$0xff]
  %v2381 = vld [vmem:[%s1 + $0x78] sm:$0xff]
  %v2382 = vld [vmem:[%s1 + $0x80] sm:$0xff]
  %v2383 = vld [vmem:[#allocation3] sm:$0xff]
  %v2384 = vlaneseq
  %v2385 = vshrl.u32 %v2384, 7
  %v2386 = vsub.s32 2, %v2385
  %v2387 = vrot.slane %v24, %v2386
  %v2388 = vmul.f32 %v2383, %v2387
  %v2389 = vsel %vm179, %v2388, 0.0
  %2390 = vadd.xlane.f32.xlu0 %v2389
  %v2391 = vpop.xlane.xlu0 %2390
  %2393 = vrot.lane.b32.xlu0 %v2387, 32
  %v2394 = vpop.permute.xlu0 %2393
  %v2396 = vmul.f32 %v2383, %v2394
  %2398 = vrot.lane.b32.xlu0 %v2396, 96
  %v2399 = vpop.permute.xlu0 %2398
  %v2401 = vsel %vm179, %v2399, 0.0
  %2402 = vadd.xlane.f32.xlu0 %v2401
  %v2403 = vpop.xlane.xlu0 %2402
  %2404 = vrot.lane.b32.xlu0 %v2387, 64
  %v2405 = vpop.permute.xlu0 %2404
  %v2407 = vmul.f32 %v2383, %v2405
  %2409 = vrot.lane.b32.xlu0 %v2407, 64
  %v2410 = vpop.permute.xlu0 %2409
  %v2412 = vsel %vm179, %v2410, 0.0
  %2413 = vadd.xlane.f32.xlu0 %v2412
  %v2414 = vpop.xlane.xlu0 %2413
  %2415 = vrot.lane.b32.xlu0 %v2387, 96
  %v2416 = vpop.permute.xlu0 %2415
  %v2418 = vmul.f32 %v2383, %v2416
  %2420 = vrot.lane.b32.xlu0 %v2418, 32
  %v2421 = vpop.permute.xlu0 %2420
  %v2423 = vsel %vm179, %v2421, 0.0
  %2424 = vadd.xlane.f32.xlu0 %v2423
  %v2425 = vpop.xlane.xlu0 %2424
  %v2426 = vld [vmem:[#allocation3 + $0x8] sm:$0xff]
  %v2427 = vmul.f32 %v2426, %v2387
  %v2428 = vsel %vm179, %v2427, 0.0
  %2429 = vadd.xlane.f32.xlu0 %v2428
  %v2430 = vpop.xlane.xlu0 %2429
  %v2431 = vmul.f32 %v2426, %v2394
  %2433 = vrot.lane.b32.xlu0 %v2431, 96
  %v2434 = vpop.permute.xlu0 %2433
  %v2436 = vsel %vm179, %v2434, 0.0
  %2437 = vadd.xlane.f32.xlu0 %v2436
  %v2438 = vpop.xlane.xlu0 %2437
  %v2439 = vmul.f32 %v2426, %v2405
  %2441 = vrot.lane.b32.xlu0 %v2439, 64
  %v2442 = vpop.permute.xlu0 %2441
  %v2444 = vsel %vm179, %v2442, 0.0
  %2445 = vadd.xlane.f32.xlu0 %v2444
  %v2446 = vpop.xlane.xlu0 %2445
  %v2447 = vmul.f32 %v2426, %v2416
  %2449 = vrot.lane.b32.xlu0 %v2447, 32
  %v2450 = vpop.permute.xlu0 %2449
  %v2452 = vsel %vm179, %v2450, 0.0
  %2453 = vadd.xlane.f32.xlu0 %v2452
  %v2454 = vpop.xlane.xlu0 %2453
  %vm2455 = vcmask 7168
  %v2456 = vsel %vm2455, %v2391, %v2403
  %vm2457 = vcmask 15360
  %v2458 = vsel %vm2457, %v2456, %v2414
  %vm2459 = vcmask 23552
  %v2460 = vsel %vm2459, %v2458, %v2425
  %vm2461 = vcmask 31744
  %v2462 = vsel %vm2461, %v2460, %v2430
  %vm2463 = vcmask 39936
  %v2464 = vsel %vm2463, %v2462, %v2438
  %vm2465 = vcmask 48128
  %v2466 = vsel %vm2465, %v2464, %v2446
  %vm2467 = vcmask 56320
  %v2468 = vsel %vm2467, %v2466, %v2454
  %v2470 = vrot.slane %v24, 5
  %s2471 = vtos %v2470
  %v2472 = vstv %s2471
  %v2474 = vadd.f32 %v2468, %v2472
  %v2475 = vtanh.pop %v2474
  %v2476 = vsel %vm41, %v2475, -inf
  %2477 = vmax.xlane.f32.xlu0 %v2476
  %v2478 = vpop.xlane.xlu0 %2477
  %v2479 = vsub.f32 %v2475, %v2478
  %v2480 = vmul.f32 %v2479, 1.442695
  %v2481 = vpow.pop %v2480
  %v2482 = vsel %vm41, %v2481, 0.0
  %2483 = vadd.xlane.f32.xlu0 %v2482
  %v2484 = vpop.xlane.xlu0 %2483
  %v2485 = vrcp.pop %v2484
  %v2486 = vmul.f32 %v2481, %v2485
  %2488 = vset.pattern.permute.xlu0 0
  %2489 = vperm.xlu0 %2488, %v2486
  %v2490 = vpop.permute.xlu0 %2489
  %v2492 = vmul.f32 %v2490, %v2383
  %v2493 = vadd.f32 %v2492, 0.0
  %2494 = vset.pattern.permute.xlu0 1
  %2495 = vperm.xlu0 %2494, %v2486
  %v2496 = vpop.permute.xlu0 %2495
  %v2498 = vmul.f32 %v2496, %v2383
  %2500 = vrot.lane.b32.xlu0 %v2498, 96
  %v2501 = vpop.permute.xlu0 %2500
  %v2503 = vadd.f32 %v2493, %v2501
  %2504 = vset.pattern.permute.xlu0 2
  %2505 = vperm.xlu0 %2504, %v2486
  %v2506 = vpop.permute.xlu0 %2505
  %v2508 = vmul.f32 %v2506, %v2383
  %2510 = vrot.lane.b32.xlu0 %v2508, 64
  %v2511 = vpop.permute.xlu0 %2510
  %v2513 = vadd.f32 %v2503, %v2511
  %2514 = vset.pattern.permute.xlu0 3
  %2515 = vperm.xlu0 %2514, %v2486
  %v2516 = vpop.permute.xlu0 %2515
  %v2518 = vmul.f32 %v2516, %v2383
  %2520 = vrot.lane.b32.xlu0 %v2518, 32
  %v2521 = vpop.permute.xlu0 %2520
  %v2523 = vadd.f32 %v2513, %v2521
  %2524 = vset.pattern.permute.xlu0 4
  %2525 = vperm.xlu0 %2524, %v2486
  %v2526 = vpop.permute.xlu0 %2525
  %v2528 = vmul.f32 %v2526, %v2426
  %v2529 = vadd.f32 %v2523, %v2528
  %2530 = vset.pattern.permute.xlu0 5
  %2531 = vperm.xlu0 %2530, %v2486
  %v2532 = vpop.permute.xlu0 %2531
  %v2534 = vmul.f32 %v2532, %v2426
  %2536 = vrot.lane.b32.xlu0 %v2534, 96
  %v2537 = vpop.permute.xlu0 %2536
  %v2539 = vadd.f32 %v2529, %v2537
  %2540 = vset.pattern.permute.xlu0 6
  %2541 = vperm.xlu0 %2540, %v2486
  %v2542 = vpop.permute.xlu0 %2541
  %v2544 = vmul.f32 %v2542, %v2426
  %2546 = vrot.lane.b32.xlu0 %v2544, 64
  %v2547 = vpop.permute.xlu0 %2546
  %v2549 = vadd.f32 %v2539, %v2547
  %2550 = vset.pattern.permute.xlu0 7
  %2551 = vperm.xlu0 %2550, %v2486
  %v2552 = vpop.permute.xlu0 %2551
  %v2554 = vmul.f32 %v2552, %v2426
  %2556 = vrot.lane.b32.xlu0 %v2554, 32
  %v2557 = vpop.permute.xlu0 %2556
  %v2559 = vadd.f32 %v2549, %v2557
  %v2560 = vlaneseq
  %v2561 = vshrl.u32 %v2560, 7
  %v2562 = vsub.s32 3, %v2561
  %v2563 = vrot.slane %v24, %v2562
  %v2565 = vsel %vm179, %v2559, 0
  %2567 = vmatprep.subr.mxu0 0.0
  %2568 = vmatpush1.msra.mxu0 %v2379
  %2569 = vmatprep.subr.mxu0 0.0
  %2570 = vmatpush1.msra.mxu0 %v2380
  %2571 = vmatprep.subr.mxu0 0.0
  %2572 = vmatpush1.msra.mxu0 %v2381
  %2573 = vmatprep.subr.mxu0 0.0
  %2574 = vmatpush1.msra.mxu0 %v2382
  %2575 = vmatprep.subr.mxu0 0.0
  %2576 = vmatpush1.msra.mxu0 0.0
  %2577 = vmatprep.subr.mxu0 0.0
  %2578 = vmatpush1.msra.mxu0 0.0
  %2579 = vmatprep.subr.mxu0 0.0
  %2580 = vmatpush1.msra.mxu0 0.0
  %2581 = vmatprep.subr.mxu0 0.0
  %2582 = vmatpush1.msra.mxu0 0.0
  %2583 = vmatprep.subr.mxu0 0.0
  %2584 = vmatpush1.msra.mxu0 0.0
  %2585 = vmatprep.subr.mxu0 0.0
  %2586 = vmatpush1.msra.mxu0 0.0
  %2587 = vmatprep.subr.mxu0 0.0
  %2588 = vmatpush1.msra.mxu0 0.0
  %2589 = vmatprep.subr.mxu0 0.0
  %2590 = vmatpush1.msra.mxu0 0.0
  %2591 = vmatprep.subr.mxu0 0.0
  %2592 = vmatpush1.msra.mxu0 0.0
  %2593 = vmatprep.subr.mxu0 0.0
  %2594 = vmatpush1.msra.mxu0 0.0
  %2595 = vmatprep.subr.mxu0 0.0
  %2596 = vmatpush1.msra.mxu0 0.0
  %2597 = vmatprep.subr.mxu0 0.0
  %2598 = vmatpush1.msra.mxu0 0.0
  %2599 = vmatprep.subr.mxu0 0.0
  %2600 = vmatpush1.msra.mxu0 0.0
  %2601 = vmatprep.subr.mxu0 0.0
  %2602 = vmatpush1.msra.mxu0 0.0
  %2603 = vmatprep.subr.mxu0 0.0
  %2604 = vmatpush1.msra.mxu0 0.0
  %2605 = vmatprep.subr.mxu0 0.0
  %2606 = vmatpush1.msra.mxu0 0.0
  %2607 = vmatprep.subr.mxu0 0.0
  %2608 = vmatpush1.msra.mxu0 0.0
  %2609 = vmatprep.subr.mxu0 0.0
  %2610 = vmatpush1.msra.mxu0 0.0
  %2611 = vmatprep.subr.mxu0 0.0
  %2612 = vmatpush1.msra.mxu0 0.0
  %2613 = vmatprep.subr.mxu0 0.0
  %2614 = vmatpush1.msra.mxu0 0.0
  %2615 = vmatprep.subr.mxu0 0.0
  %2616 = vmatpush1.msra.mxu0 0.0
  %2617 = vmatprep.subr.mxu0 0.0
  %2618 = vmatpush1.msra.mxu0 0.0
  %2619 = vmatprep.subr.mxu0 0.0
  %2620 = vmatpush1.msra.mxu0 0.0
  %2621 = vmatprep.subr.mxu0 0.0
  %2622 = vmatpush1.msra.mxu0 0.0
  %2623 = vmatprep.subr.mxu0 0.0
  %2624 = vmatpush1.msra.mxu0 0.0
  %2625 = vmatprep.subr.mxu0 0.0
  %2626 = vmatpush1.msra.mxu0 0.0
  %2627 = vmatprep.subr.mxu0 0.0
  %2628 = vmatpush1.msra.mxu0 0.0
  %2629 = vmatprep.subr.mxu0 0.0
  %2630 = vmatpush1.msra.mxu0 0.0
  %2631 = vmatprep.mubr.f32.mxu0 0.0
  %2632 = vmatmul.mubr.f32.gmra.mrb[0].mxu0 %v2565
  %v2633 = vpop.f32.mrb[0].mxu0
  %v2634 = vadd.f32 %v2563, %v2633
  %v2635 = vpop.f32.mrb[0].mxu0
  %2636 = vdwg.mxu0
  %v2637 = vmax.f32 %v2634, 0.0
  %v2638 = vlaneseq
  %v2639 = vshrl.u32 %v2638, 7
  %v2640 = vsub.s32 4, %v2639
  %v2641 = vrot.slane %v24, %v2640
  %v2642 = vmul.f32 %v2637, %v2641
  %2643 = vadd.xlane.f32.xlu0 %v2642
  %v2644 = vpop.xlane.xlu0 %2643
  %v2645 = vlaneseq
  %v2646 = vshrl.u32 %v2645, 7
  %v2647 = vsub.s32 5, %v2646
  %v2648 = vrot.slane %v24, %v2647
  %v2649 = vadd.f32 %v2644, %v2648
  %2651 = vrot.lane.b32.xlu0 %v2649, 127
  %v2652 = vpop.permute.xlu0 %2651
  %2654 = vst.msk [vmem:[%s2] sm:$0xff] %vm2455, %v2652
  // Predicated region
  $region10: #{lstm_model_forward.1} parent=0 // pred_check
    _
  $region11: #{lstm_model_forward.1} parent=0 // pred_check_branch
    %2656 = sbr.rel (0) target = $region13
  $region12: #{lstm_model_forward.1} parent=0 // pred_region
    _
  $region13: #{lstm_model_forward.1} parent=0 // pred_fallthru
    _
  // Predicated region
  $region14: #{lstm_model_forward.1} parent=0 // pred_check
    _
  $region15: #{lstm_model_forward.1} parent=0 // pred_check_branch
    %2658 = sbr.rel (0) target = $region17
  $region16: #{lstm_model_forward.1} parent=0 // pred_region
    _
  $region17: #{lstm_model_forward.1} parent=0 // pred_fallthru
    _

</llo_original>
